<compile_context>
chip_gen: v7x
topology: tpu7x:2x2x1
jax: 0.10.0
libtpu: 0.0.40
codegen_flags: <defaults>
</compile_context>

<pallas_src>
import jax
import jax.numpy as jnp
from jax.experimental import pallas as pl
from jax.experimental.pallas import tpu as pltpu

# ---- config (mirrors the cfg.* values the module reads; small synthetic sizes) ----
IM_W, IM_H = 128, 128
STRIDE = 16
RATIOS = (0.5, 1.0, 2.0)
SCALES = (8,)
K = len(RATIOS) * len(SCALES)          # anchors per location (= 3)
FEAT_CH = 256                          # features_out_ch (fixed by the module)
RPN_CH = 512                           # rpn_out_ch      (fixed by the module)
BATCH = 2                              # IMS_PER_BATCH
OUT_W = IM_W // STRIDE                 # 8
OUT_H = IM_H // STRIDE                 # 8
M = BATCH * OUT_H * OUT_W              # 128 lanes (batch folded into the lane dim)
RPN_BBOX_STD_DEV = (0.1, 0.1, 0.2, 0.2)
GAIN = 0.01                            # cfg.GAIN (init_module: normal(0, gain), bias 0)

CHUNK = 128                            # rpn output-channel slab per grid step
NCHUNK = RPN_CH // CHUNK               # 4 pipelined steps
K_AUG = 9 * FEAT_CH + 128              # im2col rows + bias/ones row, padded to 19*128
GROW = 8                               # sublane-aligned group stride (K=3 padded to 8)

assert RPN_CH % CHUNK == 0
assert OUT_W & (OUT_W - 1) == 0 and OUT_H & (OUT_H - 1) == 0
W_SHIFT = OUT_W.bit_length() - 1


# ----------------------------------------------------------------------------------
# Fused kernel.  grid = (NCHUNK,) over 128-row slabs of rpn_x output channels.
#   xT_ref   : (C, M)            f32   channel-major activation (resident, fetched once)
#   w3_ref   : (CHUNK, K_AUG)    bf16  shared_conv weight slab (+bias col), streamed
#   wcat_ref : (48, CHUNK)       bf16  fused cls/bbox 1x1 weights slab, streamed
#   bcat_ref : (48, 1)           f32   fused cls/bbox biases (8-row padded groups)
#   geom_ref : (32, M)           f32   anchor geometry rows [w|h|cx|cy] x 8
#   head_ref : (48, M)           f32   raw logits/deltas: [cls0|cls1|dx|dy|dw|dh] x 8
#   prop_ref : (40, M)           f32   [x1|y1|x2|y2|score] x 8
#   im2_ref  : (K_AUG, M)        f32   scratch: im2col + ones row (built at g==0)
#   acc_ref  : (48, M)           f32   scratch: head accumulator over channel slabs
# ----------------------------------------------------------------------------------
def fused_rpn_kernel(xT_ref, w3_ref, wcat_ref, bcat_ref, geom_ref,
                     head_ref, prop_ref, im2_ref, acc_ref):
    g = pl.program_id(0)

    @pl.when(g == 0)
    def _init():
        # Build the channel-major im2col once into VMEM scratch (9 static lane shifts
        # + border masks); no 9x activation expansion / big transpose on the XLA side.
        xf = xT_ref[...]                                              # (C, M)
        lane = jax.lax.broadcasted_iota(jnp.int32, (1, M), 1)
        wpos = lane & (OUT_W - 1)
        hpos = (lane >> W_SHIFT) & (OUT_H - 1)

        def lane_shift(v, d):
            # out[:, m] = v[:, m + d] (zero fill outside)
            if d == 0:
                return v
            if d > 0:
                return jnp.concatenate(
                    [v[:, d:], jnp.zeros((v.shape[0], d), v.dtype)], axis=1)
            return jnp.concatenate(
                [jnp.zeros((v.shape[0], -d), v.dtype), v[:, :d]], axis=1)

        for t in range(9):                     # SamePad2d(3,1): tap order t = dy*3 + dx
            dyo, dxo = t // 3 - 1, t % 3 - 1
            tap = lane_shift(xf, dyo * OUT_W + dxo)
            valid = ((hpos + dyo >= 0) & (hpos + dyo < OUT_H) &
                     (wpos + dxo >= 0) & (wpos + dxo < OUT_W))
            im2_ref[t * FEAT_CH:(t + 1) * FEAT_CH, :] = jnp.where(valid, tap, 0.0)

        # ones row (folds shared_conv bias into the contraction) + zero padding rows
        row = jax.lax.broadcasted_iota(jnp.int32, (K_AUG - 9 * FEAT_CH, M), 0)
        im2_ref[9 * FEAT_CH:, :] = jnp.where(row == 0, 1.0, 0.0)

        # head accumulator initialised with the cls/bbox biases (one lane broadcast)
        acc_ref[...] = jnp.broadcast_to(bcat_ref[...], acc_ref.shape)

    # shared 3x3 conv for this 128-channel slab of rpn_x (bias folded in) + ReLU
    rpn_chunk = jnp.maximum(
        jnp.dot(w3_ref[...].astype(jnp.float32), im2_ref[...],
                preferred_element_type=jnp.float32), 0.0)             # (CHUNK, M)

    # fused rpn_cls_conv + rpn_bbox_conv: partial sum over the rpn channel slabs
    acc_ref[...] += jnp.dot(wcat_ref[...].astype(jnp.float32), rpn_chunk,
                            preferred_element_type=jnp.float32)       # (48, M)

    @pl.when(g == pl.num_programs(0) - 1)
    def _finalize():
        head = acc_ref[...]
        head_ref[...] = head                                          # raw logits/deltas

        # 8-row (sublane aligned) slabs: [cls0 | cls1 | dx | dy | dw | dh]
        l0 = head[0 * GROW:1 * GROW, :]
        l1 = head[1 * GROW:2 * GROW, :]
        dx = head[2 * GROW:3 * GROW, :] * RPN_BBOX_STD_DEV[0]
        dy = head[3 * GROW:4 * GROW, :] * RPN_BBOX_STD_DEV[1]
        dw = head[4 * GROW:5 * GROW, :] * RPN_BBOX_STD_DEV[2]
        dh = head[5 * GROW:6 * GROW, :] * RPN_BBOX_STD_DEV[3]

        aw = geom_ref[0 * GROW:1 * GROW, :]
        ah = geom_ref[1 * GROW:2 * GROW, :]
        cx = geom_ref[2 * GROW:3 * GROW, :]
        cy = geom_ref[3 * GROW:4 * GROW, :]

        # bbox_transform_inv
        pcx = dx * aw + cx
        pcy = dy * ah + cy
        pw = jnp.exp(dw) * aw
        ph = jnp.exp(dh) * ah

        # clip_boxes(boxes, bound=(im_w, im_h))
        nx1 = jnp.minimum(float(IM_W), jnp.maximum(0.0, pcx - 0.5 * pw))
        ny1 = jnp.minimum(float(IM_H), jnp.maximum(0.0, pcy - 0.5 * ph))
        nx2 = jnp.maximum(0.0, jnp.minimum(float(IM_W), pcx + 0.5 * pw))
        ny2 = jnp.maximum(0.0, jnp.minimum(float(IM_H), pcy + 0.5 * ph))

        # numerically stable 2-class softmax foreground prob = sigmoid(l1 - l0)
        z = l1 - l0
        zm = jnp.minimum(z, 0.0)
        e1 = jnp.exp(zm)
        e0 = jnp.exp(zm - z)
        score = e1 / (e1 + e0)

        prop_ref[...] = jnp.concatenate([nx1, ny1, nx2, ny2, score], axis=0)


def _pad_rows(v, rows=GROW):
    pad = rows - v.shape[0]
    if pad == 0:
        return v
    return jnp.concatenate([v, jnp.zeros((pad,) + v.shape[1:], v.dtype)], axis=0)


# ----------------------------------------------------------------------------------
# Wrapper: one-time weight/anchor prep + tiny output reassembly
# ----------------------------------------------------------------------------------
def faster_rcnn_forward(x_nchw, params, anchors):
    """x_nchw: (B, 256, H, W) FPN p2 feature map (NCHW); anchors: (B*H*W*K, 4)."""
    w3, b3, wc, bc, wb, bb = params
    B, C, H, W = x_nchw.shape

    # channel-major activation (C, M) -- no im2col / 9x expansion on the XLA side
    xT = jnp.transpose(x_nchw, (1, 0, 2, 3)).reshape(C, M).astype(jnp.float32)

    # shared_conv weight -> (512, 9C) + bias column + zero pad to K_AUG (128-aligned)
    w3_mat = w3.reshape(9 * C, RPN_CH).T                                     # (512, 9C)
    w3_aug = jnp.concatenate(
        [w3_mat, b3[:, None], jnp.zeros((RPN_CH, K_AUG - 9 * C - 1), jnp.float32)],
        axis=1).astype(jnp.bfloat16)                                         # (512, K_AUG)

    # fused + 8-row-padded cls/bbox head weights: groups [cls0|cls1|dx|dy|dw|dh]
    wgroups = [wc[:, 0:K].T, wc[:, K:2 * K].T] + [wb[:, c::4].T for c in range(4)]
    wcat48 = jnp.concatenate([_pad_rows(wg) for wg in wgroups], axis=0)      # (48, 512)
    wcat48 = wcat48.astype(jnp.bfloat16)
    bgroups = [bc[0:K], bc[K:2 * K]] + [bb[c::4] for c in range(4)]
    bcat48 = jnp.concatenate([_pad_rows(bg) for bg in bgroups], axis=0)
    bcat48 = bcat48.reshape(6 * GROW, 1).astype(jnp.float32)                 # (48, 1)

    # anchor geometry (constants) precomputed channel-major, 8-row padded groups
    a = anchors.reshape(M, K, 4).astype(jnp.float32)
    aw = (a[:, :, 2] - a[:, :, 0] + 1.0).T                                   # (K, M)
    ah = (a[:, :, 3] - a[:, :, 1] + 1.0).T
    cx = a[:, :, 0].T + 0.5 * aw
    cy = a[:, :, 1].T + 0.5 * ah
    geom = jnp.concatenate([_pad_rows(v) for v in (aw, ah, cx, cy)], axis=0)  # (32, M)

    head, props = pl.pallas_call(
        fused_rpn_kernel,
        out_shape=(jax.ShapeDtypeStruct((6 * GROW, M), jnp.float32),
                   jax.ShapeDtypeStruct((5 * GROW, M), jnp.float32)),
        grid_spec=pltpu.PrefetchScalarGridSpec(
            num_scalar_prefetch=0,
            grid=(NCHUNK,),
            in_specs=[
                pl.BlockSpec((C, M), lambda g: (0, 0)),             # resident activation
                pl.BlockSpec((CHUNK, K_AUG), lambda g: (g, 0)),     # streamed conv weight
                pl.BlockSpec((6 * GROW, CHUNK), lambda g: (0, g)),  # streamed head weight
                pl.BlockSpec((6 * GROW, 1), lambda g: (0, 0)),
                pl.BlockSpec((4 * GROW, M), lambda g: (0, 0)),
            ],
            out_specs=[
                pl.BlockSpec((6 * GROW, M), lambda g: (0, 0)),
                pl.BlockSpec((5 * GROW, M), lambda g: (0, 0)),
            ],
            scratch_shapes=[
                pltpu.VMEM((K_AUG, M), jnp.float32),                # im2col (built once)
                pltpu.VMEM((6 * GROW, M), jnp.float32),             # head accumulator
            ],
        ),
        compiler_params=pltpu.CompilerParams(dimension_semantics=("arbitrary",)),
    )(xT, w3_aug, wcat48, bcat48, geom)

    # ---- reassemble the module outputs (tiny XLA glue on <48x128 slabs) ----
    cls_cm = jnp.concatenate([head[0:K, :], head[GROW:GROW + K, :]], axis=0)   # (2K, M)
    rpn_cls = cls_cm.reshape(2 * K, B, H, W).transpose(1, 0, 2, 3)             # (B,2K,H,W)
    rpn_logits = rpn_cls.reshape(B, 2, K * H, W)                               # torch .view

    bbox_cm = jnp.concatenate(
        [head[(2 + c) * GROW:(2 + c) * GROW + K, :] for c in range(4)], axis=0)  # coord*K+k
    bbox_kc = bbox_cm.reshape(4, K, M).transpose(1, 0, 2).reshape(4 * K, M)    # k*4+coord
    rpn_bbox = bbox_kc.reshape(4 * K, B, H, W).transpose(1, 0, 2, 3)           # (B,4K,H,W)

    prop_rows = [props[gi * GROW:gi * GROW + K, :] for gi in range(5)]         # x1,y1,x2,y2,s
    proposals = jnp.stack(prop_rows, axis=0).transpose(2, 1, 0).reshape(M * K, 5)
    # TODO(synk): per-image NMS over the proposal lists is data-dependent / host-side.
    return rpn_logits, rpn_bbox, proposals


# ----------------------------------------------------------------------------------
# Deterministic parameter init (init_module: Conv weight ~ N(0, GAIN), bias = 0)
# ----------------------------------------------------------------------------------
def init_params(key):
    k1, k2, k3 = jax.random.split(key, 3)
    w3 = GAIN * jax.random.normal(k1, (3, 3, FEAT_CH, RPN_CH), jnp.float32)  # HWIO
    b3 = jnp.zeros((RPN_CH,), jnp.float32)
    wc = GAIN * jax.random.normal(k2, (RPN_CH, 2 * K), jnp.float32)
    bc = jnp.zeros((2 * K,), jnp.float32)
    wb = GAIN * jax.random.normal(k3, (RPN_CH, 4 * K), jnp.float32)
    bb = jnp.zeros((4 * K,), jnp.float32)
    return (w3, b3, wc, bc, wb, bb)


def make_anchors():
    # per-image anchors in (h, w, k) order to match the (b, h, w, k) score/bbox layout
    ys, xs, ks = jnp.meshgrid(jnp.arange(OUT_H), jnp.arange(OUT_W), jnp.arange(K),
                              indexing="ij")
    cx = (xs.astype(jnp.float32) + 0.5) * STRIDE
    cy = (ys.astype(jnp.float32) + 0.5) * STRIDE
    base = jnp.array([32.0, 48.0, 64.0], jnp.float32)[ks]
    half = base / 2.0
    anch = jnp.stack([cx - half, cy - half, cx + half, cy + half], axis=-1)
    anch = anch.reshape(-1, 4)                           # (K*H*W, 4) per image
    return jnp.concatenate([anch] * BATCH, axis=0)       # vstack over the batch


# ----------------------------------------------------------------------------------
# Pure-JAX f32 reference of the same forward math (correctness check)
# ----------------------------------------------------------------------------------
def reference_forward(x_nchw, params, anchors):
    w3, b3, wc, bc, wb, bb = params
    B, C, H, W = x_nchw.shape
    x = jnp.transpose(x_nchw, (0, 2, 3, 1))
    xpad = jnp.pad(x, ((0, 0), (1, 1), (1, 1), (0, 0)))
    y = jax.lax.conv_general_dilated(xpad, w3, (1, 1), "VALID",
                                     dimension_numbers=("NHWC", "HWIO", "NHWC"))
    y = jnp.maximum(y + b3, 0.0)
    cls = jnp.einsum("bhwc,cd->bhwd", y, wc) + bc                 # (B, H, W, 2K)
    bbox = jnp.einsum("bhwc,cd->bhwd", y, wb) + bb                # (B, H, W, 4K)
    rpn_cls = jnp.transpose(cls, (0, 3, 1, 2))                    # (B, 2K, H, W)
    rpn_bbox = jnp.transpose(bbox, (0, 3, 1, 2))                  # (B, 4K, H, W)
    rpn_logits = rpn_cls.reshape(B, 2, K * H, W)

    sm = jax.nn.softmax(rpn_logits, axis=1)[:, 1]                 # (B, K*H, W)
    scores = sm.reshape(B, K, H, W).transpose(0, 2, 3, 1).reshape(-1)
    deltas = jnp.transpose(rpn_bbox, (0, 2, 3, 1)).reshape(-1, 4)
    deltas = deltas * jnp.array(RPN_BBOX_STD_DEV, jnp.float32)

    widths = anchors[:, 2] - anchors[:, 0] + 1.0
    heights = anchors[:, 3] - anchors[:, 1] + 1.0
    ctr_x = anchors[:, 0] + 0.5 * widths
    ctr_y = anchors[:, 1] + 0.5 * heights
    pcx = deltas[:, 0] * widths + ctr_x
    pcy = deltas[:, 1] * heights + ctr_y
    pw = jnp.exp(deltas[:, 2]) * widths
    ph = jnp.exp(deltas[:, 3]) * heights
    x1 = jnp.clip(pcx - 0.5 * pw, 0.0, float(IM_W))
    y1 = jnp.clip(pcy - 0.5 * ph, 0.0, float(IM_H))
    x2 = jnp.clip(pcx + 0.5 * pw, 0.0, float(IM_W))
    y2 = jnp.clip(pcy + 0.5 * ph, 0.0, float(IM_H))
    proposals = jnp.stack([x1, y1, x2, y2, scores], axis=1)       # (N, 5)
    return rpn_logits, rpn_bbox, proposals


if __name__ == "__main__":
    key = jax.random.PRNGKey(0)
    kx, kp = jax.random.split(key)

    # FPN p2 feature map (NCHW, as the PyTorch code hands to shared_conv)
    x = jax.random.normal(kx, (BATCH, FEAT_CH, OUT_H, OUT_W), jnp.float32)
    params = init_params(kp)
    anchors = make_anchors()                              # (B*K*H*W, 4)

    forward = jax.jit(faster_rcnn_forward)
    rpn_logits, rpn_bbox, proposals = forward(x, params, anchors)

    output = {
        "rpn_logits": rpn_logits,                         # (B, 2, K*H, W)
        "rpn_bbox": rpn_bbox,                             # (B, 4K, H, W)
        "proposals": proposals,                           # (N, 5) pre-NMS
        "num_proposals": [K * OUT_H * OUT_W] * BATCH,
    }
    # TODO(synk): frcnn_probs / frcnn_bbox require RoIAlign + the external FastRCNN head.

    jax.block_until_ready((output["rpn_logits"], output["rpn_bbox"], output["proposals"]))

    # sanity-check the fused Pallas kernel (bf16-stored weights, f32 MXU) vs f32 XLA ref
    ref_logits, ref_bbox, ref_props = reference_forward(x, params, anchors)
    assert jnp.allclose(rpn_logits, ref_logits, atol=2e-2, rtol=2e-2)
    assert jnp.allclose(rpn_bbox, ref_bbox, atol=2e-2, rtol=2e-2)
    assert jnp.allclose(proposals, ref_props, atol=5e-2, rtol=2e-2)

    print("KERNEL_OK")
</pallas_src>

<mosaic_0001>
module attributes {stable_mosaic.version = 11 : i64} {
  func.func @fused_rpn_kernel(%arg0: i32, %arg1: memref<256x128xf32, #tpu.memory_space<vmem>>, %arg2: memref<128x2432xbf16, #tpu.memory_space<vmem>>, %arg3: memref<48x128xbf16, #tpu.memory_space<vmem>>, %arg4: memref<48x1xf32, #tpu.memory_space<vmem>>, %arg5: memref<32x128xf32, #tpu.memory_space<vmem>>, %arg6: memref<48x128xf32, #tpu.memory_space<vmem>>, %arg7: memref<40x128xf32, #tpu.memory_space<vmem>>, %arg8: memref<2432x128xf32, #tpu.memory_space<vmem>>, %arg9: memref<48x128xf32, #tpu.memory_space<vmem>>) attributes {dimension_semantics = [#tpu.dimension_semantics<arbitrary>], iteration_bounds = array<i64: 4>, scalar_prefetch = 0 : i64, scratch_operands = 2 : i64, tpu.core_type = #tpu.core_type<tc>, window_params = [{pipeline_mode = #tpu.pipeline_mode<synchronous>, transform_indices = @transform_0, window_bounds = array<i64: 256, 128>}, {transform_indices = @transform_1, window_bounds = array<i64: 128, 2432>}, {transform_indices = @transform_2, window_bounds = array<i64: 48, 128>}, {pipeline_mode = #tpu.pipeline_mode<synchronous>, transform_indices = @transform_3, window_bounds = array<i64: 48, 1>}, {pipeline_mode = #tpu.pipeline_mode<synchronous>, transform_indices = @transform_4, window_bounds = array<i64: 32, 128>}, {pipeline_mode = #tpu.pipeline_mode<synchronous>, transform_indices = @transform_5, window_bounds = array<i64: 48, 128>}, {pipeline_mode = #tpu.pipeline_mode<synchronous>, transform_indices = @transform_6, window_bounds = array<i64: 40, 128>}]} {
    %c0_i32 = arith.constant 0 : i32
    %0 = arith.cmpi eq, %arg0, %c0_i32 : i32
    %1 = arith.extui %0 : i1 to i32
    %c0_i32_0 = arith.constant 0 : i32
    %2 = arith.cmpi ne, %1, %c0_i32_0 : i32
    scf.if %2 {
      %c0_13 = arith.constant 0 : index
      %c0_14 = arith.constant 0 : index
      %18 = vector.load %arg1[%c0_13, %c0_14] : memref<256x128xf32, #tpu.memory_space<vmem>>, vector<256x128xf32>
      %19 = tpu.iota {dimensions = array<i32: 1>} : vector<1x128xi32>
      %c7_i32 = arith.constant 7 : i32
      %20 = vector.broadcast %c7_i32 : i32 to vector<1x128xi32>
      %21 = arith.andi %19, %20 : vector<1x128xi32>
      %c3_i32_15 = arith.constant 3 : i32
      %22 = vector.broadcast %c3_i32_15 : i32 to vector<1x128xi32>
      %23 = arith.shrsi %19, %22 : vector<1x128xi32>
      %c7_i32_16 = arith.constant 7 : i32
      %24 = vector.broadcast %c7_i32_16 : i32 to vector<1x128xi32>
      %25 = arith.andi %23, %24 : vector<1x128xi32>
      %cst_17 = arith.constant 0.000000e+00 : f32
      %26 = vector.broadcast %cst_17 : f32 to vector<256x9xf32>
      %27 = vector.extract_strided_slice %18 {offsets = [0, 0], sizes = [256, 119], strides = [1, 1]} : vector<256x128xf32> to vector<256x119xf32>
      %28 = tpu.concatenate %26, %27 in 1 : vector<256x9xf32>, vector<256x119xf32> -> vector<256x128xf32>
      %c-1_i32 = arith.constant -1 : i32
      %29 = vector.broadcast %c-1_i32 : i32 to vector<1x128xi32>
      %30 = arith.addi %25, %29 : vector<1x128xi32>
      %c0_i32_18 = arith.constant 0 : i32
      %31 = vector.broadcast %c0_i32_18 : i32 to vector<1x128xi32>
      %32 = arith.cmpi sge, %30, %31 : vector<1x128xi32>
      %c-1_i32_19 = arith.constant -1 : i32
      %33 = vector.broadcast %c-1_i32_19 : i32 to vector<1x128xi32>
      %34 = arith.addi %25, %33 : vector<1x128xi32>
      %c8_i32 = arith.constant 8 : i32
      %35 = vector.broadcast %c8_i32 : i32 to vector<1x128xi32>
      %36 = arith.cmpi slt, %34, %35 : vector<1x128xi32>
      %37 = arith.andi %32, %36 : vector<1x128xi1>
      %c-1_i32_20 = arith.constant -1 : i32
      %38 = vector.broadcast %c-1_i32_20 : i32 to vector<1x128xi32>
      %39 = arith.addi %21, %38 : vector<1x128xi32>
      %c0_i32_21 = arith.constant 0 : i32
      %40 = vector.broadcast %c0_i32_21 : i32 to vector<1x128xi32>
      %41 = arith.cmpi sge, %39, %40 : vector<1x128xi32>
      %42 = arith.andi %37, %41 : vector<1x128xi1>
      %c-1_i32_22 = arith.constant -1 : i32
      %43 = vector.broadcast %c-1_i32_22 : i32 to vector<1x128xi32>
      %44 = arith.addi %21, %43 : vector<1x128xi32>
      %c8_i32_23 = arith.constant 8 : i32
      %45 = vector.broadcast %c8_i32_23 : i32 to vector<1x128xi32>
      %46 = arith.cmpi slt, %44, %45 : vector<1x128xi32>
      %47 = arith.andi %42, %46 : vector<1x128xi1>
      %cst_24 = arith.constant 0.000000e+00 : f32
      %48 = vector.shape_cast %47 : vector<1x128xi1> to vector<1x128xi1>
      %49 = vector.broadcast %48 : vector<1x128xi1> to vector<256x128xi1>
      %50 = vector.broadcast %cst_24 : f32 to vector<256x128xf32>
      %51 = arith.select %49, %28, %50 : vector<256x128xi1>, vector<256x128xf32>
      %c0_25 = arith.constant 0 : index
      %c0_26 = arith.constant 0 : index
      %52 = vector.load %arg8[%c0_25, %c0_26] : memref<2432x128xf32, #tpu.memory_space<vmem>>, vector<256x128xf32>
      tpu.vector_store %arg8[%c0_25, %c0_26], %51 {strides = array<i32>} : memref<2432x128xf32, #tpu.memory_space<vmem>>, vector<256x128xf32>,
      %cst_27 = arith.constant 0.000000e+00 : f32
      %53 = vector.broadcast %cst_27 : f32 to vector<256x8xf32>
      %54 = vector.extract_strided_slice %18 {offsets = [0, 0], sizes = [256, 120], strides = [1, 1]} : vector<256x128xf32> to vector<256x120xf32>
      %55 = tpu.concatenate %53, %54 in 1 : vector<256x8xf32>, vector<256x120xf32> -> vector<256x128xf32>
      %c-1_i32_28 = arith.constant -1 : i32
      %56 = vector.broadcast %c-1_i32_28 : i32 to vector<1x128xi32>
      %57 = arith.addi %25, %56 : vector<1x128xi32>
      %c0_i32_29 = arith.constant 0 : i32
      %58 = vector.broadcast %c0_i32_29 : i32 to vector<1x128xi32>
      %59 = arith.cmpi sge, %57, %58 : vector<1x128xi32>
      %c-1_i32_30 = arith.constant -1 : i32
      %60 = vector.broadcast %c-1_i32_30 : i32 to vector<1x128xi32>
      %61 = arith.addi %25, %60 : vector<1x128xi32>
      %c8_i32_31 = arith.constant 8 : i32
      %62 = vector.broadcast %c8_i32_31 : i32 to vector<1x128xi32>
      %63 = arith.cmpi slt, %61, %62 : vector<1x128xi32>
      %64 = arith.andi %59, %63 : vector<1x128xi1>
      %c0_i32_32 = arith.constant 0 : i32
      %65 = vector.broadcast %c0_i32_32 : i32 to vector<1x128xi32>
      %66 = arith.addi %21, %65 : vector<1x128xi32>
      %c0_i32_33 = arith.constant 0 : i32
      %67 = vector.broadcast %c0_i32_33 : i32 to vector<1x128xi32>
      %68 = arith.cmpi sge, %66, %67 : vector<1x128xi32>
      %69 = arith.andi %64, %68 : vector<1x128xi1>
      %c0_i32_34 = arith.constant 0 : i32
      %70 = vector.broadcast %c0_i32_34 : i32 to vector<1x128xi32>
      %71 = arith.addi %21, %70 : vector<1x128xi32>
      %c8_i32_35 = arith.constant 8 : i32
      %72 = vector.broadcast %c8_i32_35 : i32 to vector<1x128xi32>
      %73 = arith.cmpi slt, %71, %72 : vector<1x128xi32>
      %74 = arith.andi %69, %73 : vector<1x128xi1>
      %cst_36 = arith.constant 0.000000e+00 : f32
      %75 = vector.shape_cast %74 : vector<1x128xi1> to vector<1x128xi1>
      %76 = vector.broadcast %75 : vector<1x128xi1> to vector<256x128xi1>
      %77 = vector.broadcast %cst_36 : f32 to vector<256x128xf32>
      %78 = arith.select %76, %55, %77 : vector<256x128xi1>, vector<256x128xf32>
      %c256 = arith.constant 256 : index
      %c0_37 = arith.constant 0 : index
      %79 = vector.load %arg8[%c256, %c0_37] : memref<2432x128xf32, #tpu.memory_space<vmem>>, vector<256x128xf32>
      tpu.vector_store %arg8[%c256, %c0_37], %78 {strides = array<i32>} : memref<2432x128xf32, #tpu.memory_space<vmem>>, vector<256x128xf32>,
      %cst_38 = arith.constant 0.000000e+00 : f32
      %80 = vector.broadcast %cst_38 : f32 to vector<256x7xf32>
      %81 = vector.extract_strided_slice %18 {offsets = [0, 0], sizes = [256, 121], strides = [1, 1]} : vector<256x128xf32> to vector<256x121xf32>
      %82 = tpu.concatenate %80, %81 in 1 : vector<256x7xf32>, vector<256x121xf32> -> vector<256x128xf32>
      %c-1_i32_39 = arith.constant -1 : i32
      %83 = vector.broadcast %c-1_i32_39 : i32 to vector<1x128xi32>
      %84 = arith.addi %25, %83 : vector<1x128xi32>
      %c0_i32_40 = arith.constant 0 : i32
      %85 = vector.broadcast %c0_i32_40 : i32 to vector<1x128xi32>
      %86 = arith.cmpi sge, %84, %85 : vector<1x128xi32>
      %c-1_i32_41 = arith.constant -1 : i32
      %87 = vector.broadcast %c-1_i32_41 : i32 to vector<1x128xi32>
      %88 = arith.addi %25, %87 : vector<1x128xi32>
      %c8_i32_42 = arith.constant 8 : i32
      %89 = vector.broadcast %c8_i32_42 : i32 to vector<1x128xi32>
      %90 = arith.cmpi slt, %88, %89 : vector<1x128xi32>
      %91 = arith.andi %86, %90 : vector<1x128xi1>
      %c1_i32 = arith.constant 1 : i32
      %92 = vector.broadcast %c1_i32 : i32 to vector<1x128xi32>
      %93 = arith.addi %21, %92 : vector<1x128xi32>
      %c0_i32_43 = arith.constant 0 : i32
      %94 = vector.broadcast %c0_i32_43 : i32 to vector<1x128xi32>
      %95 = arith.cmpi sge, %93, %94 : vector<1x128xi32>
      %96 = arith.andi %91, %95 : vector<1x128xi1>
      %c1_i32_44 = arith.constant 1 : i32
      %97 = vector.broadcast %c1_i32_44 : i32 to vector<1x128xi32>
      %98 = arith.addi %21, %97 : vector<1x128xi32>
      %c8_i32_45 = arith.constant 8 : i32
      %99 = vector.broadcast %c8_i32_45 : i32 to vector<1x128xi32>
      %100 = arith.cmpi slt, %98, %99 : vector<1x128xi32>
      %101 = arith.andi %96, %100 : vector<1x128xi1>
      %cst_46 = arith.constant 0.000000e+00 : f32
      %102 = vector.shape_cast %101 : vector<1x128xi1> to vector<1x128xi1>
      %103 = vector.broadcast %102 : vector<1x128xi1> to vector<256x128xi1>
      %104 = vector.broadcast %cst_46 : f32 to vector<256x128xf32>
      %105 = arith.select %103, %82, %104 : vector<256x128xi1>, vector<256x128xf32>
      %c512 = arith.constant 512 : index
      %c0_47 = arith.constant 0 : index
      %106 = vector.load %arg8[%c512, %c0_47] : memref<2432x128xf32, #tpu.memory_space<vmem>>, vector<256x128xf32>
      tpu.vector_store %arg8[%c512, %c0_47], %105 {strides = array<i32>} : memref<2432x128xf32, #tpu.memory_space<vmem>>, vector<256x128xf32>,
      %cst_48 = arith.constant 0.000000e+00 : f32
      %107 = vector.broadcast %cst_48 : f32 to vector<256x1xf32>
      %108 = vector.extract_strided_slice %18 {offsets = [0, 0], sizes = [256, 127], strides = [1, 1]} : vector<256x128xf32> to vector<256x127xf32>
      %109 = tpu.concatenate %107, %108 in 1 : vector<256x1xf32>, vector<256x127xf32> -> vector<256x128xf32>
      %c0_i32_49 = arith.constant 0 : i32
      %110 = vector.broadcast %c0_i32_49 : i32 to vector<1x128xi32>
      %111 = arith.addi %25, %110 : vector<1x128xi32>
      %c0_i32_50 = arith.constant 0 : i32
      %112 = vector.broadcast %c0_i32_50 : i32 to vector<1x128xi32>
      %113 = arith.cmpi sge, %111, %112 : vector<1x128xi32>
      %c0_i32_51 = arith.constant 0 : i32
      %114 = vector.broadcast %c0_i32_51 : i32 to vector<1x128xi32>
      %115 = arith.addi %25, %114 : vector<1x128xi32>
      %c8_i32_52 = arith.constant 8 : i32
      %116 = vector.broadcast %c8_i32_52 : i32 to vector<1x128xi32>
      %117 = arith.cmpi slt, %115, %116 : vector<1x128xi32>
      %118 = arith.andi %113, %117 : vector<1x128xi1>
      %c-1_i32_53 = arith.constant -1 : i32
      %119 = vector.broadcast %c-1_i32_53 : i32 to vector<1x128xi32>
      %120 = arith.addi %21, %119 : vector<1x128xi32>
      %c0_i32_54 = arith.constant 0 : i32
      %121 = vector.broadcast %c0_i32_54 : i32 to vector<1x128xi32>
      %122 = arith.cmpi sge, %120, %121 : vector<1x128xi32>
      %123 = arith.andi %118, %122 : vector<1x128xi1>
      %c-1_i32_55 = arith.constant -1 : i32
      %124 = vector.broadcast %c-1_i32_55 : i32 to vector<1x128xi32>
      %125 = arith.addi %21, %124 : vector<1x128xi32>
      %c8_i32_56 = arith.constant 8 : i32
      %126 = vector.broadcast %c8_i32_56 : i32 to vector<1x128xi32>
      %127 = arith.cmpi slt, %125, %126 : vector<1x128xi32>
      %128 = arith.andi %123, %127 : vector<1x128xi1>
      %cst_57 = arith.constant 0.000000e+00 : f32
      %129 = vector.shape_cast %128 : vector<1x128xi1> to vector<1x128xi1>
      %130 = vector.broadcast %129 : vector<1x128xi1> to vector<256x128xi1>
      %131 = vector.broadcast %cst_57 : f32 to vector<256x128xf32>
      %132 = arith.select %130, %109, %131 : vector<256x128xi1>, vector<256x128xf32>
      %c768 = arith.constant 768 : index
      %c0_58 = arith.constant 0 : index
      %133 = vector.load %arg8[%c768, %c0_58] : memref<2432x128xf32, #tpu.memory_space<vmem>>, vector<256x128xf32>
      tpu.vector_store %arg8[%c768, %c0_58], %132 {strides = array<i32>} : memref<2432x128xf32, #tpu.memory_space<vmem>>, vector<256x128xf32>,
      %c0_i32_59 = arith.constant 0 : i32
      %134 = vector.broadcast %c0_i32_59 : i32 to vector<1x128xi32>
      %135 = arith.addi %25, %134 : vector<1x128xi32>
      %c0_i32_60 = arith.constant 0 : i32
      %136 = vector.broadcast %c0_i32_60 : i32 to vector<1x128xi32>
      %137 = arith.cmpi sge, %135, %136 : vector<1x128xi32>
      %c0_i32_61 = arith.constant 0 : i32
      %138 = vector.broadcast %c0_i32_61 : i32 to vector<1x128xi32>
      %139 = arith.addi %25, %138 : vector<1x128xi32>
      %c8_i32_62 = arith.constant 8 : i32
      %140 = vector.broadcast %c8_i32_62 : i32 to vector<1x128xi32>
      %141 = arith.cmpi slt, %139, %140 : vector<1x128xi32>
      %142 = arith.andi %137, %141 : vector<1x128xi1>
      %c0_i32_63 = arith.constant 0 : i32
      %143 = vector.broadcast %c0_i32_63 : i32 to vector<1x128xi32>
      %144 = arith.addi %21, %143 : vector<1x128xi32>
      %c0_i32_64 = arith.constant 0 : i32
      %145 = vector.broadcast %c0_i32_64 : i32 to vector<1x128xi32>
      %146 = arith.cmpi sge, %144, %145 : vector<1x128xi32>
      %147 = arith.andi %142, %146 : vector<1x128xi1>
      %c0_i32_65 = arith.constant 0 : i32
      %148 = vector.broadcast %c0_i32_65 : i32 to vector<1x128xi32>
      %149 = arith.addi %21, %148 : vector<1x128xi32>
      %c8_i32_66 = arith.constant 8 : i32
      %150 = vector.broadcast %c8_i32_66 : i32 to vector<1x128xi32>
      %151 = arith.cmpi slt, %149, %150 : vector<1x128xi32>
      %152 = arith.andi %147, %151 : vector<1x128xi1>
      %cst_67 = arith.constant 0.000000e+00 : f32
      %153 = vector.shape_cast %152 : vector<1x128xi1> to vector<1x128xi1>
      %154 = vector.broadcast %153 : vector<1x128xi1> to vector<256x128xi1>
      %155 = vector.broadcast %cst_67 : f32 to vector<256x128xf32>
      %156 = arith.select %154, %18, %155 : vector<256x128xi1>, vector<256x128xf32>
      %c1024 = arith.constant 1024 : index
      %c0_68 = arith.constant 0 : index
      %157 = vector.load %arg8[%c1024, %c0_68] : memref<2432x128xf32, #tpu.memory_space<vmem>>, vector<256x128xf32>
      tpu.vector_store %arg8[%c1024, %c0_68], %156 {strides = array<i32>} : memref<2432x128xf32, #tpu.memory_space<vmem>>, vector<256x128xf32>,
      %158 = vector.extract_strided_slice %18 {offsets = [0, 1], sizes = [256, 127], strides = [1, 1]} : vector<256x128xf32> to vector<256x127xf32>
      %cst_69 = arith.constant 0.000000e+00 : f32
      %159 = vector.broadcast %cst_69 : f32 to vector<256x1xf32>
      %160 = tpu.concatenate %158, %159 in 1 : vector<256x127xf32>, vector<256x1xf32> -> vector<256x128xf32>
      %c0_i32_70 = arith.constant 0 : i32
      %161 = vector.broadcast %c0_i32_70 : i32 to vector<1x128xi32>
      %162 = arith.addi %25, %161 : vector<1x128xi32>
      %c0_i32_71 = arith.constant 0 : i32
      %163 = vector.broadcast %c0_i32_71 : i32 to vector<1x128xi32>
      %164 = arith.cmpi sge, %162, %163 : vector<1x128xi32>
      %c0_i32_72 = arith.constant 0 : i32
      %165 = vector.broadcast %c0_i32_72 : i32 to vector<1x128xi32>
      %166 = arith.addi %25, %165 : vector<1x128xi32>
      %c8_i32_73 = arith.constant 8 : i32
      %167 = vector.broadcast %c8_i32_73 : i32 to vector<1x128xi32>
      %168 = arith.cmpi slt, %166, %167 : vector<1x128xi32>
      %169 = arith.andi %164, %168 : vector<1x128xi1>
      %c1_i32_74 = arith.constant 1 : i32
      %170 = vector.broadcast %c1_i32_74 : i32 to vector<1x128xi32>
      %171 = arith.addi %21, %170 : vector<1x128xi32>
      %c0_i32_75 = arith.constant 0 : i32
      %172 = vector.broadcast %c0_i32_75 : i32 to vector<1x128xi32>
      %173 = arith.cmpi sge, %171, %172 : vector<1x128xi32>
      %174 = arith.andi %169, %173 : vector<1x128xi1>
      %c1_i32_76 = arith.constant 1 : i32
      %175 = vector.broadcast %c1_i32_76 : i32 to vector<1x128xi32>
      %176 = arith.addi %21, %175 : vector<1x128xi32>
      %c8_i32_77 = arith.constant 8 : i32
      %177 = vector.broadcast %c8_i32_77 : i32 to vector<1x128xi32>
      %178 = arith.cmpi slt, %176, %177 : vector<1x128xi32>
      %179 = arith.andi %174, %178 : vector<1x128xi1>
      %cst_78 = arith.constant 0.000000e+00 : f32
      %180 = vector.shape_cast %179 : vector<1x128xi1> to vector<1x128xi1>
      %181 = vector.broadcast %180 : vector<1x128xi1> to vector<256x128xi1>
      %182 = vector.broadcast %cst_78 : f32 to vector<256x128xf32>
      %183 = arith.select %181, %160, %182 : vector<256x128xi1>, vector<256x128xf32>
      %c1280 = arith.constant 1280 : index
      %c0_79 = arith.constant 0 : index
      %184 = vector.load %arg8[%c1280, %c0_79] : memref<2432x128xf32, #tpu.memory_space<vmem>>, vector<256x128xf32>
      tpu.vector_store %arg8[%c1280, %c0_79], %183 {strides = array<i32>} : memref<2432x128xf32, #tpu.memory_space<vmem>>, vector<256x128xf32>,
      %185 = vector.extract_strided_slice %18 {offsets = [0, 7], sizes = [256, 121], strides = [1, 1]} : vector<256x128xf32> to vector<256x121xf32>
      %cst_80 = arith.constant 0.000000e+00 : f32
      %186 = vector.broadcast %cst_80 : f32 to vector<256x7xf32>
      %187 = tpu.concatenate %185, %186 in 1 : vector<256x121xf32>, vector<256x7xf32> -> vector<256x128xf32>
      %c1_i32_81 = arith.constant 1 : i32
      %188 = vector.broadcast %c1_i32_81 : i32 to vector<1x128xi32>
      %189 = arith.addi %25, %188 : vector<1x128xi32>
      %c0_i32_82 = arith.constant 0 : i32
      %190 = vector.broadcast %c0_i32_82 : i32 to vector<1x128xi32>
      %191 = arith.cmpi sge, %189, %190 : vector<1x128xi32>
      %c1_i32_83 = arith.constant 1 : i32
      %192 = vector.broadcast %c1_i32_83 : i32 to vector<1x128xi32>
      %193 = arith.addi %25, %192 : vector<1x128xi32>
      %c8_i32_84 = arith.constant 8 : i32
      %194 = vector.broadcast %c8_i32_84 : i32 to vector<1x128xi32>
      %195 = arith.cmpi slt, %193, %194 : vector<1x128xi32>
      %196 = arith.andi %191, %195 : vector<1x128xi1>
      %c-1_i32_85 = arith.constant -1 : i32
      %197 = vector.broadcast %c-1_i32_85 : i32 to vector<1x128xi32>
      %198 = arith.addi %21, %197 : vector<1x128xi32>
      %c0_i32_86 = arith.constant 0 : i32
      %199 = vector.broadcast %c0_i32_86 : i32 to vector<1x128xi32>
      %200 = arith.cmpi sge, %198, %199 : vector<1x128xi32>
      %201 = arith.andi %196, %200 : vector<1x128xi1>
      %c-1_i32_87 = arith.constant -1 : i32
      %202 = vector.broadcast %c-1_i32_87 : i32 to vector<1x128xi32>
      %203 = arith.addi %21, %202 : vector<1x128xi32>
      %c8_i32_88 = arith.constant 8 : i32
      %204 = vector.broadcast %c8_i32_88 : i32 to vector<1x128xi32>
      %205 = arith.cmpi slt, %203, %204 : vector<1x128xi32>
      %206 = arith.andi %201, %205 : vector<1x128xi1>
      %cst_89 = arith.constant 0.000000e+00 : f32
      %207 = vector.shape_cast %206 : vector<1x128xi1> to vector<1x128xi1>
      %208 = vector.broadcast %207 : vector<1x128xi1> to vector<256x128xi1>
      %209 = vector.broadcast %cst_89 : f32 to vector<256x128xf32>
      %210 = arith.select %208, %187, %209 : vector<256x128xi1>, vector<256x128xf32>
      %c1536 = arith.constant 1536 : index
      %c0_90 = arith.constant 0 : index
      %211 = vector.load %arg8[%c1536, %c0_90] : memref<2432x128xf32, #tpu.memory_space<vmem>>, vector<256x128xf32>
      tpu.vector_store %arg8[%c1536, %c0_90], %210 {strides = array<i32>} : memref<2432x128xf32, #tpu.memory_space<vmem>>, vector<256x128xf32>,
      %212 = vector.extract_strided_slice %18 {offsets = [0, 8], sizes = [256, 120], strides = [1, 1]} : vector<256x128xf32> to vector<256x120xf32>
      %cst_91 = arith.constant 0.000000e+00 : f32
      %213 = vector.broadcast %cst_91 : f32 to vector<256x8xf32>
      %214 = tpu.concatenate %212, %213 in 1 : vector<256x120xf32>, vector<256x8xf32> -> vector<256x128xf32>
      %c1_i32_92 = arith.constant 1 : i32
      %215 = vector.broadcast %c1_i32_92 : i32 to vector<1x128xi32>
      %216 = arith.addi %25, %215 : vector<1x128xi32>
      %c0_i32_93 = arith.constant 0 : i32
      %217 = vector.broadcast %c0_i32_93 : i32 to vector<1x128xi32>
      %218 = arith.cmpi sge, %216, %217 : vector<1x128xi32>
      %c1_i32_94 = arith.constant 1 : i32
      %219 = vector.broadcast %c1_i32_94 : i32 to vector<1x128xi32>
      %220 = arith.addi %25, %219 : vector<1x128xi32>
      %c8_i32_95 = arith.constant 8 : i32
      %221 = vector.broadcast %c8_i32_95 : i32 to vector<1x128xi32>
      %222 = arith.cmpi slt, %220, %221 : vector<1x128xi32>
      %223 = arith.andi %218, %222 : vector<1x128xi1>
      %c0_i32_96 = arith.constant 0 : i32
      %224 = vector.broadcast %c0_i32_96 : i32 to vector<1x128xi32>
      %225 = arith.addi %21, %224 : vector<1x128xi32>
      %c0_i32_97 = arith.constant 0 : i32
      %226 = vector.broadcast %c0_i32_97 : i32 to vector<1x128xi32>
      %227 = arith.cmpi sge, %225, %226 : vector<1x128xi32>
      %228 = arith.andi %223, %227 : vector<1x128xi1>
      %c0_i32_98 = arith.constant 0 : i32
      %229 = vector.broadcast %c0_i32_98 : i32 to vector<1x128xi32>
      %230 = arith.addi %21, %229 : vector<1x128xi32>
      %c8_i32_99 = arith.constant 8 : i32
      %231 = vector.broadcast %c8_i32_99 : i32 to vector<1x128xi32>
      %232 = arith.cmpi slt, %230, %231 : vector<1x128xi32>
      %233 = arith.andi %228, %232 : vector<1x128xi1>
      %cst_100 = arith.constant 0.000000e+00 : f32
      %234 = vector.shape_cast %233 : vector<1x128xi1> to vector<1x128xi1>
      %235 = vector.broadcast %234 : vector<1x128xi1> to vector<256x128xi1>
      %236 = vector.broadcast %cst_100 : f32 to vector<256x128xf32>
      %237 = arith.select %235, %214, %236 : vector<256x128xi1>, vector<256x128xf32>
      %c1792 = arith.constant 1792 : index
      %c0_101 = arith.constant 0 : index
      %238 = vector.load %arg8[%c1792, %c0_101] : memref<2432x128xf32, #tpu.memory_space<vmem>>, vector<256x128xf32>
      tpu.vector_store %arg8[%c1792, %c0_101], %237 {strides = array<i32>} : memref<2432x128xf32, #tpu.memory_space<vmem>>, vector<256x128xf32>,
      %239 = vector.extract_strided_slice %18 {offsets = [0, 9], sizes = [256, 119], strides = [1, 1]} : vector<256x128xf32> to vector<256x119xf32>
      %cst_102 = arith.constant 0.000000e+00 : f32
      %240 = vector.broadcast %cst_102 : f32 to vector<256x9xf32>
      %241 = tpu.concatenate %239, %240 in 1 : vector<256x119xf32>, vector<256x9xf32> -> vector<256x128xf32>
      %c1_i32_103 = arith.constant 1 : i32
      %242 = vector.broadcast %c1_i32_103 : i32 to vector<1x128xi32>
      %243 = arith.addi %25, %242 : vector<1x128xi32>
      %c0_i32_104 = arith.constant 0 : i32
      %244 = vector.broadcast %c0_i32_104 : i32 to vector<1x128xi32>
      %245 = arith.cmpi sge, %243, %244 : vector<1x128xi32>
      %c1_i32_105 = arith.constant 1 : i32
      %246 = vector.broadcast %c1_i32_105 : i32 to vector<1x128xi32>
      %247 = arith.addi %25, %246 : vector<1x128xi32>
      %c8_i32_106 = arith.constant 8 : i32
      %248 = vector.broadcast %c8_i32_106 : i32 to vector<1x128xi32>
      %249 = arith.cmpi slt, %247, %248 : vector<1x128xi32>
      %250 = arith.andi %245, %249 : vector<1x128xi1>
      %c1_i32_107 = arith.constant 1 : i32
      %251 = vector.broadcast %c1_i32_107 : i32 to vector<1x128xi32>
      %252 = arith.addi %21, %251 : vector<1x128xi32>
      %c0_i32_108 = arith.constant 0 : i32
      %253 = vector.broadcast %c0_i32_108 : i32 to vector<1x128xi32>
      %254 = arith.cmpi sge, %252, %253 : vector<1x128xi32>
      %255 = arith.andi %250, %254 : vector<1x128xi1>
      %c1_i32_109 = arith.constant 1 : i32
      %256 = vector.broadcast %c1_i32_109 : i32 to vector<1x128xi32>
      %257 = arith.addi %21, %256 : vector<1x128xi32>
      %c8_i32_110 = arith.constant 8 : i32
      %258 = vector.broadcast %c8_i32_110 : i32 to vector<1x128xi32>
      %259 = arith.cmpi slt, %257, %258 : vector<1x128xi32>
      %260 = arith.andi %255, %259 : vector<1x128xi1>
      %cst_111 = arith.constant 0.000000e+00 : f32
      %261 = vector.shape_cast %260 : vector<1x128xi1> to vector<1x128xi1>
      %262 = vector.broadcast %261 : vector<1x128xi1> to vector<256x128xi1>
      %263 = vector.broadcast %cst_111 : f32 to vector<256x128xf32>
      %264 = arith.select %262, %241, %263 : vector<256x128xi1>, vector<256x128xf32>
      %c2048 = arith.constant 2048 : index
      %c0_112 = arith.constant 0 : index
      %265 = vector.load %arg8[%c2048, %c0_112] : memref<2432x128xf32, #tpu.memory_space<vmem>>, vector<256x128xf32>
      tpu.vector_store %arg8[%c2048, %c0_112], %264 {strides = array<i32>} : memref<2432x128xf32, #tpu.memory_space<vmem>>, vector<256x128xf32>,
      %266 = tpu.iota {dimensions = array<i32: 0>} : vector<128x128xi32>
      %c0_i32_113 = arith.constant 0 : i32
      %267 = vector.broadcast %c0_i32_113 : i32 to vector<128x128xi32>
      %268 = arith.cmpi eq, %266, %267 : vector<128x128xi32>
      %cst_114 = arith.constant 1.000000e+00 : f32
      %cst_115 = arith.constant 0.000000e+00 : f32
      %269 = vector.broadcast %cst_114 : f32 to vector<128x128xf32>
      %270 = vector.broadcast %cst_115 : f32 to vector<128x128xf32>
      %271 = arith.select %268, %269, %270 : vector<128x128xi1>, vector<128x128xf32>
      %c2304 = arith.constant 2304 : index
      %c0_116 = arith.constant 0 : index
      %272 = vector.load %arg8[%c2304, %c0_116] : memref<2432x128xf32, #tpu.memory_space<vmem>>, vector<128x128xf32>
      tpu.vector_store %arg8[%c2304, %c0_116], %271 {strides = array<i32>} : memref<2432x128xf32, #tpu.memory_space<vmem>>, vector<128x128xf32>,
      %c0_117 = arith.constant 0 : index
      %c0_118 = arith.constant 0 : index
      %273 = vector.load %arg4[%c0_117, %c0_118] : memref<48x1xf32, #tpu.memory_space<vmem>>, vector<48x1xf32>
      %274 = vector.shape_cast %273 : vector<48x1xf32> to vector<48x1xf32>
      %275 = vector.broadcast %274 : vector<48x1xf32> to vector<48x128xf32>
      %c0_119 = arith.constant 0 : index
      %c0_120 = arith.constant 0 : index
      %276 = vector.load %arg9[%c0_119, %c0_120] : memref<48x128xf32, #tpu.memory_space<vmem>>, vector<48x128xf32>
      tpu.vector_store %arg9[%c0_119, %c0_120], %275 {strides = array<i32>} : memref<48x128xf32, #tpu.memory_space<vmem>>, vector<48x128xf32>,
    } else {
    }
    %c0 = arith.constant 0 : index
    %c0_1 = arith.constant 0 : index
    %3 = vector.load %arg2[%c0, %c0_1] : memref<128x2432xbf16, #tpu.memory_space<vmem>>, vector<128x2432xbf16>
    %4 = arith.extf %3 : vector<128x2432xbf16> to vector<128x2432xf32>
    %c0_2 = arith.constant 0 : index
    %c0_3 = arith.constant 0 : index
    %5 = vector.load %arg8[%c0_2, %c0_3] : memref<2432x128xf32, #tpu.memory_space<vmem>>, vector<2432x128xf32>
    %cst = arith.constant dense<0.000000e+00> : vector<128x128xf32>
    %6 = tpu.matmul %4, %5, %cst {dimension_numbers = #tpu.dot_dimension_numbers<[1], [0], [0], [1], [0, 0, 1, 1], [], []>} : vector<128x2432xf32>, vector<2432x128xf32>, vector<128x128xf32> -> vector<128x128xf32>
    %cst_4 = arith.constant 0.000000e+00 : f32
    %7 = vector.broadcast %cst_4 : f32 to vector<128x128xf32>
    %8 = arith.maximumf %6, %7 : vector<128x128xf32>
    %c0_5 = arith.constant 0 : index
    %c0_6 = arith.constant 0 : index
    %9 = vector.load %arg9[%c0_5, %c0_6] : memref<48x128xf32, #tpu.memory_space<vmem>>, vector<48x128xf32>
    %c0_7 = arith.constant 0 : index
    %c0_8 = arith.constant 0 : index
    %10 = vector.load %arg3[%c0_7, %c0_8] : memref<48x128xbf16, #tpu.memory_space<vmem>>, vector<48x128xbf16>
    %11 = arith.extf %10 : vector<48x128xbf16> to vector<48x128xf32>
    %cst_9 = arith.constant dense<0.000000e+00> : vector<48x128xf32>
    %12 = tpu.matmul %11, %8, %cst_9 {dimension_numbers = #tpu.dot_dimension_numbers<[1], [0], [0], [1], [0, 0, 1, 1], [], []>} : vector<48x128xf32>, vector<128x128xf32>, vector<48x128xf32> -> vector<48x128xf32>
    %13 = arith.addf %9, %12 : vector<48x128xf32>
    %c0_10 = arith.constant 0 : index
    %c0_11 = arith.constant 0 : index
    %14 = vector.load %arg9[%c0_10, %c0_11] : memref<48x128xf32, #tpu.memory_space<vmem>>, vector<48x128xf32>
    tpu.vector_store %arg9[%c0_10, %c0_11], %13 {strides = array<i32>} : memref<48x128xf32, #tpu.memory_space<vmem>>, vector<48x128xf32>,
    %c3_i32 = arith.constant 3 : i32
    %15 = arith.cmpi eq, %arg0, %c3_i32 : i32
    %16 = arith.extui %15 : i1 to i32
    %c0_i32_12 = arith.constant 0 : i32
    %17 = arith.cmpi ne, %16, %c0_i32_12 : i32
    scf.if %17 {
      %c0_13 = arith.constant 0 : index
      %c0_14 = arith.constant 0 : index
      %18 = vector.load %arg9[%c0_13, %c0_14] : memref<48x128xf32, #tpu.memory_space<vmem>>, vector<48x128xf32>
      %c0_15 = arith.constant 0 : index
      %c0_16 = arith.constant 0 : index
      %19 = vector.load %arg6[%c0_15, %c0_16] : memref<48x128xf32, #tpu.memory_space<vmem>>, vector<48x128xf32>
      tpu.vector_store %arg6[%c0_15, %c0_16], %18 {strides = array<i32>} : memref<48x128xf32, #tpu.memory_space<vmem>>, vector<48x128xf32>,
      %20 = vector.extract_strided_slice %18 {offsets = [0, 0], sizes = [8, 128], strides = [1, 1]} : vector<48x128xf32> to vector<8x128xf32>
      %21 = vector.extract_strided_slice %18 {offsets = [8, 0], sizes = [8, 128], strides = [1, 1]} : vector<48x128xf32> to vector<8x128xf32>
      %22 = vector.extract_strided_slice %18 {offsets = [16, 0], sizes = [8, 128], strides = [1, 1]} : vector<48x128xf32> to vector<8x128xf32>
      %cst_17 = arith.constant 1.000000e-01 : f32
      %23 = vector.broadcast %cst_17 : f32 to vector<8x128xf32>
      %24 = arith.mulf %22, %23 : vector<8x128xf32>
      %25 = vector.extract_strided_slice %18 {offsets = [24, 0], sizes = [8, 128], strides = [1, 1]} : vector<48x128xf32> to vector<8x128xf32>
      %cst_18 = arith.constant 1.000000e-01 : f32
      %26 = vector.broadcast %cst_18 : f32 to vector<8x128xf32>
      %27 = arith.mulf %25, %26 : vector<8x128xf32>
      %28 = vector.extract_strided_slice %18 {offsets = [32, 0], sizes = [8, 128], strides = [1, 1]} : vector<48x128xf32> to vector<8x128xf32>
      %cst_19 = arith.constant 2.000000e-01 : f32
      %29 = vector.broadcast %cst_19 : f32 to vector<8x128xf32>
      %30 = arith.mulf %28, %29 : vector<8x128xf32>
      %31 = vector.extract_strided_slice %18 {offsets = [40, 0], sizes = [8, 128], strides = [1, 1]} : vector<48x128xf32> to vector<8x128xf32>
      %cst_20 = arith.constant 2.000000e-01 : f32
      %32 = vector.broadcast %cst_20 : f32 to vector<8x128xf32>
      %33 = arith.mulf %31, %32 : vector<8x128xf32>
      %c0_21 = arith.constant 0 : index
      %c0_22 = arith.constant 0 : index
      %34 = vector.load %arg5[%c0_21, %c0_22] : memref<32x128xf32, #tpu.memory_space<vmem>>, vector<8x128xf32>
      %c8 = arith.constant 8 : index
      %c0_23 = arith.constant 0 : index
      %35 = vector.load %arg5[%c8, %c0_23] : memref<32x128xf32, #tpu.memory_space<vmem>>, vector<8x128xf32>
      %c16 = arith.constant 16 : index
      %c0_24 = arith.constant 0 : index
      %36 = vector.load %arg5[%c16, %c0_24] : memref<32x128xf32, #tpu.memory_space<vmem>>, vector<8x128xf32>
      %c24 = arith.constant 24 : index
      %c0_25 = arith.constant 0 : index
      %37 = vector.load %arg5[%c24, %c0_25] : memref<32x128xf32, #tpu.memory_space<vmem>>, vector<8x128xf32>
      %38 = arith.mulf %24, %34 : vector<8x128xf32>
      %39 = arith.addf %38, %36 : vector<8x128xf32>
      %40 = arith.mulf %27, %35 : vector<8x128xf32>
      %41 = arith.addf %40, %37 : vector<8x128xf32>
      %42 = math.exp %30 : vector<8x128xf32>
      %43 = arith.mulf %42, %34 : vector<8x128xf32>
      %44 = math.exp %33 : vector<8x128xf32>
      %45 = arith.mulf %44, %35 : vector<8x128xf32>
      %cst_26 = arith.constant 5.000000e-01 : f32
      %46 = vector.broadcast %cst_26 : f32 to vector<8x128xf32>
      %47 = arith.mulf %46, %43 : vector<8x128xf32>
      %48 = arith.subf %39, %47 : vector<8x128xf32>
      %cst_27 = arith.constant 0.000000e+00 : f32
      %49 = vector.broadcast %cst_27 : f32 to vector<8x128xf32>
      %50 = arith.maximumf %49, %48 : vector<8x128xf32>
      %cst_28 = arith.constant 1.280000e+02 : f32
      %51 = vector.broadcast %cst_28 : f32 to vector<8x128xf32>
      %52 = arith.minimumf %51, %50 : vector<8x128xf32>
      %cst_29 = arith.constant 5.000000e-01 : f32
      %53 = vector.broadcast %cst_29 : f32 to vector<8x128xf32>
      %54 = arith.mulf %53, %45 : vector<8x128xf32>
      %55 = arith.subf %41, %54 : vector<8x128xf32>
      %cst_30 = arith.constant 0.000000e+00 : f32
      %56 = vector.broadcast %cst_30 : f32 to vector<8x128xf32>
      %57 = arith.maximumf %56, %55 : vector<8x128xf32>
      %cst_31 = arith.constant 1.280000e+02 : f32
      %58 = vector.broadcast %cst_31 : f32 to vector<8x128xf32>
      %59 = arith.minimumf %58, %57 : vector<8x128xf32>
      %cst_32 = arith.constant 5.000000e-01 : f32
      %60 = vector.broadcast %cst_32 : f32 to vector<8x128xf32>
      %61 = arith.mulf %60, %43 : vector<8x128xf32>
      %62 = arith.addf %39, %61 : vector<8x128xf32>
      %cst_33 = arith.constant 1.280000e+02 : f32
      %63 = vector.broadcast %cst_33 : f32 to vector<8x128xf32>
      %64 = arith.minimumf %63, %62 : vector<8x128xf32>
      %cst_34 = arith.constant 0.000000e+00 : f32
      %65 = vector.broadcast %cst_34 : f32 to vector<8x128xf32>
      %66 = arith.maximumf %65, %64 : vector<8x128xf32>
      %cst_35 = arith.constant 5.000000e-01 : f32
      %67 = vector.broadcast %cst_35 : f32 to vector<8x128xf32>
      %68 = arith.mulf %67, %45 : vector<8x128xf32>
      %69 = arith.addf %41, %68 : vector<8x128xf32>
      %cst_36 = arith.constant 1.280000e+02 : f32
      %70 = vector.broadcast %cst_36 : f32 to vector<8x128xf32>
      %71 = arith.minimumf %70, %69 : vector<8x128xf32>
      %cst_37 = arith.constant 0.000000e+00 : f32
      %72 = vector.broadcast %cst_37 : f32 to vector<8x128xf32>
      %73 = arith.maximumf %72, %71 : vector<8x128xf32>
      %74 = arith.subf %21, %20 : vector<8x128xf32>
      %cst_38 = arith.constant 0.000000e+00 : f32
      %75 = vector.broadcast %cst_38 : f32 to vector<8x128xf32>
      %76 = arith.minimumf %74, %75 : vector<8x128xf32>
      %77 = math.exp %76 : vector<8x128xf32>
      %78 = arith.subf %76, %74 : vector<8x128xf32>
      %79 = math.exp %78 : vector<8x128xf32>
      %80 = arith.addf %77, %79 : vector<8x128xf32>
      %81 = arith.divf %77, %80 : vector<8x128xf32>
      %82 = tpu.concatenate %52, %59, %66, %73, %81 in 0 : vector<8x128xf32>, vector<8x128xf32>, vector<8x128xf32>, vector<8x128xf32>, vector<8x128xf32> -> vector<40x128xf32>
      %c0_39 = arith.constant 0 : index
      %c0_40 = arith.constant 0 : index
      %83 = vector.load %arg7[%c0_39, %c0_40] : memref<40x128xf32, #tpu.memory_space<vmem>>, vector<40x128xf32>
      tpu.vector_store %arg7[%c0_39, %c0_40], %82 {strides = array<i32>} : memref<40x128xf32, #tpu.memory_space<vmem>>, vector<40x128xf32>,
    } else {
    }
    return
  }
  func.func @transform_0(%arg0: i32) -> (i32, i32) {
    %c0_i32 = arith.constant 0 : i32
    %c0_i32_0 = arith.constant 0 : i32
    %c0_i32_1 = arith.constant 0 : i32
    return %c0_i32, %c0_i32_0 : i32, i32
  }
  func.func @transform_1(%arg0: i32) -> (i32, i32) {
    %c0_i32 = arith.constant 0 : i32
    %c0_i32_0 = arith.constant 0 : i32
    return %arg0, %c0_i32 : i32, i32
  }
  func.func @transform_2(%arg0: i32) -> (i32, i32) {
    %c0_i32 = arith.constant 0 : i32
    %c0_i32_0 = arith.constant 0 : i32
    return %c0_i32, %arg0 : i32, i32
  }
  func.func @transform_3(%arg0: i32) -> (i32, i32) {
    %c0_i32 = arith.constant 0 : i32
    %c0_i32_0 = arith.constant 0 : i32
    %c0_i32_1 = arith.constant 0 : i32
    return %c0_i32, %c0_i32_0 : i32, i32
  }
  func.func @transform_4(%arg0: i32) -> (i32, i32) {
    %c0_i32 = arith.constant 0 : i32
    %c0_i32_0 = arith.constant 0 : i32
    %c0_i32_1 = arith.constant 0 : i32
    return %c0_i32, %c0_i32_0 : i32, i32
  }
  func.func @transform_5(%arg0: i32) -> (i32, i32) {
    %c0_i32 = arith.constant 0 : i32
    %c0_i32_0 = arith.constant 0 : i32
    %c0_i32_1 = arith.constant 0 : i32
    return %c0_i32, %c0_i32_0 : i32, i32
  }
  func.func @transform_6(%arg0: i32) -> (i32, i32) {
    %c0_i32 = arith.constant 0 : i32
    %c0_i32_0 = arith.constant 0 : i32
    %c0_i32_1 = arith.constant 0 : i32
    return %c0_i32, %c0_i32_0 : i32, i32
  }
}

</mosaic_0001>

<llo_original>
// kernel: faster_rcnn_forward.1
$region0: #{faster_rcnn_forward.1}
  #allocation0 [shape = 'u32[]', space=smem, size = 0x4, offset = 0x4, fixed_abs, tag = 'smem constant byte address 0x4 - core index']
  #allocation1 [shape = 'u32[144,128]{1,0:T(1,128)}', space=vmem, size = 0x12000, scoped, tag = 'internal scratch']
  #allocation2 [shape = 'f32[2432,128]{1,0:T(8,128)}', space=vmem, size = 0x130000, scoped, tag = 'scratch operand']
  #allocation3 [shape = 'f32[48,128]{1,0:T(8,128)}', space=vmem, size = 0x6000, scoped, tag = 'scratch operand']
  %s0 = inlined_call_operand.vmem [shape: f32[256,128], index: 0, kind: input, shape index: {}]
  %s1 = inlined_call_operand.vmem [shape: bf16[512,2432], index: 1, kind: input, shape index: {}]
  %s2 = inlined_call_operand.vmem [shape: bf16[48,512], index: 2, kind: input, shape index: {}]
  %s3 = inlined_call_operand.vmem [shape: f32[48,1], index: 3, kind: input, shape index: {}]
  %s4 = inlined_call_operand.vmem [shape: f32[32,128], index: 4, kind: input, shape index: {}]
  %s5 = inlined_call_operand.vmem [shape: f32[48,128], index: 5, kind: output, shape index: {0}]
  %s6 = inlined_call_operand.vmem [shape: f32[40,128], index: 6, kind: output, shape index: {1}]
  %7 = xla_tuple %s5, %s6
  %s8 = sld [smem:[#allocation0]]
  $region110: #{faster_rcnn_forward.1} parent=0
    _
  %s10 = ssub.s32 1, %s8
  %s11 = scalar_select 0, %s10, %s8
  $region1: #{faster_rcnn_forward.1} parent=0
    #allocation4 [shape = 'u8[24576]{0}', space=vmem, size = 0x6000, scoped, tag = 'input window, operand 2']
    loop: start=0, step=1, limit=6
    $region2: #{faster_rcnn_forward.1} parent=1 // loop_pre_header
      _
    $region3: #{faster_rcnn_forward.1} parent=1 // loop_header
      %s13 = sphi 0, %s17
      %p14 = scmp.ge.s32.totalorder %s13, 6
      %s21 = sphi 0, %s21
      %s23 = sphi 0, %s21
      %s24 = sphi 0, %s23
      %s38 = sphi 0, %s24
      %s44 = sphi 0, %s46
      %s47 = sphi 0, %s44
      %s48 = sphi 0, %s47
      %s64 = sphi 0, %s48
      %s70 = sphi 0, %s72
      %s73 = sphi 0, %s70
      %s74 = sphi 0, %s73
      %s90 = sphi 0, %s74
      %s94 = sphi 0, %s94
      %s96 = sphi 0, %s94
      %s97 = sphi 0, %s96
      %s111 = sphi 0, %s97
      %s115 = sphi 0, %s115
      %s117 = sphi 0, %s115
      %s118 = sphi 0, %s117
      %s132 = sphi 0, %s118
      %s136 = sphi 0, %s136
      %s138 = sphi 0, %s136
      %s139 = sphi 0, %s138
      %s153 = sphi 0, %s139
      %s157 = sphi 0, %s157
      %s159 = sphi 0, %s157
      %s160 = sphi 0, %s159
      %s174 = sphi 0, %s160
    $region4: #{faster_rcnn_forward.1} parent=1 // loop_header_branch
      %16 = sbr.rel (%p14) target = $region8
    $region5: #{faster_rcnn_forward.1} parent=1 // loop_body
      %s18 = ssub.s32 %s13, 1
      %s19 = ssub.s32 %s13, 2
      %s20 = sadd.s32 %s13, 1
      %s22 = sadd.s32 %s21, 1
      %p25 = scmp.eq.s32.totalorder %s13, 3
      %p26 = scmp.ne.s32.totalorder %s21, %s23
      %p27 = scmp.eq.s32.totalorder %s13, 0
      %p28 = por %p26, %p27
      %p29 = scmp.ne.s32.totalorder %s21, %s23
      %p30 = scmp.eq.s32.totalorder %s18, 3
      %p31 = por %p29, %p30
      %p32 = scmp.ne.s32.totalorder %s23, %s24
      %p33 = scmp.eq.s32.totalorder %s18, 0
      %p34 = por %p32, %p33
      %p35 = scmp.ne.s32.totalorder %s23, %s24
      %p36 = scmp.eq.s32.totalorder %s19, 3
      %p37 = por %p35, %p36
      %p39 = scmp.ne.s32.totalorder %s24, %s38
      %p40 = scmp.eq.s32.totalorder %s19, 0
      %p41 = por %p39, %p40
      %s42 = ssub.s32 %s13, %s20
      %p43 = scmp.eq.s32.totalorder %s42, 0
      %s45 = sadd.s32 %s44, 1
      %s46 = scalar_select %p43, %s44, %s45
      %p49 = pneg %p43
      %p50 = scmp.eq.s32.totalorder %s13, 3
      %p51 = por %p49, %p50
      %p52 = scmp.ne.s32.totalorder %s44, %s47
      %p53 = scmp.eq.s32.totalorder %s13, 0
      %p54 = por %p52, %p53
      %p55 = scmp.ne.s32.totalorder %s44, %s47
      %p56 = scmp.eq.s32.totalorder %s18, 3
      %p57 = por %p55, %p56
      %p58 = scmp.ne.s32.totalorder %s47, %s48
      %p59 = scmp.eq.s32.totalorder %s18, 0
      %p60 = por %p58, %p59
      %p61 = scmp.ne.s32.totalorder %s47, %s48
      %p62 = scmp.eq.s32.totalorder %s19, 3
      %p63 = por %p61, %p62
      %p65 = scmp.ne.s32.totalorder %s48, %s64
      %p66 = scmp.eq.s32.totalorder %s19, 0
      %p67 = por %p65, %p66
      %s68 = ssub.s32 %s13, %s20
      %p69 = scmp.eq.s32.totalorder %s68, 0
      %s71 = sadd.s32 %s70, 1
      %s72 = scalar_select %p69, %s70, %s71
      %p75 = pneg %p69
      %p76 = scmp.eq.s32.totalorder %s13, 3
      %p77 = por %p75, %p76
      %p78 = scmp.ne.s32.totalorder %s70, %s73
      %p79 = scmp.eq.s32.totalorder %s13, 0
      %p80 = por %p78, %p79
      %p81 = scmp.ne.s32.totalorder %s70, %s73
      %p82 = scmp.eq.s32.totalorder %s18, 3
      %p83 = por %p81, %p82
      %p84 = scmp.ne.s32.totalorder %s73, %s74
      %p85 = scmp.eq.s32.totalorder %s18, 0
      %p86 = por %p84, %p85
      %p87 = scmp.ne.s32.totalorder %s73, %s74
      %p88 = scmp.eq.s32.totalorder %s19, 3
      %p89 = por %p87, %p88
      %p91 = scmp.ne.s32.totalorder %s74, %s90
      %p92 = scmp.eq.s32.totalorder %s19, 0
      %p93 = por %p91, %p92
      %s95 = sadd.s32 %s94, 1
      %p98 = scmp.eq.s32.totalorder %s13, 3
      %p99 = scmp.ne.s32.totalorder %s94, %s96
      %p100 = scmp.eq.s32.totalorder %s13, 0
      %p101 = por %p99, %p100
      %p102 = scmp.ne.s32.totalorder %s94, %s96
      %p103 = scmp.eq.s32.totalorder %s18, 3
      %p104 = por %p102, %p103
      %p105 = scmp.ne.s32.totalorder %s96, %s97
      %p106 = scmp.eq.s32.totalorder %s18, 0
      %p107 = por %p105, %p106
      %p108 = scmp.ne.s32.totalorder %s96, %s97
      %p109 = scmp.eq.s32.totalorder %s19, 3
      %p110 = por %p108, %p109
      %p112 = scmp.ne.s32.totalorder %s97, %s111
      %p113 = scmp.eq.s32.totalorder %s19, 0
      %p114 = por %p112, %p113
      %s116 = sadd.s32 %s115, 1
      %p119 = scmp.eq.s32.totalorder %s13, 3
      %p120 = scmp.ne.s32.totalorder %s115, %s117
      %p121 = scmp.eq.s32.totalorder %s13, 0
      %p122 = por %p120, %p121
      %p123 = scmp.ne.s32.totalorder %s115, %s117
      %p124 = scmp.eq.s32.totalorder %s18, 3
      %p125 = por %p123, %p124
      %p126 = scmp.ne.s32.totalorder %s117, %s118
      %p127 = scmp.eq.s32.totalorder %s18, 0
      %p128 = por %p126, %p127
      %p129 = scmp.ne.s32.totalorder %s117, %s118
      %p130 = scmp.eq.s32.totalorder %s19, 3
      %p131 = por %p129, %p130
      %p133 = scmp.ne.s32.totalorder %s118, %s132
      %p134 = scmp.eq.s32.totalorder %s19, 0
      %p135 = por %p133, %p134
      %s137 = sadd.s32 %s136, 1
      %p140 = scmp.eq.s32.totalorder %s13, 3
      %p141 = scmp.ne.s32.totalorder %s136, %s138
      %p142 = scmp.eq.s32.totalorder %s13, 0
      %p143 = por %p141, %p142
      %p144 = scmp.ne.s32.totalorder %s136, %s138
      %p145 = scmp.eq.s32.totalorder %s18, 3
      %p146 = por %p144, %p145
      %p147 = scmp.ne.s32.totalorder %s138, %s139
      %p148 = scmp.eq.s32.totalorder %s18, 0
      %p149 = por %p147, %p148
      %p150 = scmp.ne.s32.totalorder %s138, %s139
      %p151 = scmp.eq.s32.totalorder %s19, 3
      %p152 = por %p150, %p151
      %p154 = scmp.ne.s32.totalorder %s139, %s153
      %p155 = scmp.eq.s32.totalorder %s19, 0
      %p156 = por %p154, %p155
      %s158 = sadd.s32 %s157, 1
      %p161 = scmp.eq.s32.totalorder %s13, 3
      %p162 = scmp.ne.s32.totalorder %s157, %s159
      %p163 = scmp.eq.s32.totalorder %s13, 0
      %p164 = por %p162, %p163
      %p165 = scmp.ne.s32.totalorder %s157, %s159
      %p166 = scmp.eq.s32.totalorder %s18, 3
      %p167 = por %p165, %p166
      %p168 = scmp.ne.s32.totalorder %s159, %s160
      %p169 = scmp.eq.s32.totalorder %s18, 0
      %p170 = por %p168, %p169
      %p171 = scmp.ne.s32.totalorder %s159, %s160
      %p172 = scmp.eq.s32.totalorder %s19, 3
      %p173 = por %p171, %p172
      %p175 = scmp.ne.s32.totalorder %s160, %s174
      %p176 = scmp.eq.s32.totalorder %s19, 0
      %p177 = por %p175, %p176
      %p178 = scmp.le.s32.totalorder 1, %s13
      %p179 = scmp.lt.s32.totalorder %s13, 5
      %p180 = pnand %p178, %p179
      %p181 = pneg %p180
      // Predicated region
      $region9: #{faster_rcnn_forward.1} parent=5 // pred_check
        _
      $region10: #{faster_rcnn_forward.1} parent=5 // pred_check_branch
        %183 = sbr.rel (%p180) target = $region12
      $region11: #{faster_rcnn_forward.1} parent=5 // pred_region
        %s184 = ssub.s32 %s13, 1
        // Predicated region
        $region13: #{faster_rcnn_forward.1} parent=11 // pred_check
          %p185 = pneg %p34
        $region14: #{faster_rcnn_forward.1} parent=11 // pred_check_branch
          %187 = sbr.rel (%p185) target = $region16
        $region15: #{faster_rcnn_forward.1} parent=11 // pred_region
          _
        $region16: #{faster_rcnn_forward.1} parent=11 // pred_fallthru
          _
        // Predicated region
        $region17: #{faster_rcnn_forward.1} parent=11 // pred_check
          %p188 = pneg %p107
        $region18: #{faster_rcnn_forward.1} parent=11 // pred_check_branch
          %190 = sbr.rel (%p188) target = $region20
        $region19: #{faster_rcnn_forward.1} parent=11 // pred_region
          _
        $region20: #{faster_rcnn_forward.1} parent=11 // pred_fallthru
          _
        // Predicated region
        $region21: #{faster_rcnn_forward.1} parent=11 // pred_check
          %p191 = pneg %p128
        $region22: #{faster_rcnn_forward.1} parent=11 // pred_check_branch
          %193 = sbr.rel (%p191) target = $region24
        $region23: #{faster_rcnn_forward.1} parent=11 // pred_region
          _
        $region24: #{faster_rcnn_forward.1} parent=11 // pred_fallthru
          _
      $region12: #{faster_rcnn_forward.1} parent=5 // pred_fallthru
        _
      %p194 = scmp.lt.s32.totalorder %s13, 4
      // Predicated region
      $region25: #{faster_rcnn_forward.1} parent=5 // pred_check
        %p195 = pneg %p194
      $region26: #{faster_rcnn_forward.1} parent=5 // pred_check_branch
        %197 = sbr.rel (%p195) target = $region28
      $region27: #{faster_rcnn_forward.1} parent=5 // pred_region
        // Predicated region
        $region29: #{faster_rcnn_forward.1} parent=27 // pred_check
          %p198 = pneg %p54
        $region30: #{faster_rcnn_forward.1} parent=27 // pred_check_branch
          %200 = sbr.rel (%p198) target = $region32
        $region31: #{faster_rcnn_forward.1} parent=27 // pred_region
          %s201 = smul.u32 16, %s13
          %p202 = scmp.lt.s32.totalorder %s201, 63
          %s203 = scalar_select %p202, %s201, 63
          %s204 = smul.addr %s203, 19
          %s205 = smul.addr %s204, 4
          %s206 = scalar_lea.vmem %s1, %s205
          %s207 = smul.u32 16, %s13
        $region32: #{faster_rcnn_forward.1} parent=27 // pred_fallthru
          _
        // Predicated region
        $region33: #{faster_rcnn_forward.1} parent=27 // pred_check
          %p208 = pneg %p80
        $region34: #{faster_rcnn_forward.1} parent=27 // pred_check_branch
          %210 = sbr.rel (%p208) target = $region36
        $region35: #{faster_rcnn_forward.1} parent=27 // pred_region
          %s211 = sand.u32 %s70, 1
          %s212 = sand.u32 %s70, 1
          %s213 = smul.addr %s212, 24
          %s214 = scalar_lea.vmem [#allocation4], %s213
          %s215 = smul.addr %s13, 4
          %s216 = scalar_lea.vmem %s2, %s215
          // Predicated region
          $region37: #{faster_rcnn_forward.1} parent=35 // pred_check
            _
          $region38: #{faster_rcnn_forward.1} parent=35 // pred_check_branch
            %218 = sbr.rel (0) target = $region40
          $region39: #{faster_rcnn_forward.1} parent=35 // pred_region
            // Predicated region
            $region41: #{faster_rcnn_forward.1} parent=39 // pred_check
              _
            $region42: #{faster_rcnn_forward.1} parent=39 // pred_check_branch
              %220 = sbr.rel target = $region44
            $region43: #{faster_rcnn_forward.1} parent=39 // pred_region
              // Predicated region
              $region56: #{faster_rcnn_forward.1} parent=43 // pred_check
                _
              $region57: #{faster_rcnn_forward.1} parent=43 // pred_check_branch
                %245 = sbr.rel (0) target = $region59
              $region58: #{faster_rcnn_forward.1} parent=43 // pred_region
                loop: start=0, step=1, limit=1
                $region60: #{faster_rcnn_forward.1} parent=58 // loop_pre_header
                  _
                $region61: #{faster_rcnn_forward.1} parent=58 // loop_header
                  %s247 = sphi 0, %s251
                  %p248 = scmp.ge.s32.totalorder %s247, 1
                  %s252 = sphi %s216, %s216
                  %s253 = sphi %s214, %s214
                $region62: #{faster_rcnn_forward.1} parent=58 // loop_header_branch
                  %250 = sbr.rel (%p248) target = $region66
                $region63: #{faster_rcnn_forward.1} parent=58 // loop_body
                  _
                $region64: #{faster_rcnn_forward.1} parent=58 // loop_footer
                  %s251 = sadd.s32 1, %s247
                $region65: #{faster_rcnn_forward.1} parent=58 // loop_footer_branch
                  %246 = sbr.rel target = $region61
                $region66: #{faster_rcnn_forward.1} parent=58 // loop_exit
                  _
                loop: start=0, step=1, limit=1
                $region67: #{faster_rcnn_forward.1} parent=58 // loop_pre_header
                  _
                $region68: #{faster_rcnn_forward.1} parent=58 // loop_header
                  %s256 = sphi 0, %s260
                  %p257 = scmp.ge.s32.totalorder %s256, 1
                  %s261 = sphi %s216, %s216
                  %s262 = sphi %s214, %s214
                $region69: #{faster_rcnn_forward.1} parent=58 // loop_header_branch
                  %259 = sbr.rel (%p257) target = $region73
                $region70: #{faster_rcnn_forward.1} parent=58 // loop_body
                  %v263 = vld [vmem:[%s261] sm:$0xf]
                  %264 = vst [vmem:[%s262] sm:$0xf] %v263
                  %v265 = vld [vmem:[%s261 + $0x10] sm:$0xf]
                  %266 = vst [vmem:[%s262 + $0x4] sm:$0xf] %v265
                  %v267 = vld [vmem:[%s261 + $0x20] sm:$0xf]
                  %268 = vst [vmem:[%s262 + $0x8] sm:$0xf] %v267
                  %v269 = vld [vmem:[%s261 + $0x30] sm:$0xf]
                  %270 = vst [vmem:[%s262 + $0xc] sm:$0xf] %v269
                  %v271 = vld [vmem:[%s261 + $0x40] sm:$0xf]
                  %272 = vst [vmem:[%s262 + $0x10] sm:$0xf] %v271
                  %v273 = vld [vmem:[%s261 + $0x50] sm:$0xf]
                  %274 = vst [vmem:[%s262 + $0x14] sm:$0xf] %v273
                $region71: #{faster_rcnn_forward.1} parent=58 // loop_footer
                  %s260 = sadd.s32 1, %s256
                $region72: #{faster_rcnn_forward.1} parent=58 // loop_footer_branch
                  %255 = sbr.rel target = $region68
                $region73: #{faster_rcnn_forward.1} parent=58 // loop_exit
                  _
              $region59: #{faster_rcnn_forward.1} parent=43 // pred_fallthru
                _
            $region44: #{faster_rcnn_forward.1} parent=39 // pred_fallthru
              _
            // Predicated region
            $region45: #{faster_rcnn_forward.1} parent=39 // pred_check
              _
            $region46: #{faster_rcnn_forward.1} parent=39 // pred_check_branch
              %222 = sbr.rel (0) target = $region48
            $region47: #{faster_rcnn_forward.1} parent=39 // pred_region
              loop: start=0, step=1, limit=1
              $region49: #{faster_rcnn_forward.1} parent=47 // loop_pre_header
                _
              $region50: #{faster_rcnn_forward.1} parent=47 // loop_header
                %s225 = sphi 0, %s229
                %p226 = scmp.ge.s32.totalorder %s225, 1
                %s230 = sphi %s216, %s216
                %s231 = sphi %s214, %s214
              $region51: #{faster_rcnn_forward.1} parent=47 // loop_header_branch
                %228 = sbr.rel (%p226) target = $region55
              $region52: #{faster_rcnn_forward.1} parent=47 // loop_body
                %v232 = vld [vmem:[%s230] sm:$0xf]
                %233 = vst [vmem:[%s231] sm:$0xf] %v232
                %v234 = vld [vmem:[%s230 + $0x10] sm:$0xf]
                %235 = vst [vmem:[%s231 + $0x4] sm:$0xf] %v234
                %v236 = vld [vmem:[%s230 + $0x20] sm:$0xf]
                %237 = vst [vmem:[%s231 + $0x8] sm:$0xf] %v236
                %v238 = vld [vmem:[%s230 + $0x30] sm:$0xf]
                %239 = vst [vmem:[%s231 + $0xc] sm:$0xf] %v238
                %v240 = vld [vmem:[%s230 + $0x40] sm:$0xf]
                %241 = vst [vmem:[%s231 + $0x10] sm:$0xf] %v240
                %v242 = vld [vmem:[%s230 + $0x50] sm:$0xf]
                %243 = vst [vmem:[%s231 + $0x14] sm:$0xf] %v242
              $region53: #{faster_rcnn_forward.1} parent=47 // loop_footer
                %s229 = sadd.s32 1, %s225
              $region54: #{faster_rcnn_forward.1} parent=47 // loop_footer_branch
                %224 = sbr.rel target = $region50
              $region55: #{faster_rcnn_forward.1} parent=47 // loop_exit
                _
            $region48: #{faster_rcnn_forward.1} parent=39 // pred_fallthru
              _
          $region40: #{faster_rcnn_forward.1} parent=35 // pred_fallthru
            _
          %275 = vnop
        $region36: #{faster_rcnn_forward.1} parent=27 // pred_fallthru
          _
      $region28: #{faster_rcnn_forward.1} parent=5 // pred_fallthru
        _
      %p276 = scmp.le.s32.totalorder 1, %s13
      %p277 = scmp.lt.s32.totalorder %s13, 5
      %p278 = pnand %p276, %p277
      %p279 = pneg %p278
      // Predicated region
      $region74: #{faster_rcnn_forward.1} parent=5 // pred_check
        _
      $region75: #{faster_rcnn_forward.1} parent=5 // pred_check_branch
        %281 = sbr.rel (%p278) target = $region77
      $region76: #{faster_rcnn_forward.1} parent=5 // pred_region
        %s282 = ssub.s32 %s13, 1
        %s283 = sand.u32 %s73, 1
        %s284 = sand.u32 %s73, 1
        %s285 = smul.addr %s284, 24
        %s286 = scalar_lea.vmem [#allocation4], %s285
        // Predicated region
        $region78: #{faster_rcnn_forward.1} parent=76 // pred_check
          %p287 = pneg %p86
        $region79: #{faster_rcnn_forward.1} parent=76 // pred_check_branch
          %289 = sbr.rel (%p287) target = $region81
        $region80: #{faster_rcnn_forward.1} parent=76 // pred_region
          _
        $region81: #{faster_rcnn_forward.1} parent=76 // pred_fallthru
          _
        %p290 = pneg %p34
        %p291 = pneg %p31
        %s292 = smul.u32 16, %s18
        %p293 = scmp.lt.s32.totalorder %s292, 63
        %s294 = scalar_select %p293, %s292, 63
        %s295 = smul.addr %s294, 19
        %s296 = smul.addr %s295, 4
        %s297 = scalar_lea.vmem %s1, %s296
        %p298 = pneg %p60
        %p299 = pneg %p57
        %s300 = sand.u32 %s73, 1
        %s301 = sand.u32 %s73, 1
        %s302 = smul.addr %s301, 24
        %s303 = scalar_lea.vmem [#allocation4], %s302
        %p304 = pneg %p86
        %p305 = pneg %p83
        %p306 = pneg %p107
        %p307 = pneg %p104
        %p308 = pneg %p128
        %p309 = pneg %p125
        %p310 = pneg %p149
        %p311 = pneg %p146
        %p312 = pneg %p170
        %p313 = pneg %p167
        %s314 = smul.u32 16, %s18
        %p315 = scmp.lt.s32.totalorder %s314, 63
        %s316 = scalar_select %p315, %s314, 63
        %s317 = smul.addr %s316, 19
        %s318 = smul.addr %s317, 4
        %s319 = scalar_lea.vmem %s1, %s318
        %s320 = smul.u32 16, %s18
        %p321 = scmp.eq.s32.totalorder %s18, 0
        // Predicated region
        $region82: #{faster_rcnn_forward.1} parent=76 // pred_check
          %p322 = pneg %p321
        $region83: #{faster_rcnn_forward.1} parent=76 // pred_check_branch
          %324 = sbr.rel (%p322) target = $region85
        $region84: #{faster_rcnn_forward.1} parent=76 // pred_region
          %v325 = vld [vmem:[%s0] sm:$0xff]
          %v326 = vld [vmem:[%s0 + $0x8] sm:$0xff]
          %v327 = vld [vmem:[%s0 + $0x10] sm:$0xff]
          %v328 = vld [vmem:[%s0 + $0x18] sm:$0xff]
          %v329 = vld [vmem:[%s0 + $0x20] sm:$0xff]
          %v330 = vld [vmem:[%s0 + $0x28] sm:$0xff]
          %v331 = vld [vmem:[%s0 + $0x30] sm:$0xff]
          %v332 = vld [vmem:[%s0 + $0x38] sm:$0xff]
          %v333 = vld [vmem:[%s0 + $0x40] sm:$0xff]
          %v334 = vld [vmem:[%s0 + $0x48] sm:$0xff]
          %v335 = vld [vmem:[%s0 + $0x50] sm:$0xff]
          %v336 = vld [vmem:[%s0 + $0x58] sm:$0xff]
          %v337 = vld [vmem:[%s0 + $0x60] sm:$0xff]
          %v338 = vld [vmem:[%s0 + $0x68] sm:$0xff]
          %v339 = vld [vmem:[%s0 + $0x70] sm:$0xff]
          %v340 = vld [vmem:[%s0 + $0x78] sm:$0xff]
          %v341 = vld [vmem:[%s0 + $0x80] sm:$0xff]
          %v342 = vld [vmem:[%s0 + $0x88] sm:$0xff]
          %v343 = vld [vmem:[%s0 + $0x90] sm:$0xff]
          %v344 = vld [vmem:[%s0 + $0x98] sm:$0xff]
          %v345 = vld [vmem:[%s0 + $0xa0] sm:$0xff]
          %v346 = vld [vmem:[%s0 + $0xa8] sm:$0xff]
          %v347 = vld [vmem:[%s0 + $0xb0] sm:$0xff]
          %v348 = vld [vmem:[%s0 + $0xb8] sm:$0xff]
          %v349 = vld [vmem:[%s0 + $0xc0] sm:$0xff]
          %v350 = vld [vmem:[%s0 + $0xc8] sm:$0xff]
          %v351 = vld [vmem:[%s0 + $0xd0] sm:$0xff]
          %v352 = vld [vmem:[%s0 + $0xd8] sm:$0xff]
          %v353 = vld [vmem:[%s0 + $0xe0] sm:$0xff]
          %v354 = vld [vmem:[%s0 + $0xe8] sm:$0xff]
          %v355 = vld [vmem:[%s0 + $0xf0] sm:$0xff]
          %v356 = vld [vmem:[%s0 + $0xf8] sm:$0xff]
          %v357 = vlaneseq
          %v358 = vand.u32 %v357, 127
          %v359 = vand.u32 %v358, 7
          %v360 = vshra.s32 %v358, 3
          %v361 = vand.u32 %v360, 7
          %394 = vrot.lane.b32.xlu0 %v325, 9
          %v395 = vpop.permute.xlu0 %394
          %396 = vrot.lane.b32.xlu0 %v326, 9
          %v397 = vpop.permute.xlu0 %396
          %398 = vrot.lane.b32.xlu0 %v327, 9
          %v399 = vpop.permute.xlu0 %398
          %400 = vrot.lane.b32.xlu0 %v328, 9
          %v401 = vpop.permute.xlu0 %400
          %402 = vrot.lane.b32.xlu0 %v329, 9
          %v403 = vpop.permute.xlu0 %402
          %404 = vrot.lane.b32.xlu0 %v330, 9
          %v405 = vpop.permute.xlu0 %404
          %406 = vrot.lane.b32.xlu0 %v331, 9
          %v407 = vpop.permute.xlu0 %406
          %408 = vrot.lane.b32.xlu0 %v332, 9
          %v409 = vpop.permute.xlu0 %408
          %410 = vrot.lane.b32.xlu0 %v333, 9
          %v411 = vpop.permute.xlu0 %410
          %412 = vrot.lane.b32.xlu0 %v334, 9
          %v413 = vpop.permute.xlu0 %412
          %414 = vrot.lane.b32.xlu0 %v335, 9
          %v415 = vpop.permute.xlu0 %414
          %416 = vrot.lane.b32.xlu0 %v336, 9
          %v417 = vpop.permute.xlu0 %416
          %418 = vrot.lane.b32.xlu0 %v337, 9
          %v419 = vpop.permute.xlu0 %418
          %420 = vrot.lane.b32.xlu0 %v338, 9
          %v421 = vpop.permute.xlu0 %420
          %422 = vrot.lane.b32.xlu0 %v339, 9
          %v423 = vpop.permute.xlu0 %422
          %424 = vrot.lane.b32.xlu0 %v340, 9
          %v425 = vpop.permute.xlu0 %424
          %426 = vrot.lane.b32.xlu0 %v341, 9
          %v427 = vpop.permute.xlu0 %426
          %428 = vrot.lane.b32.xlu0 %v342, 9
          %v429 = vpop.permute.xlu0 %428
          %430 = vrot.lane.b32.xlu0 %v343, 9
          %v431 = vpop.permute.xlu0 %430
          %432 = vrot.lane.b32.xlu0 %v344, 9
          %v433 = vpop.permute.xlu0 %432
          %434 = vrot.lane.b32.xlu0 %v345, 9
          %v435 = vpop.permute.xlu0 %434
          %436 = vrot.lane.b32.xlu0 %v346, 9
          %v437 = vpop.permute.xlu0 %436
          %438 = vrot.lane.b32.xlu0 %v347, 9
          %v439 = vpop.permute.xlu0 %438
          %440 = vrot.lane.b32.xlu0 %v348, 9
          %v441 = vpop.permute.xlu0 %440
          %442 = vrot.lane.b32.xlu0 %v349, 9
          %v443 = vpop.permute.xlu0 %442
          %444 = vrot.lane.b32.xlu0 %v350, 9
          %v445 = vpop.permute.xlu0 %444
          %446 = vrot.lane.b32.xlu0 %v351, 9
          %v447 = vpop.permute.xlu0 %446
          %448 = vrot.lane.b32.xlu0 %v352, 9
          %v449 = vpop.permute.xlu0 %448
          %450 = vrot.lane.b32.xlu0 %v353, 9
          %v451 = vpop.permute.xlu0 %450
          %452 = vrot.lane.b32.xlu0 %v354, 9
          %v453 = vpop.permute.xlu0 %452
          %454 = vrot.lane.b32.xlu0 %v355, 9
          %v455 = vpop.permute.xlu0 %454
          %456 = vrot.lane.b32.xlu0 %v356, 9
          %v457 = vpop.permute.xlu0 %456
          %vm490 = vcmask 72704
          %v491 = vsel %vm490, 0.0, %v395
          %v492 = vsel %vm490, 0.0, %v397
          %v493 = vsel %vm490, 0.0, %v399
          %v494 = vsel %vm490, 0.0, %v401
          %v495 = vsel %vm490, 0.0, %v403
          %v496 = vsel %vm490, 0.0, %v405
          %v497 = vsel %vm490, 0.0, %v407
          %v498 = vsel %vm490, 0.0, %v409
          %v499 = vsel %vm490, 0.0, %v411
          %v500 = vsel %vm490, 0.0, %v413
          %v501 = vsel %vm490, 0.0, %v415
          %v502 = vsel %vm490, 0.0, %v417
          %v503 = vsel %vm490, 0.0, %v419
          %v504 = vsel %vm490, 0.0, %v421
          %v505 = vsel %vm490, 0.0, %v423
          %v506 = vsel %vm490, 0.0, %v425
          %v507 = vsel %vm490, 0.0, %v427
          %v508 = vsel %vm490, 0.0, %v429
          %v509 = vsel %vm490, 0.0, %v431
          %v510 = vsel %vm490, 0.0, %v433
          %v511 = vsel %vm490, 0.0, %v435
          %v512 = vsel %vm490, 0.0, %v437
          %v513 = vsel %vm490, 0.0, %v439
          %v514 = vsel %vm490, 0.0, %v441
          %v515 = vsel %vm490, 0.0, %v443
          %v516 = vsel %vm490, 0.0, %v445
          %v517 = vsel %vm490, 0.0, %v447
          %v518 = vsel %vm490, 0.0, %v449
          %v519 = vsel %vm490, 0.0, %v451
          %v520 = vsel %vm490, 0.0, %v453
          %v521 = vsel %vm490, 0.0, %v455
          %v522 = vsel %vm490, 0.0, %v457
          %v523 = vadd.s32 %v361, 4294967295
          %vm524 = vcmp.ge.s32.totalorder %v523, 0
          %vm525 = vcmp.lt.s32.totalorder %v523, 8
          %vm526 = vmand %vm524, %vm525
          %v527 = vadd.s32 %v359, 4294967295
          %vm528 = vcmp.ge.s32.totalorder %v527, 0
          %vm529 = vmand %vm526, %vm528
          %vm530 = vcmp.lt.s32.totalorder %v527, 8
          %vm531 = vmand %vm529, %vm530
          %v532 = vsel %vm531, 1, 0
          %vm533 = vcmp.eq.s32.totalorder %v532, 1
          %v534 = vsel %vm533, %v491, 0.0
          %v535 = vsel %vm533, %v492, 0.0
          %v536 = vsel %vm533, %v493, 0.0
          %v537 = vsel %vm533, %v494, 0.0
          %v538 = vsel %vm533, %v495, 0.0
          %v539 = vsel %vm533, %v496, 0.0
          %v540 = vsel %vm533, %v497, 0.0
          %v541 = vsel %vm533, %v498, 0.0
          %v542 = vsel %vm533, %v499, 0.0
          %v543 = vsel %vm533, %v500, 0.0
          %v544 = vsel %vm533, %v501, 0.0
          %v545 = vsel %vm533, %v502, 0.0
          %v546 = vsel %vm533, %v503, 0.0
          %v547 = vsel %vm533, %v504, 0.0
          %v548 = vsel %vm533, %v505, 0.0
          %v549 = vsel %vm533, %v506, 0.0
          %v550 = vsel %vm533, %v507, 0.0
          %v551 = vsel %vm533, %v508, 0.0
          %v552 = vsel %vm533, %v509, 0.0
          %v553 = vsel %vm533, %v510, 0.0
          %v554 = vsel %vm533, %v511, 0.0
          %v555 = vsel %vm533, %v512, 0.0
          %v556 = vsel %vm533, %v513, 0.0
          %v557 = vsel %vm533, %v514, 0.0
          %v558 = vsel %vm533, %v515, 0.0
          %v559 = vsel %vm533, %v516, 0.0
          %v560 = vsel %vm533, %v517, 0.0
          %v561 = vsel %vm533, %v518, 0.0
          %v562 = vsel %vm533, %v519, 0.0
          %v563 = vsel %vm533, %v520, 0.0
          %v564 = vsel %vm533, %v521, 0.0
          %v565 = vsel %vm533, %v522, 0.0
          %566 = vst [vmem:[#allocation2] sm:$0xff] %v534
          %567 = vst [vmem:[#allocation2 + $0x8] sm:$0xff] %v535
          %568 = vst [vmem:[#allocation2 + $0x10] sm:$0xff] %v536
          %569 = vst [vmem:[#allocation2 + $0x18] sm:$0xff] %v537
          %570 = vst [vmem:[#allocation2 + $0x20] sm:$0xff] %v538
          %571 = vst [vmem:[#allocation2 + $0x28] sm:$0xff] %v539
          %572 = vst [vmem:[#allocation2 + $0x30] sm:$0xff] %v540
          %573 = vst [vmem:[#allocation2 + $0x38] sm:$0xff] %v541
          %574 = vst [vmem:[#allocation2 + $0x40] sm:$0xff] %v542
          %575 = vst [vmem:[#allocation2 + $0x48] sm:$0xff] %v543
          %576 = vst [vmem:[#allocation2 + $0x50] sm:$0xff] %v544
          %577 = vst [vmem:[#allocation2 + $0x58] sm:$0xff] %v545
          %578 = vst [vmem:[#allocation2 + $0x60] sm:$0xff] %v546
          %579 = vst [vmem:[#allocation2 + $0x68] sm:$0xff] %v547
          %580 = vst [vmem:[#allocation2 + $0x70] sm:$0xff] %v548
          %581 = vst [vmem:[#allocation2 + $0x78] sm:$0xff] %v549
          %582 = vst [vmem:[#allocation2 + $0x80] sm:$0xff] %v550
          %583 = vst [vmem:[#allocation2 + $0x88] sm:$0xff] %v551
          %584 = vst [vmem:[#allocation2 + $0x90] sm:$0xff] %v552
          %585 = vst [vmem:[#allocation2 + $0x98] sm:$0xff] %v553
          %586 = vst [vmem:[#allocation2 + $0xa0] sm:$0xff] %v554
          %587 = vst [vmem:[#allocation2 + $0xa8] sm:$0xff] %v555
          %588 = vst [vmem:[#allocation2 + $0xb0] sm:$0xff] %v556
          %589 = vst [vmem:[#allocation2 + $0xb8] sm:$0xff] %v557
          %590 = vst [vmem:[#allocation2 + $0xc0] sm:$0xff] %v558
          %591 = vst [vmem:[#allocation2 + $0xc8] sm:$0xff] %v559
          %592 = vst [vmem:[#allocation2 + $0xd0] sm:$0xff] %v560
          %593 = vst [vmem:[#allocation2 + $0xd8] sm:$0xff] %v561
          %594 = vst [vmem:[#allocation2 + $0xe0] sm:$0xff] %v562
          %595 = vst [vmem:[#allocation2 + $0xe8] sm:$0xff] %v563
          %596 = vst [vmem:[#allocation2 + $0xf0] sm:$0xff] %v564
          %597 = vst [vmem:[#allocation2 + $0xf8] sm:$0xff] %v565
          %598 = vrot.lane.b32.xlu0 %v325, 8
          %v599 = vpop.permute.xlu0 %598
          %600 = vrot.lane.b32.xlu0 %v326, 8
          %v601 = vpop.permute.xlu0 %600
          %602 = vrot.lane.b32.xlu0 %v327, 8
          %v603 = vpop.permute.xlu0 %602
          %604 = vrot.lane.b32.xlu0 %v328, 8
          %v605 = vpop.permute.xlu0 %604
          %606 = vrot.lane.b32.xlu0 %v329, 8
          %v607 = vpop.permute.xlu0 %606
          %608 = vrot.lane.b32.xlu0 %v330, 8
          %v609 = vpop.permute.xlu0 %608
          %610 = vrot.lane.b32.xlu0 %v331, 8
          %v611 = vpop.permute.xlu0 %610
          %612 = vrot.lane.b32.xlu0 %v332, 8
          %v613 = vpop.permute.xlu0 %612
          %614 = vrot.lane.b32.xlu0 %v333, 8
          %v615 = vpop.permute.xlu0 %614
          %616 = vrot.lane.b32.xlu0 %v334, 8
          %v617 = vpop.permute.xlu0 %616
          %618 = vrot.lane.b32.xlu0 %v335, 8
          %v619 = vpop.permute.xlu0 %618
          %620 = vrot.lane.b32.xlu0 %v336, 8
          %v621 = vpop.permute.xlu0 %620
          %622 = vrot.lane.b32.xlu0 %v337, 8
          %v623 = vpop.permute.xlu0 %622
          %624 = vrot.lane.b32.xlu0 %v338, 8
          %v625 = vpop.permute.xlu0 %624
          %626 = vrot.lane.b32.xlu0 %v339, 8
          %v627 = vpop.permute.xlu0 %626
          %628 = vrot.lane.b32.xlu0 %v340, 8
          %v629 = vpop.permute.xlu0 %628
          %630 = vrot.lane.b32.xlu0 %v341, 8
          %v631 = vpop.permute.xlu0 %630
          %632 = vrot.lane.b32.xlu0 %v342, 8
          %v633 = vpop.permute.xlu0 %632
          %634 = vrot.lane.b32.xlu0 %v343, 8
          %v635 = vpop.permute.xlu0 %634
          %636 = vrot.lane.b32.xlu0 %v344, 8
          %v637 = vpop.permute.xlu0 %636
          %638 = vrot.lane.b32.xlu0 %v345, 8
          %v639 = vpop.permute.xlu0 %638
          %640 = vrot.lane.b32.xlu0 %v346, 8
          %v641 = vpop.permute.xlu0 %640
          %642 = vrot.lane.b32.xlu0 %v347, 8
          %v643 = vpop.permute.xlu0 %642
          %644 = vrot.lane.b32.xlu0 %v348, 8
          %v645 = vpop.permute.xlu0 %644
          %646 = vrot.lane.b32.xlu0 %v349, 8
          %v647 = vpop.permute.xlu0 %646
          %648 = vrot.lane.b32.xlu0 %v350, 8
          %v649 = vpop.permute.xlu0 %648
          %650 = vrot.lane.b32.xlu0 %v351, 8
          %v651 = vpop.permute.xlu0 %650
          %652 = vrot.lane.b32.xlu0 %v352, 8
          %v653 = vpop.permute.xlu0 %652
          %654 = vrot.lane.b32.xlu0 %v353, 8
          %v655 = vpop.permute.xlu0 %654
          %656 = vrot.lane.b32.xlu0 %v354, 8
          %v657 = vpop.permute.xlu0 %656
          %658 = vrot.lane.b32.xlu0 %v355, 8
          %v659 = vpop.permute.xlu0 %658
          %660 = vrot.lane.b32.xlu0 %v356, 8
          %v661 = vpop.permute.xlu0 %660
          %vm694 = vcmask 64512
          %v695 = vsel %vm694, 0.0, %v599
          %v696 = vsel %vm694, 0.0, %v601
          %v697 = vsel %vm694, 0.0, %v603
          %v698 = vsel %vm694, 0.0, %v605
          %v699 = vsel %vm694, 0.0, %v607
          %v700 = vsel %vm694, 0.0, %v609
          %v701 = vsel %vm694, 0.0, %v611
          %v702 = vsel %vm694, 0.0, %v613
          %v703 = vsel %vm694, 0.0, %v615
          %v704 = vsel %vm694, 0.0, %v617
          %v705 = vsel %vm694, 0.0, %v619
          %v706 = vsel %vm694, 0.0, %v621
          %v707 = vsel %vm694, 0.0, %v623
          %v708 = vsel %vm694, 0.0, %v625
          %v709 = vsel %vm694, 0.0, %v627
          %v710 = vsel %vm694, 0.0, %v629
          %v711 = vsel %vm694, 0.0, %v631
          %v712 = vsel %vm694, 0.0, %v633
          %v713 = vsel %vm694, 0.0, %v635
          %v714 = vsel %vm694, 0.0, %v637
          %v715 = vsel %vm694, 0.0, %v639
          %v716 = vsel %vm694, 0.0, %v641
          %v717 = vsel %vm694, 0.0, %v643
          %v718 = vsel %vm694, 0.0, %v645
          %v719 = vsel %vm694, 0.0, %v647
          %v720 = vsel %vm694, 0.0, %v649
          %v721 = vsel %vm694, 0.0, %v651
          %v722 = vsel %vm694, 0.0, %v653
          %v723 = vsel %vm694, 0.0, %v655
          %v724 = vsel %vm694, 0.0, %v657
          %v725 = vsel %vm694, 0.0, %v659
          %v726 = vsel %vm694, 0.0, %v661
          %vm727 = vcmp.ge.s32.totalorder %v359, 0
          %vm728 = vmand %vm526, %vm727
          %vm729 = vcmp.lt.s32.totalorder %v359, 8
          %vm730 = vmand %vm728, %vm729
          %v731 = vsel %vm730, 1, 0
          %vm732 = vcmp.eq.s32.totalorder %v731, 1
          %v733 = vsel %vm732, %v695, 0.0
          %v734 = vsel %vm732, %v696, 0.0
          %v735 = vsel %vm732, %v697, 0.0
          %v736 = vsel %vm732, %v698, 0.0
          %v737 = vsel %vm732, %v699, 0.0
          %v738 = vsel %vm732, %v700, 0.0
          %v739 = vsel %vm732, %v701, 0.0
          %v740 = vsel %vm732, %v702, 0.0
          %v741 = vsel %vm732, %v703, 0.0
          %v742 = vsel %vm732, %v704, 0.0
          %v743 = vsel %vm732, %v705, 0.0
          %v744 = vsel %vm732, %v706, 0.0
          %v745 = vsel %vm732, %v707, 0.0
          %v746 = vsel %vm732, %v708, 0.0
          %v747 = vsel %vm732, %v709, 0.0
          %v748 = vsel %vm732, %v710, 0.0
          %v749 = vsel %vm732, %v711, 0.0
          %v750 = vsel %vm732, %v712, 0.0
          %v751 = vsel %vm732, %v713, 0.0
          %v752 = vsel %vm732, %v714, 0.0
          %v753 = vsel %vm732, %v715, 0.0
          %v754 = vsel %vm732, %v716, 0.0
          %v755 = vsel %vm732, %v717, 0.0
          %v756 = vsel %vm732, %v718, 0.0
          %v757 = vsel %vm732, %v719, 0.0
          %v758 = vsel %vm732, %v720, 0.0
          %v759 = vsel %vm732, %v721, 0.0
          %v760 = vsel %vm732, %v722, 0.0
          %v761 = vsel %vm732, %v723, 0.0
          %v762 = vsel %vm732, %v724, 0.0
          %v763 = vsel %vm732, %v725, 0.0
          %v764 = vsel %vm732, %v726, 0.0
          %765 = vst [vmem:[#allocation2 + $0x100] sm:$0xff] %v733
          %766 = vst [vmem:[#allocation2 + $0x108] sm:$0xff] %v734
          %767 = vst [vmem:[#allocation2 + $0x110] sm:$0xff] %v735
          %768 = vst [vmem:[#allocation2 + $0x118] sm:$0xff] %v736
          %769 = vst [vmem:[#allocation2 + $0x120] sm:$0xff] %v737
          %770 = vst [vmem:[#allocation2 + $0x128] sm:$0xff] %v738
          %771 = vst [vmem:[#allocation2 + $0x130] sm:$0xff] %v739
          %772 = vst [vmem:[#allocation2 + $0x138] sm:$0xff] %v740
          %773 = vst [vmem:[#allocation2 + $0x140] sm:$0xff] %v741
          %774 = vst [vmem:[#allocation2 + $0x148] sm:$0xff] %v742
          %775 = vst [vmem:[#allocation2 + $0x150] sm:$0xff] %v743
          %776 = vst [vmem:[#allocation2 + $0x158] sm:$0xff] %v744
          %777 = vst [vmem:[#allocation2 + $0x160] sm:$0xff] %v745
          %778 = vst [vmem:[#allocation2 + $0x168] sm:$0xff] %v746
          %779 = vst [vmem:[#allocation2 + $0x170] sm:$0xff] %v747
          %780 = vst [vmem:[#allocation2 + $0x178] sm:$0xff] %v748
          %781 = vst [vmem:[#allocation2 + $0x180] sm:$0xff] %v749
          %782 = vst [vmem:[#allocation2 + $0x188] sm:$0xff] %v750
          %783 = vst [vmem:[#allocation2 + $0x190] sm:$0xff] %v751
          %784 = vst [vmem:[#allocation2 + $0x198] sm:$0xff] %v752
          %785 = vst [vmem:[#allocation2 + $0x1a0] sm:$0xff] %v753
          %786 = vst [vmem:[#allocation2 + $0x1a8] sm:$0xff] %v754
          %787 = vst [vmem:[#allocation2 + $0x1b0] sm:$0xff] %v755
          %788 = vst [vmem:[#allocation2 + $0x1b8] sm:$0xff] %v756
          %789 = vst [vmem:[#allocation2 + $0x1c0] sm:$0xff] %v757
          %790 = vst [vmem:[#allocation2 + $0x1c8] sm:$0xff] %v758
          %791 = vst [vmem:[#allocation2 + $0x1d0] sm:$0xff] %v759
          %792 = vst [vmem:[#allocation2 + $0x1d8] sm:$0xff] %v760
          %793 = vst [vmem:[#allocation2 + $0x1e0] sm:$0xff] %v761
          %794 = vst [vmem:[#allocation2 + $0x1e8] sm:$0xff] %v762
          %795 = vst [vmem:[#allocation2 + $0x1f0] sm:$0xff] %v763
          %796 = vst [vmem:[#allocation2 + $0x1f8] sm:$0xff] %v764
          %797 = vrot.lane.b32.xlu0 %v325, 7
          %v798 = vpop.permute.xlu0 %797
          %799 = vrot.lane.b32.xlu0 %v326, 7
          %v800 = vpop.permute.xlu0 %799
          %801 = vrot.lane.b32.xlu0 %v327, 7
          %v802 = vpop.permute.xlu0 %801
          %803 = vrot.lane.b32.xlu0 %v328, 7
          %v804 = vpop.permute.xlu0 %803
          %805 = vrot.lane.b32.xlu0 %v329, 7
          %v806 = vpop.permute.xlu0 %805
          %807 = vrot.lane.b32.xlu0 %v330, 7
          %v808 = vpop.permute.xlu0 %807
          %809 = vrot.lane.b32.xlu0 %v331, 7
          %v810 = vpop.permute.xlu0 %809
          %811 = vrot.lane.b32.xlu0 %v332, 7
          %v812 = vpop.permute.xlu0 %811
          %813 = vrot.lane.b32.xlu0 %v333, 7
          %v814 = vpop.permute.xlu0 %813
          %815 = vrot.lane.b32.xlu0 %v334, 7
          %v816 = vpop.permute.xlu0 %815
          %817 = vrot.lane.b32.xlu0 %v335, 7
          %v818 = vpop.permute.xlu0 %817
          %819 = vrot.lane.b32.xlu0 %v336, 7
          %v820 = vpop.permute.xlu0 %819
          %821 = vrot.lane.b32.xlu0 %v337, 7
          %v822 = vpop.permute.xlu0 %821
          %823 = vrot.lane.b32.xlu0 %v338, 7
          %v824 = vpop.permute.xlu0 %823
          %825 = vrot.lane.b32.xlu0 %v339, 7
          %v826 = vpop.permute.xlu0 %825
          %827 = vrot.lane.b32.xlu0 %v340, 7
          %v828 = vpop.permute.xlu0 %827
          %829 = vrot.lane.b32.xlu0 %v341, 7
          %v830 = vpop.permute.xlu0 %829
          %831 = vrot.lane.b32.xlu0 %v342, 7
          %v832 = vpop.permute.xlu0 %831
          %833 = vrot.lane.b32.xlu0 %v343, 7
          %v834 = vpop.permute.xlu0 %833
          %835 = vrot.lane.b32.xlu0 %v344, 7
          %v836 = vpop.permute.xlu0 %835
          %837 = vrot.lane.b32.xlu0 %v345, 7
          %v838 = vpop.permute.xlu0 %837
          %839 = vrot.lane.b32.xlu0 %v346, 7
          %v840 = vpop.permute.xlu0 %839
          %841 = vrot.lane.b32.xlu0 %v347, 7
          %v842 = vpop.permute.xlu0 %841
          %843 = vrot.lane.b32.xlu0 %v348, 7
          %v844 = vpop.permute.xlu0 %843
          %845 = vrot.lane.b32.xlu0 %v349, 7
          %v846 = vpop.permute.xlu0 %845
          %847 = vrot.lane.b32.xlu0 %v350, 7
          %v848 = vpop.permute.xlu0 %847
          %849 = vrot.lane.b32.xlu0 %v351, 7
          %v850 = vpop.permute.xlu0 %849
          %851 = vrot.lane.b32.xlu0 %v352, 7
          %v852 = vpop.permute.xlu0 %851
          %853 = vrot.lane.b32.xlu0 %v353, 7
          %v854 = vpop.permute.xlu0 %853
          %855 = vrot.lane.b32.xlu0 %v354, 7
          %v856 = vpop.permute.xlu0 %855
          %857 = vrot.lane.b32.xlu0 %v355, 7
          %v858 = vpop.permute.xlu0 %857
          %859 = vrot.lane.b32.xlu0 %v356, 7
          %v860 = vpop.permute.xlu0 %859
          %vm893 = vcmask 56320
          %v894 = vsel %vm893, 0.0, %v798
          %v895 = vsel %vm893, 0.0, %v800
          %v896 = vsel %vm893, 0.0, %v802
          %v897 = vsel %vm893, 0.0, %v804
          %v898 = vsel %vm893, 0.0, %v806
          %v899 = vsel %vm893, 0.0, %v808
          %v900 = vsel %vm893, 0.0, %v810
          %v901 = vsel %vm893, 0.0, %v812
          %v902 = vsel %vm893, 0.0, %v814
          %v903 = vsel %vm893, 0.0, %v816
          %v904 = vsel %vm893, 0.0, %v818
          %v905 = vsel %vm893, 0.0, %v820
          %v906 = vsel %vm893, 0.0, %v822
          %v907 = vsel %vm893, 0.0, %v824
          %v908 = vsel %vm893, 0.0, %v826
          %v909 = vsel %vm893, 0.0, %v828
          %v910 = vsel %vm893, 0.0, %v830
          %v911 = vsel %vm893, 0.0, %v832
          %v912 = vsel %vm893, 0.0, %v834
          %v913 = vsel %vm893, 0.0, %v836
          %v914 = vsel %vm893, 0.0, %v838
          %v915 = vsel %vm893, 0.0, %v840
          %v916 = vsel %vm893, 0.0, %v842
          %v917 = vsel %vm893, 0.0, %v844
          %v918 = vsel %vm893, 0.0, %v846
          %v919 = vsel %vm893, 0.0, %v848
          %v920 = vsel %vm893, 0.0, %v850
          %v921 = vsel %vm893, 0.0, %v852
          %v922 = vsel %vm893, 0.0, %v854
          %v923 = vsel %vm893, 0.0, %v856
          %v924 = vsel %vm893, 0.0, %v858
          %v925 = vsel %vm893, 0.0, %v860
          %v926 = vadd.s32 %v359, 1
          %vm927 = vcmp.ge.s32.totalorder %v926, 0
          %vm928 = vmand %vm526, %vm927
          %vm929 = vcmp.lt.s32.totalorder %v926, 8
          %vm930 = vmand %vm928, %vm929
          %v931 = vsel %vm930, 1, 0
          %vm932 = vcmp.eq.s32.totalorder %v931, 1
          %v933 = vsel %vm932, %v894, 0.0
          %v934 = vsel %vm932, %v895, 0.0
          %v935 = vsel %vm932, %v896, 0.0
          %v936 = vsel %vm932, %v897, 0.0
          %v937 = vsel %vm932, %v898, 0.0
          %v938 = vsel %vm932, %v899, 0.0
          %v939 = vsel %vm932, %v900, 0.0
          %v940 = vsel %vm932, %v901, 0.0
          %v941 = vsel %vm932, %v902, 0.0
          %v942 = vsel %vm932, %v903, 0.0
          %v943 = vsel %vm932, %v904, 0.0
          %v944 = vsel %vm932, %v905, 0.0
          %v945 = vsel %vm932, %v906, 0.0
          %v946 = vsel %vm932, %v907, 0.0
          %v947 = vsel %vm932, %v908, 0.0
          %v948 = vsel %vm932, %v909, 0.0
          %v949 = vsel %vm932, %v910, 0.0
          %v950 = vsel %vm932, %v911, 0.0
          %v951 = vsel %vm932, %v912, 0.0
          %v952 = vsel %vm932, %v913, 0.0
          %v953 = vsel %vm932, %v914, 0.0
          %v954 = vsel %vm932, %v915, 0.0
          %v955 = vsel %vm932, %v916, 0.0
          %v956 = vsel %vm932, %v917, 0.0
          %v957 = vsel %vm932, %v918, 0.0
          %v958 = vsel %vm932, %v919, 0.0
          %v959 = vsel %vm932, %v920, 0.0
          %v960 = vsel %vm932, %v921, 0.0
          %v961 = vsel %vm932, %v922, 0.0
          %v962 = vsel %vm932, %v923, 0.0
          %v963 = vsel %vm932, %v924, 0.0
          %v964 = vsel %vm932, %v925, 0.0
          %965 = vst [vmem:[#allocation2 + $0x200] sm:$0xff] %v933
          %966 = vst [vmem:[#allocation2 + $0x208] sm:$0xff] %v934
          %967 = vst [vmem:[#allocation2 + $0x210] sm:$0xff] %v935
          %968 = vst [vmem:[#allocation2 + $0x218] sm:$0xff] %v936
          %969 = vst [vmem:[#allocation2 + $0x220] sm:$0xff] %v937
          %970 = vst [vmem:[#allocation2 + $0x228] sm:$0xff] %v938
          %971 = vst [vmem:[#allocation2 + $0x230] sm:$0xff] %v939
          %972 = vst [vmem:[#allocation2 + $0x238] sm:$0xff] %v940
          %973 = vst [vmem:[#allocation2 + $0x240] sm:$0xff] %v941
          %974 = vst [vmem:[#allocation2 + $0x248] sm:$0xff] %v942
          %975 = vst [vmem:[#allocation2 + $0x250] sm:$0xff] %v943
          %976 = vst [vmem:[#allocation2 + $0x258] sm:$0xff] %v944
          %977 = vst [vmem:[#allocation2 + $0x260] sm:$0xff] %v945
          %978 = vst [vmem:[#allocation2 + $0x268] sm:$0xff] %v946
          %979 = vst [vmem:[#allocation2 + $0x270] sm:$0xff] %v947
          %980 = vst [vmem:[#allocation2 + $0x278] sm:$0xff] %v948
          %981 = vst [vmem:[#allocation2 + $0x280] sm:$0xff] %v949
          %982 = vst [vmem:[#allocation2 + $0x288] sm:$0xff] %v950
          %983 = vst [vmem:[#allocation2 + $0x290] sm:$0xff] %v951
          %984 = vst [vmem:[#allocation2 + $0x298] sm:$0xff] %v952
          %985 = vst [vmem:[#allocation2 + $0x2a0] sm:$0xff] %v953
          %986 = vst [vmem:[#allocation2 + $0x2a8] sm:$0xff] %v954
          %987 = vst [vmem:[#allocation2 + $0x2b0] sm:$0xff] %v955
          %988 = vst [vmem:[#allocation2 + $0x2b8] sm:$0xff] %v956
          %989 = vst [vmem:[#allocation2 + $0x2c0] sm:$0xff] %v957
          %990 = vst [vmem:[#allocation2 + $0x2c8] sm:$0xff] %v958
          %991 = vst [vmem:[#allocation2 + $0x2d0] sm:$0xff] %v959
          %992 = vst [vmem:[#allocation2 + $0x2d8] sm:$0xff] %v960
          %993 = vst [vmem:[#allocation2 + $0x2e0] sm:$0xff] %v961
          %994 = vst [vmem:[#allocation2 + $0x2e8] sm:$0xff] %v962
          %995 = vst [vmem:[#allocation2 + $0x2f0] sm:$0xff] %v963
          %996 = vst [vmem:[#allocation2 + $0x2f8] sm:$0xff] %v964
          %997 = vrot.lane.b32.xlu0 %v325, 1
          %v998 = vpop.permute.xlu0 %997
          %999 = vrot.lane.b32.xlu0 %v326, 1
          %v1000 = vpop.permute.xlu0 %999
          %1001 = vrot.lane.b32.xlu0 %v327, 1
          %v1002 = vpop.permute.xlu0 %1001
          %1003 = vrot.lane.b32.xlu0 %v328, 1
          %v1004 = vpop.permute.xlu0 %1003
          %1005 = vrot.lane.b32.xlu0 %v329, 1
          %v1006 = vpop.permute.xlu0 %1005
          %1007 = vrot.lane.b32.xlu0 %v330, 1
          %v1008 = vpop.permute.xlu0 %1007
          %1009 = vrot.lane.b32.xlu0 %v331, 1
          %v1010 = vpop.permute.xlu0 %1009
          %1011 = vrot.lane.b32.xlu0 %v332, 1
          %v1012 = vpop.permute.xlu0 %1011
          %1013 = vrot.lane.b32.xlu0 %v333, 1
          %v1014 = vpop.permute.xlu0 %1013
          %1015 = vrot.lane.b32.xlu0 %v334, 1
          %v1016 = vpop.permute.xlu0 %1015
          %1017 = vrot.lane.b32.xlu0 %v335, 1
          %v1018 = vpop.permute.xlu0 %1017
          %1019 = vrot.lane.b32.xlu0 %v336, 1
          %v1020 = vpop.permute.xlu0 %1019
          %1021 = vrot.lane.b32.xlu0 %v337, 1
          %v1022 = vpop.permute.xlu0 %1021
          %1023 = vrot.lane.b32.xlu0 %v338, 1
          %v1024 = vpop.permute.xlu0 %1023
          %1025 = vrot.lane.b32.xlu0 %v339, 1
          %v1026 = vpop.permute.xlu0 %1025
          %1027 = vrot.lane.b32.xlu0 %v340, 1
          %v1028 = vpop.permute.xlu0 %1027
          %1029 = vrot.lane.b32.xlu0 %v341, 1
          %v1030 = vpop.permute.xlu0 %1029
          %1031 = vrot.lane.b32.xlu0 %v342, 1
          %v1032 = vpop.permute.xlu0 %1031
          %1033 = vrot.lane.b32.xlu0 %v343, 1
          %v1034 = vpop.permute.xlu0 %1033
          %1035 = vrot.lane.b32.xlu0 %v344, 1
          %v1036 = vpop.permute.xlu0 %1035
          %1037 = vrot.lane.b32.xlu0 %v345, 1
          %v1038 = vpop.permute.xlu0 %1037
          %1039 = vrot.lane.b32.xlu0 %v346, 1
          %v1040 = vpop.permute.xlu0 %1039
          %1041 = vrot.lane.b32.xlu0 %v347, 1
          %v1042 = vpop.permute.xlu0 %1041
          %1043 = vrot.lane.b32.xlu0 %v348, 1
          %v1044 = vpop.permute.xlu0 %1043
          %1045 = vrot.lane.b32.xlu0 %v349, 1
          %v1046 = vpop.permute.xlu0 %1045
          %1047 = vrot.lane.b32.xlu0 %v350, 1
          %v1048 = vpop.permute.xlu0 %1047
          %1049 = vrot.lane.b32.xlu0 %v351, 1
          %v1050 = vpop.permute.xlu0 %1049
          %1051 = vrot.lane.b32.xlu0 %v352, 1
          %v1052 = vpop.permute.xlu0 %1051
          %1053 = vrot.lane.b32.xlu0 %v353, 1
          %v1054 = vpop.permute.xlu0 %1053
          %1055 = vrot.lane.b32.xlu0 %v354, 1
          %v1056 = vpop.permute.xlu0 %1055
          %1057 = vrot.lane.b32.xlu0 %v355, 1
          %v1058 = vpop.permute.xlu0 %1057
          %1059 = vrot.lane.b32.xlu0 %v356, 1
          %v1060 = vpop.permute.xlu0 %1059
          %vm1093 = vcmask 7168
          %v1094 = vsel %vm1093, 0.0, %v998
          %v1095 = vsel %vm1093, 0.0, %v1000
          %v1096 = vsel %vm1093, 0.0, %v1002
          %v1097 = vsel %vm1093, 0.0, %v1004
          %v1098 = vsel %vm1093, 0.0, %v1006
          %v1099 = vsel %vm1093, 0.0, %v1008
          %v1100 = vsel %vm1093, 0.0, %v1010
          %v1101 = vsel %vm1093, 0.0, %v1012
          %v1102 = vsel %vm1093, 0.0, %v1014
          %v1103 = vsel %vm1093, 0.0, %v1016
          %v1104 = vsel %vm1093, 0.0, %v1018
          %v1105 = vsel %vm1093, 0.0, %v1020
          %v1106 = vsel %vm1093, 0.0, %v1022
          %v1107 = vsel %vm1093, 0.0, %v1024
          %v1108 = vsel %vm1093, 0.0, %v1026
          %v1109 = vsel %vm1093, 0.0, %v1028
          %v1110 = vsel %vm1093, 0.0, %v1030
          %v1111 = vsel %vm1093, 0.0, %v1032
          %v1112 = vsel %vm1093, 0.0, %v1034
          %v1113 = vsel %vm1093, 0.0, %v1036
          %v1114 = vsel %vm1093, 0.0, %v1038
          %v1115 = vsel %vm1093, 0.0, %v1040
          %v1116 = vsel %vm1093, 0.0, %v1042
          %v1117 = vsel %vm1093, 0.0, %v1044
          %v1118 = vsel %vm1093, 0.0, %v1046
          %v1119 = vsel %vm1093, 0.0, %v1048
          %v1120 = vsel %vm1093, 0.0, %v1050
          %v1121 = vsel %vm1093, 0.0, %v1052
          %v1122 = vsel %vm1093, 0.0, %v1054
          %v1123 = vsel %vm1093, 0.0, %v1056
          %v1124 = vsel %vm1093, 0.0, %v1058
          %v1125 = vsel %vm1093, 0.0, %v1060
          %vm1126 = vcmp.ge.s32.totalorder %v361, 0
          %vm1127 = vcmp.lt.s32.totalorder %v361, 8
          %vm1128 = vmand %vm1126, %vm1127
          %vm1129 = vmand %vm1128, %vm528
          %vm1130 = vmand %vm1129, %vm530
          %v1131 = vsel %vm1130, 1, 0
          %vm1132 = vcmp.eq.s32.totalorder %v1131, 1
          %v1133 = vsel %vm1132, %v1094, 0.0
          %v1134 = vsel %vm1132, %v1095, 0.0
          %v1135 = vsel %vm1132, %v1096, 0.0
          %v1136 = vsel %vm1132, %v1097, 0.0
          %v1137 = vsel %vm1132, %v1098, 0.0
          %v1138 = vsel %vm1132, %v1099, 0.0
          %v1139 = vsel %vm1132, %v1100, 0.0
          %v1140 = vsel %vm1132, %v1101, 0.0
          %v1141 = vsel %vm1132, %v1102, 0.0
          %v1142 = vsel %vm1132, %v1103, 0.0
          %v1143 = vsel %vm1132, %v1104, 0.0
          %v1144 = vsel %vm1132, %v1105, 0.0
          %v1145 = vsel %vm1132, %v1106, 0.0
          %v1146 = vsel %vm1132, %v1107, 0.0
          %v1147 = vsel %vm1132, %v1108, 0.0
          %v1148 = vsel %vm1132, %v1109, 0.0
          %v1149 = vsel %vm1132, %v1110, 0.0
          %v1150 = vsel %vm1132, %v1111, 0.0
          %v1151 = vsel %vm1132, %v1112, 0.0
          %v1152 = vsel %vm1132, %v1113, 0.0
          %v1153 = vsel %vm1132, %v1114, 0.0
          %v1154 = vsel %vm1132, %v1115, 0.0
          %v1155 = vsel %vm1132, %v1116, 0.0
          %v1156 = vsel %vm1132, %v1117, 0.0
          %v1157 = vsel %vm1132, %v1118, 0.0
          %v1158 = vsel %vm1132, %v1119, 0.0
          %v1159 = vsel %vm1132, %v1120, 0.0
          %v1160 = vsel %vm1132, %v1121, 0.0
          %v1161 = vsel %vm1132, %v1122, 0.0
          %v1162 = vsel %vm1132, %v1123, 0.0
          %v1163 = vsel %vm1132, %v1124, 0.0
          %v1164 = vsel %vm1132, %v1125, 0.0
          %1165 = vst [vmem:[#allocation2 + $0x300] sm:$0xff] %v1133
          %1166 = vst [vmem:[#allocation2 + $0x308] sm:$0xff] %v1134
          %1167 = vst [vmem:[#allocation2 + $0x310] sm:$0xff] %v1135
          %1168 = vst [vmem:[#allocation2 + $0x318] sm:$0xff] %v1136
          %1169 = vst [vmem:[#allocation2 + $0x320] sm:$0xff] %v1137
          %1170 = vst [vmem:[#allocation2 + $0x328] sm:$0xff] %v1138
          %1171 = vst [vmem:[#allocation2 + $0x330] sm:$0xff] %v1139
          %1172 = vst [vmem:[#allocation2 + $0x338] sm:$0xff] %v1140
          %1173 = vst [vmem:[#allocation2 + $0x340] sm:$0xff] %v1141
          %1174 = vst [vmem:[#allocation2 + $0x348] sm:$0xff] %v1142
          %1175 = vst [vmem:[#allocation2 + $0x350] sm:$0xff] %v1143
          %1176 = vst [vmem:[#allocation2 + $0x358] sm:$0xff] %v1144
          %1177 = vst [vmem:[#allocation2 + $0x360] sm:$0xff] %v1145
          %1178 = vst [vmem:[#allocation2 + $0x368] sm:$0xff] %v1146
          %1179 = vst [vmem:[#allocation2 + $0x370] sm:$0xff] %v1147
          %1180 = vst [vmem:[#allocation2 + $0x378] sm:$0xff] %v1148
          %1181 = vst [vmem:[#allocation2 + $0x380] sm:$0xff] %v1149
          %1182 = vst [vmem:[#allocation2 + $0x388] sm:$0xff] %v1150
          %1183 = vst [vmem:[#allocation2 + $0x390] sm:$0xff] %v1151
          %1184 = vst [vmem:[#allocation2 + $0x398] sm:$0xff] %v1152
          %1185 = vst [vmem:[#allocation2 + $0x3a0] sm:$0xff] %v1153
          %1186 = vst [vmem:[#allocation2 + $0x3a8] sm:$0xff] %v1154
          %1187 = vst [vmem:[#allocation2 + $0x3b0] sm:$0xff] %v1155
          %1188 = vst [vmem:[#allocation2 + $0x3b8] sm:$0xff] %v1156
          %1189 = vst [vmem:[#allocation2 + $0x3c0] sm:$0xff] %v1157
          %1190 = vst [vmem:[#allocation2 + $0x3c8] sm:$0xff] %v1158
          %1191 = vst [vmem:[#allocation2 + $0x3d0] sm:$0xff] %v1159
          %1192 = vst [vmem:[#allocation2 + $0x3d8] sm:$0xff] %v1160
          %1193 = vst [vmem:[#allocation2 + $0x3e0] sm:$0xff] %v1161
          %1194 = vst [vmem:[#allocation2 + $0x3e8] sm:$0xff] %v1162
          %1195 = vst [vmem:[#allocation2 + $0x3f0] sm:$0xff] %v1163
          %1196 = vst [vmem:[#allocation2 + $0x3f8] sm:$0xff] %v1164
          %vm1197 = vmand %vm1128, %vm727
          %vm1198 = vmand %vm1197, %vm729
          %v1199 = vsel %vm1198, 1, 0
          %vm1200 = vcmp.eq.s32.totalorder %v1199, 1
          %v1201 = vsel %vm1200, %v325, 0.0
          %v1202 = vsel %vm1200, %v326, 0.0
          %v1203 = vsel %vm1200, %v327, 0.0
          %v1204 = vsel %vm1200, %v328, 0.0
          %v1205 = vsel %vm1200, %v329, 0.0
          %v1206 = vsel %vm1200, %v330, 0.0
          %v1207 = vsel %vm1200, %v331, 0.0
          %v1208 = vsel %vm1200, %v332, 0.0
          %v1209 = vsel %vm1200, %v333, 0.0
          %v1210 = vsel %vm1200, %v334, 0.0
          %v1211 = vsel %vm1200, %v335, 0.0
          %v1212 = vsel %vm1200, %v336, 0.0
          %v1213 = vsel %vm1200, %v337, 0.0
          %v1214 = vsel %vm1200, %v338, 0.0
          %v1215 = vsel %vm1200, %v339, 0.0
          %v1216 = vsel %vm1200, %v340, 0.0
          %v1217 = vsel %vm1200, %v341, 0.0
          %v1218 = vsel %vm1200, %v342, 0.0
          %v1219 = vsel %vm1200, %v343, 0.0
          %v1220 = vsel %vm1200, %v344, 0.0
          %v1221 = vsel %vm1200, %v345, 0.0
          %v1222 = vsel %vm1200, %v346, 0.0
          %v1223 = vsel %vm1200, %v347, 0.0
          %v1224 = vsel %vm1200, %v348, 0.0
          %v1225 = vsel %vm1200, %v349, 0.0
          %v1226 = vsel %vm1200, %v350, 0.0
          %v1227 = vsel %vm1200, %v351, 0.0
          %v1228 = vsel %vm1200, %v352, 0.0
          %v1229 = vsel %vm1200, %v353, 0.0
          %v1230 = vsel %vm1200, %v354, 0.0
          %v1231 = vsel %vm1200, %v355, 0.0
          %v1232 = vsel %vm1200, %v356, 0.0
          %1233 = vst [vmem:[#allocation2 + $0x400] sm:$0xff] %v1201
          %1234 = vst [vmem:[#allocation2 + $0x408] sm:$0xff] %v1202
          %1235 = vst [vmem:[#allocation2 + $0x410] sm:$0xff] %v1203
          %1236 = vst [vmem:[#allocation2 + $0x418] sm:$0xff] %v1204
          %1237 = vst [vmem:[#allocation2 + $0x420] sm:$0xff] %v1205
          %1238 = vst [vmem:[#allocation2 + $0x428] sm:$0xff] %v1206
          %1239 = vst [vmem:[#allocation2 + $0x430] sm:$0xff] %v1207
          %1240 = vst [vmem:[#allocation2 + $0x438] sm:$0xff] %v1208
          %1241 = vst [vmem:[#allocation2 + $0x440] sm:$0xff] %v1209
          %1242 = vst [vmem:[#allocation2 + $0x448] sm:$0xff] %v1210
          %1243 = vst [vmem:[#allocation2 + $0x450] sm:$0xff] %v1211
          %1244 = vst [vmem:[#allocation2 + $0x458] sm:$0xff] %v1212
          %1245 = vst [vmem:[#allocation2 + $0x460] sm:$0xff] %v1213
          %1246 = vst [vmem:[#allocation2 + $0x468] sm:$0xff] %v1214
          %1247 = vst [vmem:[#allocation2 + $0x470] sm:$0xff] %v1215
          %1248 = vst [vmem:[#allocation2 + $0x478] sm:$0xff] %v1216
          %1249 = vst [vmem:[#allocation2 + $0x480] sm:$0xff] %v1217
          %1250 = vst [vmem:[#allocation2 + $0x488] sm:$0xff] %v1218
          %1251 = vst [vmem:[#allocation2 + $0x490] sm:$0xff] %v1219
          %1252 = vst [vmem:[#allocation2 + $0x498] sm:$0xff] %v1220
          %1253 = vst [vmem:[#allocation2 + $0x4a0] sm:$0xff] %v1221
          %1254 = vst [vmem:[#allocation2 + $0x4a8] sm:$0xff] %v1222
          %1255 = vst [vmem:[#allocation2 + $0x4b0] sm:$0xff] %v1223
          %1256 = vst [vmem:[#allocation2 + $0x4b8] sm:$0xff] %v1224
          %1257 = vst [vmem:[#allocation2 + $0x4c0] sm:$0xff] %v1225
          %1258 = vst [vmem:[#allocation2 + $0x4c8] sm:$0xff] %v1226
          %1259 = vst [vmem:[#allocation2 + $0x4d0] sm:$0xff] %v1227
          %1260 = vst [vmem:[#allocation2 + $0x4d8] sm:$0xff] %v1228
          %1261 = vst [vmem:[#allocation2 + $0x4e0] sm:$0xff] %v1229
          %1262 = vst [vmem:[#allocation2 + $0x4e8] sm:$0xff] %v1230
          %1263 = vst [vmem:[#allocation2 + $0x4f0] sm:$0xff] %v1231
          %1264 = vst [vmem:[#allocation2 + $0x4f8] sm:$0xff] %v1232
          %1265 = vrot.lane.b32.xlu0 %v325, 127
          %v1266 = vpop.permute.xlu0 %1265
          %1267 = vrot.lane.b32.xlu0 %v326, 127
          %v1268 = vpop.permute.xlu0 %1267
          %1269 = vrot.lane.b32.xlu0 %v327, 127
          %v1270 = vpop.permute.xlu0 %1269
          %1271 = vrot.lane.b32.xlu0 %v328, 127
          %v1272 = vpop.permute.xlu0 %1271
          %1273 = vrot.lane.b32.xlu0 %v329, 127
          %v1274 = vpop.permute.xlu0 %1273
          %1275 = vrot.lane.b32.xlu0 %v330, 127
          %v1276 = vpop.permute.xlu0 %1275
          %1277 = vrot.lane.b32.xlu0 %v331, 127
          %v1278 = vpop.permute.xlu0 %1277
          %1279 = vrot.lane.b32.xlu0 %v332, 127
          %v1280 = vpop.permute.xlu0 %1279
          %1281 = vrot.lane.b32.xlu0 %v333, 127
          %v1282 = vpop.permute.xlu0 %1281
          %1283 = vrot.lane.b32.xlu0 %v334, 127
          %v1284 = vpop.permute.xlu0 %1283
          %1285 = vrot.lane.b32.xlu0 %v335, 127
          %v1286 = vpop.permute.xlu0 %1285
          %1287 = vrot.lane.b32.xlu0 %v336, 127
          %v1288 = vpop.permute.xlu0 %1287
          %1289 = vrot.lane.b32.xlu0 %v337, 127
          %v1290 = vpop.permute.xlu0 %1289
          %1291 = vrot.lane.b32.xlu0 %v338, 127
          %v1292 = vpop.permute.xlu0 %1291
          %1293 = vrot.lane.b32.xlu0 %v339, 127
          %v1294 = vpop.permute.xlu0 %1293
          %1295 = vrot.lane.b32.xlu0 %v340, 127
          %v1296 = vpop.permute.xlu0 %1295
          %1297 = vrot.lane.b32.xlu0 %v341, 127
          %v1298 = vpop.permute.xlu0 %1297
          %1299 = vrot.lane.b32.xlu0 %v342, 127
          %v1300 = vpop.permute.xlu0 %1299
          %1301 = vrot.lane.b32.xlu0 %v343, 127
          %v1302 = vpop.permute.xlu0 %1301
          %1303 = vrot.lane.b32.xlu0 %v344, 127
          %v1304 = vpop.permute.xlu0 %1303
          %1305 = vrot.lane.b32.xlu0 %v345, 127
          %v1306 = vpop.permute.xlu0 %1305
          %1307 = vrot.lane.b32.xlu0 %v346, 127
          %v1308 = vpop.permute.xlu0 %1307
          %1309 = vrot.lane.b32.xlu0 %v347, 127
          %v1310 = vpop.permute.xlu0 %1309
          %1311 = vrot.lane.b32.xlu0 %v348, 127
          %v1312 = vpop.permute.xlu0 %1311
          %1313 = vrot.lane.b32.xlu0 %v349, 127
          %v1314 = vpop.permute.xlu0 %1313
          %1315 = vrot.lane.b32.xlu0 %v350, 127
          %v1316 = vpop.permute.xlu0 %1315
          %1317 = vrot.lane.b32.xlu0 %v351, 127
          %v1318 = vpop.permute.xlu0 %1317
          %1319 = vrot.lane.b32.xlu0 %v352, 127
          %v1320 = vpop.permute.xlu0 %1319
          %1321 = vrot.lane.b32.xlu0 %v353, 127
          %v1322 = vpop.permute.xlu0 %1321
          %1323 = vrot.lane.b32.xlu0 %v354, 127
          %v1324 = vpop.permute.xlu0 %1323
          %1325 = vrot.lane.b32.xlu0 %v355, 127
          %v1326 = vpop.permute.xlu0 %1325
          %1327 = vrot.lane.b32.xlu0 %v356, 127
          %v1328 = vpop.permute.xlu0 %1327
          %vm1361 = vcmask 1039360
          %v1362 = vsel %vm1361, %v1266, 0.0
          %v1363 = vsel %vm1361, %v1268, 0.0
          %v1364 = vsel %vm1361, %v1270, 0.0
          %v1365 = vsel %vm1361, %v1272, 0.0
          %v1366 = vsel %vm1361, %v1274, 0.0
          %v1367 = vsel %vm1361, %v1276, 0.0
          %v1368 = vsel %vm1361, %v1278, 0.0
          %v1369 = vsel %vm1361, %v1280, 0.0
          %v1370 = vsel %vm1361, %v1282, 0.0
          %v1371 = vsel %vm1361, %v1284, 0.0
          %v1372 = vsel %vm1361, %v1286, 0.0
          %v1373 = vsel %vm1361, %v1288, 0.0
          %v1374 = vsel %vm1361, %v1290, 0.0
          %v1375 = vsel %vm1361, %v1292, 0.0
          %v1376 = vsel %vm1361, %v1294, 0.0
          %v1377 = vsel %vm1361, %v1296, 0.0
          %v1378 = vsel %vm1361, %v1298, 0.0
          %v1379 = vsel %vm1361, %v1300, 0.0
          %v1380 = vsel %vm1361, %v1302, 0.0
          %v1381 = vsel %vm1361, %v1304, 0.0
          %v1382 = vsel %vm1361, %v1306, 0.0
          %v1383 = vsel %vm1361, %v1308, 0.0
          %v1384 = vsel %vm1361, %v1310, 0.0
          %v1385 = vsel %vm1361, %v1312, 0.0
          %v1386 = vsel %vm1361, %v1314, 0.0
          %v1387 = vsel %vm1361, %v1316, 0.0
          %v1388 = vsel %vm1361, %v1318, 0.0
          %v1389 = vsel %vm1361, %v1320, 0.0
          %v1390 = vsel %vm1361, %v1322, 0.0
          %v1391 = vsel %vm1361, %v1324, 0.0
          %v1392 = vsel %vm1361, %v1326, 0.0
          %v1393 = vsel %vm1361, %v1328, 0.0
          %vm1394 = vmand %vm1128, %vm927
          %vm1395 = vmand %vm1394, %vm929
          %v1396 = vsel %vm1395, 1, 0
          %vm1397 = vcmp.eq.s32.totalorder %v1396, 1
          %v1398 = vsel %vm1397, %v1362, 0.0
          %v1399 = vsel %vm1397, %v1363, 0.0
          %v1400 = vsel %vm1397, %v1364, 0.0
          %v1401 = vsel %vm1397, %v1365, 0.0
          %v1402 = vsel %vm1397, %v1366, 0.0
          %v1403 = vsel %vm1397, %v1367, 0.0
          %v1404 = vsel %vm1397, %v1368, 0.0
          %v1405 = vsel %vm1397, %v1369, 0.0
          %v1406 = vsel %vm1397, %v1370, 0.0
          %v1407 = vsel %vm1397, %v1371, 0.0
          %v1408 = vsel %vm1397, %v1372, 0.0
          %v1409 = vsel %vm1397, %v1373, 0.0
          %v1410 = vsel %vm1397, %v1374, 0.0
          %v1411 = vsel %vm1397, %v1375, 0.0
          %v1412 = vsel %vm1397, %v1376, 0.0
          %v1413 = vsel %vm1397, %v1377, 0.0
          %v1414 = vsel %vm1397, %v1378, 0.0
          %v1415 = vsel %vm1397, %v1379, 0.0
          %v1416 = vsel %vm1397, %v1380, 0.0
          %v1417 = vsel %vm1397, %v1381, 0.0
          %v1418 = vsel %vm1397, %v1382, 0.0
          %v1419 = vsel %vm1397, %v1383, 0.0
          %v1420 = vsel %vm1397, %v1384, 0.0
          %v1421 = vsel %vm1397, %v1385, 0.0
          %v1422 = vsel %vm1397, %v1386, 0.0
          %v1423 = vsel %vm1397, %v1387, 0.0
          %v1424 = vsel %vm1397, %v1388, 0.0
          %v1425 = vsel %vm1397, %v1389, 0.0
          %v1426 = vsel %vm1397, %v1390, 0.0
          %v1427 = vsel %vm1397, %v1391, 0.0
          %v1428 = vsel %vm1397, %v1392, 0.0
          %v1429 = vsel %vm1397, %v1393, 0.0
          %1430 = vst [vmem:[#allocation2 + $0x500] sm:$0xff] %v1398
          %1431 = vst [vmem:[#allocation2 + $0x508] sm:$0xff] %v1399
          %1432 = vst [vmem:[#allocation2 + $0x510] sm:$0xff] %v1400
          %1433 = vst [vmem:[#allocation2 + $0x518] sm:$0xff] %v1401
          %1434 = vst [vmem:[#allocation2 + $0x520] sm:$0xff] %v1402
          %1435 = vst [vmem:[#allocation2 + $0x528] sm:$0xff] %v1403
          %1436 = vst [vmem:[#allocation2 + $0x530] sm:$0xff] %v1404
          %1437 = vst [vmem:[#allocation2 + $0x538] sm:$0xff] %v1405
          %1438 = vst [vmem:[#allocation2 + $0x540] sm:$0xff] %v1406
          %1439 = vst [vmem:[#allocation2 + $0x548] sm:$0xff] %v1407
          %1440 = vst [vmem:[#allocation2 + $0x550] sm:$0xff] %v1408
          %1441 = vst [vmem:[#allocation2 + $0x558] sm:$0xff] %v1409
          %1442 = vst [vmem:[#allocation2 + $0x560] sm:$0xff] %v1410
          %1443 = vst [vmem:[#allocation2 + $0x568] sm:$0xff] %v1411
          %1444 = vst [vmem:[#allocation2 + $0x570] sm:$0xff] %v1412
          %1445 = vst [vmem:[#allocation2 + $0x578] sm:$0xff] %v1413
          %1446 = vst [vmem:[#allocation2 + $0x580] sm:$0xff] %v1414
          %1447 = vst [vmem:[#allocation2 + $0x588] sm:$0xff] %v1415
          %1448 = vst [vmem:[#allocation2 + $0x590] sm:$0xff] %v1416
          %1449 = vst [vmem:[#allocation2 + $0x598] sm:$0xff] %v1417
          %1450 = vst [vmem:[#allocation2 + $0x5a0] sm:$0xff] %v1418
          %1451 = vst [vmem:[#allocation2 + $0x5a8] sm:$0xff] %v1419
          %1452 = vst [vmem:[#allocation2 + $0x5b0] sm:$0xff] %v1420
          %1453 = vst [vmem:[#allocation2 + $0x5b8] sm:$0xff] %v1421
          %1454 = vst [vmem:[#allocation2 + $0x5c0] sm:$0xff] %v1422
          %1455 = vst [vmem:[#allocation2 + $0x5c8] sm:$0xff] %v1423
          %1456 = vst [vmem:[#allocation2 + $0x5d0] sm:$0xff] %v1424
          %1457 = vst [vmem:[#allocation2 + $0x5d8] sm:$0xff] %v1425
          %1458 = vst [vmem:[#allocation2 + $0x5e0] sm:$0xff] %v1426
          %1459 = vst [vmem:[#allocation2 + $0x5e8] sm:$0xff] %v1427
          %1460 = vst [vmem:[#allocation2 + $0x5f0] sm:$0xff] %v1428
          %1461 = vst [vmem:[#allocation2 + $0x5f8] sm:$0xff] %v1429
          %1462 = vrot.lane.b32.xlu0 %v325, 121
          %v1463 = vpop.permute.xlu0 %1462
          %1464 = vrot.lane.b32.xlu0 %v326, 121
          %v1465 = vpop.permute.xlu0 %1464
          %1466 = vrot.lane.b32.xlu0 %v327, 121
          %v1467 = vpop.permute.xlu0 %1466
          %1468 = vrot.lane.b32.xlu0 %v328, 121
          %v1469 = vpop.permute.xlu0 %1468
          %1470 = vrot.lane.b32.xlu0 %v329, 121
          %v1471 = vpop.permute.xlu0 %1470
          %1472 = vrot.lane.b32.xlu0 %v330, 121
          %v1473 = vpop.permute.xlu0 %1472
          %1474 = vrot.lane.b32.xlu0 %v331, 121
          %v1475 = vpop.permute.xlu0 %1474
          %1476 = vrot.lane.b32.xlu0 %v332, 121
          %v1477 = vpop.permute.xlu0 %1476
          %1478 = vrot.lane.b32.xlu0 %v333, 121
          %v1479 = vpop.permute.xlu0 %1478
          %1480 = vrot.lane.b32.xlu0 %v334, 121
          %v1481 = vpop.permute.xlu0 %1480
          %1482 = vrot.lane.b32.xlu0 %v335, 121
          %v1483 = vpop.permute.xlu0 %1482
          %1484 = vrot.lane.b32.xlu0 %v336, 121
          %v1485 = vpop.permute.xlu0 %1484
          %1486 = vrot.lane.b32.xlu0 %v337, 121
          %v1487 = vpop.permute.xlu0 %1486
          %1488 = vrot.lane.b32.xlu0 %v338, 121
          %v1489 = vpop.permute.xlu0 %1488
          %1490 = vrot.lane.b32.xlu0 %v339, 121
          %v1491 = vpop.permute.xlu0 %1490
          %1492 = vrot.lane.b32.xlu0 %v340, 121
          %v1493 = vpop.permute.xlu0 %1492
          %1494 = vrot.lane.b32.xlu0 %v341, 121
          %v1495 = vpop.permute.xlu0 %1494
          %1496 = vrot.lane.b32.xlu0 %v342, 121
          %v1497 = vpop.permute.xlu0 %1496
          %1498 = vrot.lane.b32.xlu0 %v343, 121
          %v1499 = vpop.permute.xlu0 %1498
          %1500 = vrot.lane.b32.xlu0 %v344, 121
          %v1501 = vpop.permute.xlu0 %1500
          %1502 = vrot.lane.b32.xlu0 %v345, 121
          %v1503 = vpop.permute.xlu0 %1502
          %1504 = vrot.lane.b32.xlu0 %v346, 121
          %v1505 = vpop.permute.xlu0 %1504
          %1506 = vrot.lane.b32.xlu0 %v347, 121
          %v1507 = vpop.permute.xlu0 %1506
          %1508 = vrot.lane.b32.xlu0 %v348, 121
          %v1509 = vpop.permute.xlu0 %1508
          %1510 = vrot.lane.b32.xlu0 %v349, 121
          %v1511 = vpop.permute.xlu0 %1510
          %1512 = vrot.lane.b32.xlu0 %v350, 121
          %v1513 = vpop.permute.xlu0 %1512
          %1514 = vrot.lane.b32.xlu0 %v351, 121
          %v1515 = vpop.permute.xlu0 %1514
          %1516 = vrot.lane.b32.xlu0 %v352, 121
          %v1517 = vpop.permute.xlu0 %1516
          %1518 = vrot.lane.b32.xlu0 %v353, 121
          %v1519 = vpop.permute.xlu0 %1518
          %1520 = vrot.lane.b32.xlu0 %v354, 121
          %v1521 = vpop.permute.xlu0 %1520
          %1522 = vrot.lane.b32.xlu0 %v355, 121
          %v1523 = vpop.permute.xlu0 %1522
          %1524 = vrot.lane.b32.xlu0 %v356, 121
          %v1525 = vpop.permute.xlu0 %1524
          %vm1558 = vcmask 990208
          %v1559 = vsel %vm1558, %v1463, 0.0
          %v1560 = vsel %vm1558, %v1465, 0.0
          %v1561 = vsel %vm1558, %v1467, 0.0
          %v1562 = vsel %vm1558, %v1469, 0.0
          %v1563 = vsel %vm1558, %v1471, 0.0
          %v1564 = vsel %vm1558, %v1473, 0.0
          %v1565 = vsel %vm1558, %v1475, 0.0
          %v1566 = vsel %vm1558, %v1477, 0.0
          %v1567 = vsel %vm1558, %v1479, 0.0
          %v1568 = vsel %vm1558, %v1481, 0.0
          %v1569 = vsel %vm1558, %v1483, 0.0
          %v1570 = vsel %vm1558, %v1485, 0.0
          %v1571 = vsel %vm1558, %v1487, 0.0
          %v1572 = vsel %vm1558, %v1489, 0.0
          %v1573 = vsel %vm1558, %v1491, 0.0
          %v1574 = vsel %vm1558, %v1493, 0.0
          %v1575 = vsel %vm1558, %v1495, 0.0
          %v1576 = vsel %vm1558, %v1497, 0.0
          %v1577 = vsel %vm1558, %v1499, 0.0
          %v1578 = vsel %vm1558, %v1501, 0.0
          %v1579 = vsel %vm1558, %v1503, 0.0
          %v1580 = vsel %vm1558, %v1505, 0.0
          %v1581 = vsel %vm1558, %v1507, 0.0
          %v1582 = vsel %vm1558, %v1509, 0.0
          %v1583 = vsel %vm1558, %v1511, 0.0
          %v1584 = vsel %vm1558, %v1513, 0.0
          %v1585 = vsel %vm1558, %v1515, 0.0
          %v1586 = vsel %vm1558, %v1517, 0.0
          %v1587 = vsel %vm1558, %v1519, 0.0
          %v1588 = vsel %vm1558, %v1521, 0.0
          %v1589 = vsel %vm1558, %v1523, 0.0
          %v1590 = vsel %vm1558, %v1525, 0.0
          %v1591 = vadd.s32 %v361, 1
          %vm1592 = vcmp.ge.s32.totalorder %v1591, 0
          %vm1593 = vcmp.lt.s32.totalorder %v1591, 8
          %vm1594 = vmand %vm1592, %vm1593
          %vm1595 = vmand %vm1594, %vm528
          %vm1596 = vmand %vm1595, %vm530
          %v1597 = vsel %vm1596, 1, 0
          %vm1598 = vcmp.eq.s32.totalorder %v1597, 1
          %v1599 = vsel %vm1598, %v1559, 0.0
          %v1600 = vsel %vm1598, %v1560, 0.0
          %v1601 = vsel %vm1598, %v1561, 0.0
          %v1602 = vsel %vm1598, %v1562, 0.0
          %v1603 = vsel %vm1598, %v1563, 0.0
          %v1604 = vsel %vm1598, %v1564, 0.0
          %v1605 = vsel %vm1598, %v1565, 0.0
          %v1606 = vsel %vm1598, %v1566, 0.0
          %v1607 = vsel %vm1598, %v1567, 0.0
          %v1608 = vsel %vm1598, %v1568, 0.0
          %v1609 = vsel %vm1598, %v1569, 0.0
          %v1610 = vsel %vm1598, %v1570, 0.0
          %v1611 = vsel %vm1598, %v1571, 0.0
          %v1612 = vsel %vm1598, %v1572, 0.0
          %v1613 = vsel %vm1598, %v1573, 0.0
          %v1614 = vsel %vm1598, %v1574, 0.0
          %v1615 = vsel %vm1598, %v1575, 0.0
          %v1616 = vsel %vm1598, %v1576, 0.0
          %v1617 = vsel %vm1598, %v1577, 0.0
          %v1618 = vsel %vm1598, %v1578, 0.0
          %v1619 = vsel %vm1598, %v1579, 0.0
          %v1620 = vsel %vm1598, %v1580, 0.0
          %v1621 = vsel %vm1598, %v1581, 0.0
          %v1622 = vsel %vm1598, %v1582, 0.0
          %v1623 = vsel %vm1598, %v1583, 0.0
          %v1624 = vsel %vm1598, %v1584, 0.0
          %v1625 = vsel %vm1598, %v1585, 0.0
          %v1626 = vsel %vm1598, %v1586, 0.0
          %v1627 = vsel %vm1598, %v1587, 0.0
          %v1628 = vsel %vm1598, %v1588, 0.0
          %v1629 = vsel %vm1598, %v1589, 0.0
          %v1630 = vsel %vm1598, %v1590, 0.0
          %1631 = vst [vmem:[#allocation2 + $0x600] sm:$0xff] %v1599
          %1632 = vst [vmem:[#allocation2 + $0x608] sm:$0xff] %v1600
          %1633 = vst [vmem:[#allocation2 + $0x610] sm:$0xff] %v1601
          %1634 = vst [vmem:[#allocation2 + $0x618] sm:$0xff] %v1602
          %1635 = vst [vmem:[#allocation2 + $0x620] sm:$0xff] %v1603
          %1636 = vst [vmem:[#allocation2 + $0x628] sm:$0xff] %v1604
          %1637 = vst [vmem:[#allocation2 + $0x630] sm:$0xff] %v1605
          %1638 = vst [vmem:[#allocation2 + $0x638] sm:$0xff] %v1606
          %1639 = vst [vmem:[#allocation2 + $0x640] sm:$0xff] %v1607
          %1640 = vst [vmem:[#allocation2 + $0x648] sm:$0xff] %v1608
          %1641 = vst [vmem:[#allocation2 + $0x650] sm:$0xff] %v1609
          %1642 = vst [vmem:[#allocation2 + $0x658] sm:$0xff] %v1610
          %1643 = vst [vmem:[#allocation2 + $0x660] sm:$0xff] %v1611
          %1644 = vst [vmem:[#allocation2 + $0x668] sm:$0xff] %v1612
          %1645 = vst [vmem:[#allocation2 + $0x670] sm:$0xff] %v1613
          %1646 = vst [vmem:[#allocation2 + $0x678] sm:$0xff] %v1614
          %1647 = vst [vmem:[#allocation2 + $0x680] sm:$0xff] %v1615
          %1648 = vst [vmem:[#allocation2 + $0x688] sm:$0xff] %v1616
          %1649 = vst [vmem:[#allocation2 + $0x690] sm:$0xff] %v1617
          %1650 = vst [vmem:[#allocation2 + $0x698] sm:$0xff] %v1618
          %1651 = vst [vmem:[#allocation2 + $0x6a0] sm:$0xff] %v1619
          %1652 = vst [vmem:[#allocation2 + $0x6a8] sm:$0xff] %v1620
          %1653 = vst [vmem:[#allocation2 + $0x6b0] sm:$0xff] %v1621
          %1654 = vst [vmem:[#allocation2 + $0x6b8] sm:$0xff] %v1622
          %1655 = vst [vmem:[#allocation2 + $0x6c0] sm:$0xff] %v1623
          %1656 = vst [vmem:[#allocation2 + $0x6c8] sm:$0xff] %v1624
          %1657 = vst [vmem:[#allocation2 + $0x6d0] sm:$0xff] %v1625
          %1658 = vst [vmem:[#allocation2 + $0x6d8] sm:$0xff] %v1626
          %1659 = vst [vmem:[#allocation2 + $0x6e0] sm:$0xff] %v1627
          %1660 = vst [vmem:[#allocation2 + $0x6e8] sm:$0xff] %v1628
          %1661 = vst [vmem:[#allocation2 + $0x6f0] sm:$0xff] %v1629
          %1662 = vst [vmem:[#allocation2 + $0x6f8] sm:$0xff] %v1630
          %1663 = vrot.lane.b32.xlu0 %v325, 120
          %v1664 = vpop.permute.xlu0 %1663
          %1665 = vrot.lane.b32.xlu0 %v326, 120
          %v1666 = vpop.permute.xlu0 %1665
          %1667 = vrot.lane.b32.xlu0 %v327, 120
          %v1668 = vpop.permute.xlu0 %1667
          %1669 = vrot.lane.b32.xlu0 %v328, 120
          %v1670 = vpop.permute.xlu0 %1669
          %1671 = vrot.lane.b32.xlu0 %v329, 120
          %v1672 = vpop.permute.xlu0 %1671
          %1673 = vrot.lane.b32.xlu0 %v330, 120
          %v1674 = vpop.permute.xlu0 %1673
          %1675 = vrot.lane.b32.xlu0 %v331, 120
          %v1676 = vpop.permute.xlu0 %1675
          %1677 = vrot.lane.b32.xlu0 %v332, 120
          %v1678 = vpop.permute.xlu0 %1677
          %1679 = vrot.lane.b32.xlu0 %v333, 120
          %v1680 = vpop.permute.xlu0 %1679
          %1681 = vrot.lane.b32.xlu0 %v334, 120
          %v1682 = vpop.permute.xlu0 %1681
          %1683 = vrot.lane.b32.xlu0 %v335, 120
          %v1684 = vpop.permute.xlu0 %1683
          %1685 = vrot.lane.b32.xlu0 %v336, 120
          %v1686 = vpop.permute.xlu0 %1685
          %1687 = vrot.lane.b32.xlu0 %v337, 120
          %v1688 = vpop.permute.xlu0 %1687
          %1689 = vrot.lane.b32.xlu0 %v338, 120
          %v1690 = vpop.permute.xlu0 %1689
          %1691 = vrot.lane.b32.xlu0 %v339, 120
          %v1692 = vpop.permute.xlu0 %1691
          %1693 = vrot.lane.b32.xlu0 %v340, 120
          %v1694 = vpop.permute.xlu0 %1693
          %1695 = vrot.lane.b32.xlu0 %v341, 120
          %v1696 = vpop.permute.xlu0 %1695
          %1697 = vrot.lane.b32.xlu0 %v342, 120
          %v1698 = vpop.permute.xlu0 %1697
          %1699 = vrot.lane.b32.xlu0 %v343, 120
          %v1700 = vpop.permute.xlu0 %1699
          %1701 = vrot.lane.b32.xlu0 %v344, 120
          %v1702 = vpop.permute.xlu0 %1701
          %1703 = vrot.lane.b32.xlu0 %v345, 120
          %v1704 = vpop.permute.xlu0 %1703
          %1705 = vrot.lane.b32.xlu0 %v346, 120
          %v1706 = vpop.permute.xlu0 %1705
          %1707 = vrot.lane.b32.xlu0 %v347, 120
          %v1708 = vpop.permute.xlu0 %1707
          %1709 = vrot.lane.b32.xlu0 %v348, 120
          %v1710 = vpop.permute.xlu0 %1709
          %1711 = vrot.lane.b32.xlu0 %v349, 120
          %v1712 = vpop.permute.xlu0 %1711
          %1713 = vrot.lane.b32.xlu0 %v350, 120
          %v1714 = vpop.permute.xlu0 %1713
          %1715 = vrot.lane.b32.xlu0 %v351, 120
          %v1716 = vpop.permute.xlu0 %1715
          %1717 = vrot.lane.b32.xlu0 %v352, 120
          %v1718 = vpop.permute.xlu0 %1717
          %1719 = vrot.lane.b32.xlu0 %v353, 120
          %v1720 = vpop.permute.xlu0 %1719
          %1721 = vrot.lane.b32.xlu0 %v354, 120
          %v1722 = vpop.permute.xlu0 %1721
          %1723 = vrot.lane.b32.xlu0 %v355, 120
          %v1724 = vpop.permute.xlu0 %1723
          %1725 = vrot.lane.b32.xlu0 %v356, 120
          %v1726 = vpop.permute.xlu0 %1725
          %vm1759 = vcmask 982016
          %v1760 = vsel %vm1759, %v1664, 0.0
          %v1761 = vsel %vm1759, %v1666, 0.0
          %v1762 = vsel %vm1759, %v1668, 0.0
          %v1763 = vsel %vm1759, %v1670, 0.0
          %v1764 = vsel %vm1759, %v1672, 0.0
          %v1765 = vsel %vm1759, %v1674, 0.0
          %v1766 = vsel %vm1759, %v1676, 0.0
          %v1767 = vsel %vm1759, %v1678, 0.0
          %v1768 = vsel %vm1759, %v1680, 0.0
          %v1769 = vsel %vm1759, %v1682, 0.0
          %v1770 = vsel %vm1759, %v1684, 0.0
          %v1771 = vsel %vm1759, %v1686, 0.0
          %v1772 = vsel %vm1759, %v1688, 0.0
          %v1773 = vsel %vm1759, %v1690, 0.0
          %v1774 = vsel %vm1759, %v1692, 0.0
          %v1775 = vsel %vm1759, %v1694, 0.0
          %v1776 = vsel %vm1759, %v1696, 0.0
          %v1777 = vsel %vm1759, %v1698, 0.0
          %v1778 = vsel %vm1759, %v1700, 0.0
          %v1779 = vsel %vm1759, %v1702, 0.0
          %v1780 = vsel %vm1759, %v1704, 0.0
          %v1781 = vsel %vm1759, %v1706, 0.0
          %v1782 = vsel %vm1759, %v1708, 0.0
          %v1783 = vsel %vm1759, %v1710, 0.0
          %v1784 = vsel %vm1759, %v1712, 0.0
          %v1785 = vsel %vm1759, %v1714, 0.0
          %v1786 = vsel %vm1759, %v1716, 0.0
          %v1787 = vsel %vm1759, %v1718, 0.0
          %v1788 = vsel %vm1759, %v1720, 0.0
          %v1789 = vsel %vm1759, %v1722, 0.0
          %v1790 = vsel %vm1759, %v1724, 0.0
          %v1791 = vsel %vm1759, %v1726, 0.0
          %vm1792 = vmand %vm1594, %vm727
          %vm1793 = vmand %vm1792, %vm729
          %v1794 = vsel %vm1793, 1, 0
          %vm1795 = vcmp.eq.s32.totalorder %v1794, 1
          %v1796 = vsel %vm1795, %v1760, 0.0
          %v1797 = vsel %vm1795, %v1761, 0.0
          %v1798 = vsel %vm1795, %v1762, 0.0
          %v1799 = vsel %vm1795, %v1763, 0.0
          %v1800 = vsel %vm1795, %v1764, 0.0
          %v1801 = vsel %vm1795, %v1765, 0.0
          %v1802 = vsel %vm1795, %v1766, 0.0
          %v1803 = vsel %vm1795, %v1767, 0.0
          %v1804 = vsel %vm1795, %v1768, 0.0
          %v1805 = vsel %vm1795, %v1769, 0.0
          %v1806 = vsel %vm1795, %v1770, 0.0
          %v1807 = vsel %vm1795, %v1771, 0.0
          %v1808 = vsel %vm1795, %v1772, 0.0
          %v1809 = vsel %vm1795, %v1773, 0.0
          %v1810 = vsel %vm1795, %v1774, 0.0
          %v1811 = vsel %vm1795, %v1775, 0.0
          %v1812 = vsel %vm1795, %v1776, 0.0
          %v1813 = vsel %vm1795, %v1777, 0.0
          %v1814 = vsel %vm1795, %v1778, 0.0
          %v1815 = vsel %vm1795, %v1779, 0.0
          %v1816 = vsel %vm1795, %v1780, 0.0
          %v1817 = vsel %vm1795, %v1781, 0.0
          %v1818 = vsel %vm1795, %v1782, 0.0
          %v1819 = vsel %vm1795, %v1783, 0.0
          %v1820 = vsel %vm1795, %v1784, 0.0
          %v1821 = vsel %vm1795, %v1785, 0.0
          %v1822 = vsel %vm1795, %v1786, 0.0
          %v1823 = vsel %vm1795, %v1787, 0.0
          %v1824 = vsel %vm1795, %v1788, 0.0
          %v1825 = vsel %vm1795, %v1789, 0.0
          %v1826 = vsel %vm1795, %v1790, 0.0
          %v1827 = vsel %vm1795, %v1791, 0.0
          %1828 = vst [vmem:[#allocation2 + $0x700] sm:$0xff] %v1796
          %1829 = vst [vmem:[#allocation2 + $0x708] sm:$0xff] %v1797
          %1830 = vst [vmem:[#allocation2 + $0x710] sm:$0xff] %v1798
          %1831 = vst [vmem:[#allocation2 + $0x718] sm:$0xff] %v1799
          %1832 = vst [vmem:[#allocation2 + $0x720] sm:$0xff] %v1800
          %1833 = vst [vmem:[#allocation2 + $0x728] sm:$0xff] %v1801
          %1834 = vst [vmem:[#allocation2 + $0x730] sm:$0xff] %v1802
          %1835 = vst [vmem:[#allocation2 + $0x738] sm:$0xff] %v1803
          %1836 = vst [vmem:[#allocation2 + $0x740] sm:$0xff] %v1804
          %1837 = vst [vmem:[#allocation2 + $0x748] sm:$0xff] %v1805
          %1838 = vst [vmem:[#allocation2 + $0x750] sm:$0xff] %v1806
          %1839 = vst [vmem:[#allocation2 + $0x758] sm:$0xff] %v1807
          %1840 = vst [vmem:[#allocation2 + $0x760] sm:$0xff] %v1808
          %1841 = vst [vmem:[#allocation2 + $0x768] sm:$0xff] %v1809
          %1842 = vst [vmem:[#allocation2 + $0x770] sm:$0xff] %v1810
          %1843 = vst [vmem:[#allocation2 + $0x778] sm:$0xff] %v1811
          %1844 = vst [vmem:[#allocation2 + $0x780] sm:$0xff] %v1812
          %1845 = vst [vmem:[#allocation2 + $0x788] sm:$0xff] %v1813
          %1846 = vst [vmem:[#allocation2 + $0x790] sm:$0xff] %v1814
          %1847 = vst [vmem:[#allocation2 + $0x798] sm:$0xff] %v1815
          %1848 = vst [vmem:[#allocation2 + $0x7a0] sm:$0xff] %v1816
          %1849 = vst [vmem:[#allocation2 + $0x7a8] sm:$0xff] %v1817
          %1850 = vst [vmem:[#allocation2 + $0x7b0] sm:$0xff] %v1818
          %1851 = vst [vmem:[#allocation2 + $0x7b8] sm:$0xff] %v1819
          %1852 = vst [vmem:[#allocation2 + $0x7c0] sm:$0xff] %v1820
          %1853 = vst [vmem:[#allocation2 + $0x7c8] sm:$0xff] %v1821
          %1854 = vst [vmem:[#allocation2 + $0x7d0] sm:$0xff] %v1822
          %1855 = vst [vmem:[#allocation2 + $0x7d8] sm:$0xff] %v1823
          %1856 = vst [vmem:[#allocation2 + $0x7e0] sm:$0xff] %v1824
          %1857 = vst [vmem:[#allocation2 + $0x7e8] sm:$0xff] %v1825
          %1858 = vst [vmem:[#allocation2 + $0x7f0] sm:$0xff] %v1826
          %1859 = vst [vmem:[#allocation2 + $0x7f8] sm:$0xff] %v1827
          %1860 = vrot.lane.b32.xlu0 %v325, 119
          %v1861 = vpop.permute.xlu0 %1860
          %1862 = vrot.lane.b32.xlu0 %v326, 119
          %v1863 = vpop.permute.xlu0 %1862
          %1864 = vrot.lane.b32.xlu0 %v327, 119
          %v1865 = vpop.permute.xlu0 %1864
          %1866 = vrot.lane.b32.xlu0 %v328, 119
          %v1867 = vpop.permute.xlu0 %1866
          %1868 = vrot.lane.b32.xlu0 %v329, 119
          %v1869 = vpop.permute.xlu0 %1868
          %1870 = vrot.lane.b32.xlu0 %v330, 119
          %v1871 = vpop.permute.xlu0 %1870
          %1872 = vrot.lane.b32.xlu0 %v331, 119
          %v1873 = vpop.permute.xlu0 %1872
          %1874 = vrot.lane.b32.xlu0 %v332, 119
          %v1875 = vpop.permute.xlu0 %1874
          %1876 = vrot.lane.b32.xlu0 %v333, 119
          %v1877 = vpop.permute.xlu0 %1876
          %1878 = vrot.lane.b32.xlu0 %v334, 119
          %v1879 = vpop.permute.xlu0 %1878
          %1880 = vrot.lane.b32.xlu0 %v335, 119
          %v1881 = vpop.permute.xlu0 %1880
          %1882 = vrot.lane.b32.xlu0 %v336, 119
          %v1883 = vpop.permute.xlu0 %1882
          %1884 = vrot.lane.b32.xlu0 %v337, 119
          %v1885 = vpop.permute.xlu0 %1884
          %1886 = vrot.lane.b32.xlu0 %v338, 119
          %v1887 = vpop.permute.xlu0 %1886
          %1888 = vrot.lane.b32.xlu0 %v339, 119
          %v1889 = vpop.permute.xlu0 %1888
          %1890 = vrot.lane.b32.xlu0 %v340, 119
          %v1891 = vpop.permute.xlu0 %1890
          %1892 = vrot.lane.b32.xlu0 %v341, 119
          %v1893 = vpop.permute.xlu0 %1892
          %1894 = vrot.lane.b32.xlu0 %v342, 119
          %v1895 = vpop.permute.xlu0 %1894
          %1896 = vrot.lane.b32.xlu0 %v343, 119
          %v1897 = vpop.permute.xlu0 %1896
          %1898 = vrot.lane.b32.xlu0 %v344, 119
          %v1899 = vpop.permute.xlu0 %1898
          %1900 = vrot.lane.b32.xlu0 %v345, 119
          %v1901 = vpop.permute.xlu0 %1900
          %1902 = vrot.lane.b32.xlu0 %v346, 119
          %v1903 = vpop.permute.xlu0 %1902
          %1904 = vrot.lane.b32.xlu0 %v347, 119
          %v1905 = vpop.permute.xlu0 %1904
          %1906 = vrot.lane.b32.xlu0 %v348, 119
          %v1907 = vpop.permute.xlu0 %1906
          %1908 = vrot.lane.b32.xlu0 %v349, 119
          %v1909 = vpop.permute.xlu0 %1908
          %1910 = vrot.lane.b32.xlu0 %v350, 119
          %v1911 = vpop.permute.xlu0 %1910
          %1912 = vrot.lane.b32.xlu0 %v351, 119
          %v1913 = vpop.permute.xlu0 %1912
          %1914 = vrot.lane.b32.xlu0 %v352, 119
          %v1915 = vpop.permute.xlu0 %1914
          %1916 = vrot.lane.b32.xlu0 %v353, 119
          %v1917 = vpop.permute.xlu0 %1916
          %1918 = vrot.lane.b32.xlu0 %v354, 119
          %v1919 = vpop.permute.xlu0 %1918
          %1920 = vrot.lane.b32.xlu0 %v355, 119
          %v1921 = vpop.permute.xlu0 %1920
          %1922 = vrot.lane.b32.xlu0 %v356, 119
          %v1923 = vpop.permute.xlu0 %1922
          %vm1956 = vcmask 973824
          %v1957 = vsel %vm1956, %v1861, 0.0
          %v1958 = vsel %vm1956, %v1863, 0.0
          %v1959 = vsel %vm1956, %v1865, 0.0
          %v1960 = vsel %vm1956, %v1867, 0.0
          %v1961 = vsel %vm1956, %v1869, 0.0
          %v1962 = vsel %vm1956, %v1871, 0.0
          %v1963 = vsel %vm1956, %v1873, 0.0
          %v1964 = vsel %vm1956, %v1875, 0.0
          %v1965 = vsel %vm1956, %v1877, 0.0
          %v1966 = vsel %vm1956, %v1879, 0.0
          %v1967 = vsel %vm1956, %v1881, 0.0
          %v1968 = vsel %vm1956, %v1883, 0.0
          %v1969 = vsel %vm1956, %v1885, 0.0
          %v1970 = vsel %vm1956, %v1887, 0.0
          %v1971 = vsel %vm1956, %v1889, 0.0
          %v1972 = vsel %vm1956, %v1891, 0.0
          %v1973 = vsel %vm1956, %v1893, 0.0
          %v1974 = vsel %vm1956, %v1895, 0.0
          %v1975 = vsel %vm1956, %v1897, 0.0
          %v1976 = vsel %vm1956, %v1899, 0.0
          %v1977 = vsel %vm1956, %v1901, 0.0
          %v1978 = vsel %vm1956, %v1903, 0.0
          %v1979 = vsel %vm1956, %v1905, 0.0
          %v1980 = vsel %vm1956, %v1907, 0.0
          %v1981 = vsel %vm1956, %v1909, 0.0
          %v1982 = vsel %vm1956, %v1911, 0.0
          %v1983 = vsel %vm1956, %v1913, 0.0
          %v1984 = vsel %vm1956, %v1915, 0.0
          %v1985 = vsel %vm1956, %v1917, 0.0
          %v1986 = vsel %vm1956, %v1919, 0.0
          %v1987 = vsel %vm1956, %v1921, 0.0
          %v1988 = vsel %vm1956, %v1923, 0.0
          %vm1989 = vmand %vm1594, %vm927
          %vm1990 = vmand %vm1989, %vm929
          %v1991 = vsel %vm1990, 1, 0
          %vm1992 = vcmp.eq.s32.totalorder %v1991, 1
          %v1993 = vsel %vm1992, %v1957, 0.0
          %v1994 = vsel %vm1992, %v1958, 0.0
          %v1995 = vsel %vm1992, %v1959, 0.0
          %v1996 = vsel %vm1992, %v1960, 0.0
          %v1997 = vsel %vm1992, %v1961, 0.0
          %v1998 = vsel %vm1992, %v1962, 0.0
          %v1999 = vsel %vm1992, %v1963, 0.0
          %v2000 = vsel %vm1992, %v1964, 0.0
          %v2001 = vsel %vm1992, %v1965, 0.0
          %v2002 = vsel %vm1992, %v1966, 0.0
          %v2003 = vsel %vm1992, %v1967, 0.0
          %v2004 = vsel %vm1992, %v1968, 0.0
          %v2005 = vsel %vm1992, %v1969, 0.0
          %v2006 = vsel %vm1992, %v1970, 0.0
          %v2007 = vsel %vm1992, %v1971, 0.0
          %v2008 = vsel %vm1992, %v1972, 0.0
          %v2009 = vsel %vm1992, %v1973, 0.0
          %v2010 = vsel %vm1992, %v1974, 0.0
          %v2011 = vsel %vm1992, %v1975, 0.0
          %v2012 = vsel %vm1992, %v1976, 0.0
          %v2013 = vsel %vm1992, %v1977, 0.0
          %v2014 = vsel %vm1992, %v1978, 0.0
          %v2015 = vsel %vm1992, %v1979, 0.0
          %v2016 = vsel %vm1992, %v1980, 0.0
          %v2017 = vsel %vm1992, %v1981, 0.0
          %v2018 = vsel %vm1992, %v1982, 0.0
          %v2019 = vsel %vm1992, %v1983, 0.0
          %v2020 = vsel %vm1992, %v1984, 0.0
          %v2021 = vsel %vm1992, %v1985, 0.0
          %v2022 = vsel %vm1992, %v1986, 0.0
          %v2023 = vsel %vm1992, %v1987, 0.0
          %v2024 = vsel %vm1992, %v1988, 0.0
          %2025 = vst [vmem:[#allocation2 + $0x800] sm:$0xff] %v1993
          %2026 = vst [vmem:[#allocation2 + $0x808] sm:$0xff] %v1994
          %2027 = vst [vmem:[#allocation2 + $0x810] sm:$0xff] %v1995
          %2028 = vst [vmem:[#allocation2 + $0x818] sm:$0xff] %v1996
          %2029 = vst [vmem:[#allocation2 + $0x820] sm:$0xff] %v1997
          %2030 = vst [vmem:[#allocation2 + $0x828] sm:$0xff] %v1998
          %2031 = vst [vmem:[#allocation2 + $0x830] sm:$0xff] %v1999
          %2032 = vst [vmem:[#allocation2 + $0x838] sm:$0xff] %v2000
          %2033 = vst [vmem:[#allocation2 + $0x840] sm:$0xff] %v2001
          %2034 = vst [vmem:[#allocation2 + $0x848] sm:$0xff] %v2002
          %2035 = vst [vmem:[#allocation2 + $0x850] sm:$0xff] %v2003
          %2036 = vst [vmem:[#allocation2 + $0x858] sm:$0xff] %v2004
          %2037 = vst [vmem:[#allocation2 + $0x860] sm:$0xff] %v2005
          %2038 = vst [vmem:[#allocation2 + $0x868] sm:$0xff] %v2006
          %2039 = vst [vmem:[#allocation2 + $0x870] sm:$0xff] %v2007
          %2040 = vst [vmem:[#allocation2 + $0x878] sm:$0xff] %v2008
          %2041 = vst [vmem:[#allocation2 + $0x880] sm:$0xff] %v2009
          %2042 = vst [vmem:[#allocation2 + $0x888] sm:$0xff] %v2010
          %2043 = vst [vmem:[#allocation2 + $0x890] sm:$0xff] %v2011
          %2044 = vst [vmem:[#allocation2 + $0x898] sm:$0xff] %v2012
          %2045 = vst [vmem:[#allocation2 + $0x8a0] sm:$0xff] %v2013
          %2046 = vst [vmem:[#allocation2 + $0x8a8] sm:$0xff] %v2014
          %2047 = vst [vmem:[#allocation2 + $0x8b0] sm:$0xff] %v2015
          %2048 = vst [vmem:[#allocation2 + $0x8b8] sm:$0xff] %v2016
          %2049 = vst [vmem:[#allocation2 + $0x8c0] sm:$0xff] %v2017
          %2050 = vst [vmem:[#allocation2 + $0x8c8] sm:$0xff] %v2018
          %2051 = vst [vmem:[#allocation2 + $0x8d0] sm:$0xff] %v2019
          %2052 = vst [vmem:[#allocation2 + $0x8d8] sm:$0xff] %v2020
          %2053 = vst [vmem:[#allocation2 + $0x8e0] sm:$0xff] %v2021
          %2054 = vst [vmem:[#allocation2 + $0x8e8] sm:$0xff] %v2022
          %2055 = vst [vmem:[#allocation2 + $0x8f0] sm:$0xff] %v2023
          %2056 = vst [vmem:[#allocation2 + $0x8f8] sm:$0xff] %v2024
          %v2057 = vlaneseq
          %v2058 = vshrl.u32 %v2057, 7
          %v2059 = vadd.s32 %v2058, 8
          %v2060 = vadd.s32 %v2058, 16
          %v2061 = vadd.s32 %v2058, 24
          %v2062 = vadd.s32 %v2058, 32
          %v2063 = vadd.s32 %v2058, 40
          %v2064 = vadd.s32 %v2058, 48
          %v2065 = vadd.s32 %v2058, 56
          %v2066 = vadd.s32 %v2058, 64
          %v2067 = vadd.s32 %v2058, 72
          %v2068 = vadd.s32 %v2058, 80
          %v2069 = vadd.s32 %v2058, 88
          %v2070 = vadd.s32 %v2058, 96
          %v2071 = vadd.s32 %v2058, 104
          %v2072 = vadd.s32 %v2058, 112
          %v2073 = vadd.s32 %v2058, 120
          %vm2074 = vcmp.eq.s32.totalorder %v2058, 0
          %vm2075 = vcmp.eq.s32.totalorder %v2059, 0
          %vm2076 = vcmp.eq.s32.totalorder %v2060, 0
          %vm2077 = vcmp.eq.s32.totalorder %v2061, 0
          %vm2078 = vcmp.eq.s32.totalorder %v2062, 0
          %vm2079 = vcmp.eq.s32.totalorder %v2063, 0
          %vm2080 = vcmp.eq.s32.totalorder %v2064, 0
          %vm2081 = vcmp.eq.s32.totalorder %v2065, 0
          %vm2082 = vcmp.eq.s32.totalorder %v2066, 0
          %vm2083 = vcmp.eq.s32.totalorder %v2067, 0
          %vm2084 = vcmp.eq.s32.totalorder %v2068, 0
          %vm2085 = vcmp.eq.s32.totalorder %v2069, 0
          %vm2086 = vcmp.eq.s32.totalorder %v2070, 0
          %vm2087 = vcmp.eq.s32.totalorder %v2071, 0
          %vm2088 = vcmp.eq.s32.totalorder %v2072, 0
          %vm2089 = vcmp.eq.s32.totalorder %v2073, 0
          %v2090 = vsel %vm2074, 1.0, 0.0
          %v2091 = vsel %vm2075, 1.0, 0.0
          %v2092 = vsel %vm2076, 1.0, 0.0
          %v2093 = vsel %vm2077, 1.0, 0.0
          %v2094 = vsel %vm2078, 1.0, 0.0
          %v2095 = vsel %vm2079, 1.0, 0.0
          %v2096 = vsel %vm2080, 1.0, 0.0
          %v2097 = vsel %vm2081, 1.0, 0.0
          %v2098 = vsel %vm2082, 1.0, 0.0
          %v2099 = vsel %vm2083, 1.0, 0.0
          %v2100 = vsel %vm2084, 1.0, 0.0
          %v2101 = vsel %vm2085, 1.0, 0.0
          %v2102 = vsel %vm2086, 1.0, 0.0
          %v2103 = vsel %vm2087, 1.0, 0.0
          %v2104 = vsel %vm2088, 1.0, 0.0
          %v2105 = vsel %vm2089, 1.0, 0.0
          %2106 = vst [vmem:[#allocation2 + $0x900] sm:$0xff] %v2090
          %2107 = vst [vmem:[#allocation2 + $0x908] sm:$0xff] %v2091
          %2108 = vst [vmem:[#allocation2 + $0x910] sm:$0xff] %v2092
          %2109 = vst [vmem:[#allocation2 + $0x918] sm:$0xff] %v2093
          %2110 = vst [vmem:[#allocation2 + $0x920] sm:$0xff] %v2094
          %2111 = vst [vmem:[#allocation2 + $0x928] sm:$0xff] %v2095
          %2112 = vst [vmem:[#allocation2 + $0x930] sm:$0xff] %v2096
          %2113 = vst [vmem:[#allocation2 + $0x938] sm:$0xff] %v2097
          %2114 = vst [vmem:[#allocation2 + $0x940] sm:$0xff] %v2098
          %2115 = vst [vmem:[#allocation2 + $0x948] sm:$0xff] %v2099
          %2116 = vst [vmem:[#allocation2 + $0x950] sm:$0xff] %v2100
          %2117 = vst [vmem:[#allocation2 + $0x958] sm:$0xff] %v2101
          %2118 = vst [vmem:[#allocation2 + $0x960] sm:$0xff] %v2102
          %2119 = vst [vmem:[#allocation2 + $0x968] sm:$0xff] %v2103
          %2120 = vst [vmem:[#allocation2 + $0x970] sm:$0xff] %v2104
          %2121 = vst [vmem:[#allocation2 + $0x978] sm:$0xff] %v2105
          %v2122 = vld [vmem:[%s3] sm:$0xff]
          %v2123 = vld [vmem:[%s3 + $0x8] sm:$0xff]
          %v2124 = vld [vmem:[%s3 + $0x10] sm:$0xff]
          %v2125 = vld [vmem:[%s3 + $0x18] sm:$0xff]
          %v2126 = vld [vmem:[%s3 + $0x20] sm:$0xff]
          %v2127 = vld [vmem:[%s3 + $0x28] sm:$0xff]
          %2129 = vset.pattern.permute.xlu0 0
          %2130 = vperm.xlu0 %2129, %v2122
          %v2131 = vpop.permute.xlu0 %2130
          %2134 = vset.pattern.permute.xlu0 0
          %2135 = vperm.xlu0 %2134, %v2123
          %v2136 = vpop.permute.xlu0 %2135
          %2139 = vset.pattern.permute.xlu0 0
          %2140 = vperm.xlu0 %2139, %v2124
          %v2141 = vpop.permute.xlu0 %2140
          %2144 = vset.pattern.permute.xlu0 0
          %2145 = vperm.xlu0 %2144, %v2125
          %v2146 = vpop.permute.xlu0 %2145
          %2149 = vset.pattern.permute.xlu0 0
          %2150 = vperm.xlu0 %2149, %v2126
          %v2151 = vpop.permute.xlu0 %2150
          %2154 = vset.pattern.permute.xlu0 0
          %2155 = vperm.xlu0 %2154, %v2127
          %v2156 = vpop.permute.xlu0 %2155
          %2158 = vst [vmem:[#allocation3] sm:$0xff] %v2131
          %2159 = vst [vmem:[#allocation3 + $0x8] sm:$0xff] %v2136
          %2160 = vst [vmem:[#allocation3 + $0x10] sm:$0xff] %v2141
          %2161 = vst [vmem:[#allocation3 + $0x18] sm:$0xff] %v2146
          %2162 = vst [vmem:[#allocation3 + $0x20] sm:$0xff] %v2151
          %2163 = vst [vmem:[#allocation3 + $0x28] sm:$0xff] %v2156
        $region85: #{faster_rcnn_forward.1} parent=76 // pred_fallthru
          _
        %v2164 = vld [vmem:[%s319] sm:$0xff]
        %v2165 = vld [vmem:[%s319 + $0x8] sm:$0xff]
        %v2166 = vld [vmem:[%s319 + $0x10] sm:$0xff]
        %v2167 = vld [vmem:[%s319 + $0x18] sm:$0xff]
        %v2168 = vld [vmem:[%s319 + $0x20] sm:$0xff]
        %v2169 = vld [vmem:[%s319 + $0x28] sm:$0xff]
        %v2170 = vld [vmem:[%s319 + $0x30] sm:$0xff]
        %v2171 = vld [vmem:[%s319 + $0x38] sm:$0xff]
        %v2172 = vld [vmem:[%s319 + $0x40] sm:$0xff]
        %v2173 = vld [vmem:[%s319 + $0x48] sm:$0xf]
        %v2174 = vld [vmem:[%s319 + $0x4c] sm:$0xff]
        %v2175 = vld [vmem:[%s319 + $0x54] sm:$0xff]
        %v2176 = vld [vmem:[%s319 + $0x5c] sm:$0xff]
        %v2177 = vld [vmem:[%s319 + $0x64] sm:$0xff]
        %v2178 = vld [vmem:[%s319 + $0x6c] sm:$0xff]
        %v2179 = vld [vmem:[%s319 + $0x74] sm:$0xff]
        %v2180 = vld [vmem:[%s319 + $0x7c] sm:$0xff]
        %v2181 = vld [vmem:[%s319 + $0x84] sm:$0xff]
        %v2182 = vld [vmem:[%s319 + $0x8c] sm:$0xff]
        %v2183 = vld [vmem:[%s319 + $0x94] sm:$0xf]
        %v2184 = vld [vmem:[%s319 + $0x98] sm:$0xff]
        %v2185 = vld [vmem:[%s319 + $0xa0] sm:$0xff]
        %v2186 = vld [vmem:[%s319 + $0xa8] sm:$0xff]
        %v2187 = vld [vmem:[%s319 + $0xb0] sm:$0xff]
        %v2188 = vld [vmem:[%s319 + $0xb8] sm:$0xff]
        %v2189 = vld [vmem:[%s319 + $0xc0] sm:$0xff]
        %v2190 = vld [vmem:[%s319 + $0xc8] sm:$0xff]
        %v2191 = vld [vmem:[%s319 + $0xd0] sm:$0xff]
        %v2192 = vld [vmem:[%s319 + $0xd8] sm:$0xff]
        %v2193 = vld [vmem:[%s319 + $0xe0] sm:$0xf]
        %v2194 = vld [vmem:[%s319 + $0xe4] sm:$0xff]
        %v2195 = vld [vmem:[%s319 + $0xec] sm:$0xff]
        %v2196 = vld [vmem:[%s319 + $0xf4] sm:$0xff]
        %v2197 = vld [vmem:[%s319 + $0xfc] sm:$0xff]
        %v2198 = vld [vmem:[%s319 + $0x104] sm:$0xff]
        %v2199 = vld [vmem:[%s319 + $0x10c] sm:$0xff]
        %v2200 = vld [vmem:[%s319 + $0x114] sm:$0xff]
        %v2201 = vld [vmem:[%s319 + $0x11c] sm:$0xff]
        %v2202 = vld [vmem:[%s319 + $0x124] sm:$0xff]
        %v2203 = vld [vmem:[%s319 + $0x12c] sm:$0xf]
        %v2204 = vld [vmem:[%s319 + $0x130] sm:$0xff]
        %v2205 = vld [vmem:[%s319 + $0x138] sm:$0xff]
        %v2206 = vld [vmem:[%s319 + $0x140] sm:$0xff]
        %v2207 = vld [vmem:[%s319 + $0x148] sm:$0xff]
        %v2208 = vld [vmem:[%s319 + $0x150] sm:$0xff]
        %v2209 = vld [vmem:[%s319 + $0x158] sm:$0xff]
        %v2210 = vld [vmem:[%s319 + $0x160] sm:$0xff]
        %v2211 = vld [vmem:[%s319 + $0x168] sm:$0xff]
        %v2212 = vld [vmem:[%s319 + $0x170] sm:$0xff]
        %v2213 = vld [vmem:[%s319 + $0x178] sm:$0xf]
        %v2214 = vld [vmem:[%s319 + $0x17c] sm:$0xff]
        %v2215 = vld [vmem:[%s319 + $0x184] sm:$0xff]
        %v2216 = vld [vmem:[%s319 + $0x18c] sm:$0xff]
        %v2217 = vld [vmem:[%s319 + $0x194] sm:$0xff]
        %v2218 = vld [vmem:[%s319 + $0x19c] sm:$0xff]
        %v2219 = vld [vmem:[%s319 + $0x1a4] sm:$0xff]
        %v2220 = vld [vmem:[%s319 + $0x1ac] sm:$0xff]
        %v2221 = vld [vmem:[%s319 + $0x1b4] sm:$0xff]
        %v2222 = vld [vmem:[%s319 + $0x1bc] sm:$0xff]
        %v2223 = vld [vmem:[%s319 + $0x1c4] sm:$0xf]
        %v2224 = vld [vmem:[%s319 + $0x1c8] sm:$0xff]
        %v2225 = vld [vmem:[%s319 + $0x1d0] sm:$0xff]
        %v2226 = vld [vmem:[%s319 + $0x1d8] sm:$0xff]
        %v2227 = vld [vmem:[%s319 + $0x1e0] sm:$0xff]
        %v2228 = vld [vmem:[%s319 + $0x1e8] sm:$0xff]
        %v2229 = vld [vmem:[%s319 + $0x1f0] sm:$0xff]
        %v2230 = vld [vmem:[%s319 + $0x1f8] sm:$0xff]
        %v2231 = vld [vmem:[%s319 + $0x200] sm:$0xff]
        %v2232 = vld [vmem:[%s319 + $0x208] sm:$0xff]
        %v2233 = vld [vmem:[%s319 + $0x210] sm:$0xf]
        %v2234 = vld [vmem:[%s319 + $0x214] sm:$0xff]
        %v2235 = vld [vmem:[%s319 + $0x21c] sm:$0xff]
        %v2236 = vld [vmem:[%s319 + $0x224] sm:$0xff]
        %v2237 = vld [vmem:[%s319 + $0x22c] sm:$0xff]
        %v2238 = vld [vmem:[%s319 + $0x234] sm:$0xff]
        %v2239 = vld [vmem:[%s319 + $0x23c] sm:$0xff]
        %v2240 = vld [vmem:[%s319 + $0x244] sm:$0xff]
        %v2241 = vld [vmem:[%s319 + $0x24c] sm:$0xff]
        %v2242 = vld [vmem:[%s319 + $0x254] sm:$0xff]
        %v2243 = vld [vmem:[%s319 + $0x25c] sm:$0xf]
        %v2244 = vld [vmem:[%s319 + $0x260] sm:$0xff]
        %v2245 = vld [vmem:[%s319 + $0x268] sm:$0xff]
        %v2246 = vld [vmem:[%s319 + $0x270] sm:$0xff]
        %v2247 = vld [vmem:[%s319 + $0x278] sm:$0xff]
        %v2248 = vld [vmem:[%s319 + $0x280] sm:$0xff]
        %v2249 = vld [vmem:[%s319 + $0x288] sm:$0xff]
        %v2250 = vld [vmem:[%s319 + $0x290] sm:$0xff]
        %v2251 = vld [vmem:[%s319 + $0x298] sm:$0xff]
        %v2252 = vld [vmem:[%s319 + $0x2a0] sm:$0xff]
        %v2253 = vld [vmem:[%s319 + $0x2a8] sm:$0xf]
        %v2254 = vld [vmem:[%s319 + $0x2ac] sm:$0xff]
        %v2255 = vld [vmem:[%s319 + $0x2b4] sm:$0xff]
        %v2256 = vld [vmem:[%s319 + $0x2bc] sm:$0xff]
        %v2257 = vld [vmem:[%s319 + $0x2c4] sm:$0xff]
        %v2258 = vld [vmem:[%s319 + $0x2cc] sm:$0xff]
        %v2259 = vld [vmem:[%s319 + $0x2d4] sm:$0xff]
        %v2260 = vld [vmem:[%s319 + $0x2dc] sm:$0xff]
        %v2261 = vld [vmem:[%s319 + $0x2e4] sm:$0xff]
        %v2262 = vld [vmem:[%s319 + $0x2ec] sm:$0xff]
        %v2263 = vld [vmem:[%s319 + $0x2f4] sm:$0xf]
        %v2264 = vld [vmem:[%s319 + $0x2f8] sm:$0xff]
        %v2265 = vld [vmem:[%s319 + $0x300] sm:$0xff]
        %v2266 = vld [vmem:[%s319 + $0x308] sm:$0xff]
        %v2267 = vld [vmem:[%s319 + $0x310] sm:$0xff]
        %v2268 = vld [vmem:[%s319 + $0x318] sm:$0xff]
        %v2269 = vld [vmem:[%s319 + $0x320] sm:$0xff]
        %v2270 = vld [vmem:[%s319 + $0x328] sm:$0xff]
        %v2271 = vld [vmem:[%s319 + $0x330] sm:$0xff]
        %v2272 = vld [vmem:[%s319 + $0x338] sm:$0xff]
        %v2273 = vld [vmem:[%s319 + $0x340] sm:$0xf]
        %v2274 = vld [vmem:[%s319 + $0x344] sm:$0xff]
        %v2275 = vld [vmem:[%s319 + $0x34c] sm:$0xff]
        %v2276 = vld [vmem:[%s319 + $0x354] sm:$0xff]
        %v2277 = vld [vmem:[%s319 + $0x35c] sm:$0xff]
        %v2278 = vld [vmem:[%s319 + $0x364] sm:$0xff]
        %v2279 = vld [vmem:[%s319 + $0x36c] sm:$0xff]
        %v2280 = vld [vmem:[%s319 + $0x374] sm:$0xff]
        %v2281 = vld [vmem:[%s319 + $0x37c] sm:$0xff]
        %v2282 = vld [vmem:[%s319 + $0x384] sm:$0xff]
        %v2283 = vld [vmem:[%s319 + $0x38c] sm:$0xf]
        %v2284 = vld [vmem:[%s319 + $0x390] sm:$0xff]
        %v2285 = vld [vmem:[%s319 + $0x398] sm:$0xff]
        %v2286 = vld [vmem:[%s319 + $0x3a0] sm:$0xff]
        %v2287 = vld [vmem:[%s319 + $0x3a8] sm:$0xff]
        %v2288 = vld [vmem:[%s319 + $0x3b0] sm:$0xff]
        %v2289 = vld [vmem:[%s319 + $0x3b8] sm:$0xff]
        %v2290 = vld [vmem:[%s319 + $0x3c0] sm:$0xff]
        %v2291 = vld [vmem:[%s319 + $0x3c8] sm:$0xff]
        %v2292 = vld [vmem:[%s319 + $0x3d0] sm:$0xff]
        %v2293 = vld [vmem:[%s319 + $0x3d8] sm:$0xf]
        %v2294 = vld [vmem:[%s319 + $0x3dc] sm:$0xff]
        %v2295 = vld [vmem:[%s319 + $0x3e4] sm:$0xff]
        %v2296 = vld [vmem:[%s319 + $0x3ec] sm:$0xff]
        %v2297 = vld [vmem:[%s319 + $0x3f4] sm:$0xff]
        %v2298 = vld [vmem:[%s319 + $0x3fc] sm:$0xff]
        %v2299 = vld [vmem:[%s319 + $0x404] sm:$0xff]
        %v2300 = vld [vmem:[%s319 + $0x40c] sm:$0xff]
        %v2301 = vld [vmem:[%s319 + $0x414] sm:$0xff]
        %v2302 = vld [vmem:[%s319 + $0x41c] sm:$0xff]
        %v2303 = vld [vmem:[%s319 + $0x424] sm:$0xf]
        %v2304 = vld [vmem:[%s319 + $0x428] sm:$0xff]
        %v2305 = vld [vmem:[%s319 + $0x430] sm:$0xff]
        %v2306 = vld [vmem:[%s319 + $0x438] sm:$0xff]
        %v2307 = vld [vmem:[%s319 + $0x440] sm:$0xff]
        %v2308 = vld [vmem:[%s319 + $0x448] sm:$0xff]
        %v2309 = vld [vmem:[%s319 + $0x450] sm:$0xff]
        %v2310 = vld [vmem:[%s319 + $0x458] sm:$0xff]
        %v2311 = vld [vmem:[%s319 + $0x460] sm:$0xff]
        %v2312 = vld [vmem:[%s319 + $0x468] sm:$0xff]
        %v2313 = vld [vmem:[%s319 + $0x470] sm:$0xf]
        %v2314 = vld [vmem:[%s319 + $0x474] sm:$0xff]
        %v2315 = vld [vmem:[%s319 + $0x47c] sm:$0xff]
        %v2316 = vld [vmem:[%s319 + $0x484] sm:$0xff]
        %v2317 = vld [vmem:[%s319 + $0x48c] sm:$0xff]
        %v2318 = vld [vmem:[%s319 + $0x494] sm:$0xff]
        %v2319 = vld [vmem:[%s319 + $0x49c] sm:$0xff]
        %v2320 = vld [vmem:[%s319 + $0x4a4] sm:$0xff]
        %v2321 = vld [vmem:[%s319 + $0x4ac] sm:$0xff]
        %v2322 = vld [vmem:[%s319 + $0x4b4] sm:$0xff]
        %v2323 = vld [vmem:[%s319 + $0x4bc] sm:$0xf]
        %v2324 = vunpack.c.l.bf16 %v2164
        %v2325 = vunpack.c.h.bf16 %v2164
        %v2326 = vunpack.c.l.bf16 %v2165
        %v2327 = vunpack.c.h.bf16 %v2165
        %v2328 = vunpack.c.l.bf16 %v2166
        %v2329 = vunpack.c.h.bf16 %v2166
        %v2330 = vunpack.c.l.bf16 %v2167
        %v2331 = vunpack.c.h.bf16 %v2167
        %v2332 = vunpack.c.l.bf16 %v2168
        %v2333 = vunpack.c.h.bf16 %v2168
        %v2334 = vunpack.c.l.bf16 %v2169
        %v2335 = vunpack.c.h.bf16 %v2169
        %v2336 = vunpack.c.l.bf16 %v2170
        %v2337 = vunpack.c.h.bf16 %v2170
        %v2338 = vunpack.c.l.bf16 %v2171
        %v2339 = vunpack.c.h.bf16 %v2171
        %v2340 = vunpack.c.l.bf16 %v2172
        %v2341 = vunpack.c.h.bf16 %v2172
        %v2342 = vunpack.c.l.bf16 %v2173
        %v2343 = vunpack.c.l.bf16 %v2174
        %v2344 = vunpack.c.h.bf16 %v2174
        %v2345 = vunpack.c.l.bf16 %v2175
        %v2346 = vunpack.c.h.bf16 %v2175
        %v2347 = vunpack.c.l.bf16 %v2176
        %v2348 = vunpack.c.h.bf16 %v2176
        %v2349 = vunpack.c.l.bf16 %v2177
        %v2350 = vunpack.c.h.bf16 %v2177
        %v2351 = vunpack.c.l.bf16 %v2178
        %v2352 = vunpack.c.h.bf16 %v2178
        %v2353 = vunpack.c.l.bf16 %v2179
        %v2354 = vunpack.c.h.bf16 %v2179
        %v2355 = vunpack.c.l.bf16 %v2180
        %v2356 = vunpack.c.h.bf16 %v2180
        %v2357 = vunpack.c.l.bf16 %v2181
        %v2358 = vunpack.c.h.bf16 %v2181
        %v2359 = vunpack.c.l.bf16 %v2182
        %v2360 = vunpack.c.h.bf16 %v2182
        %v2361 = vunpack.c.l.bf16 %v2183
        %v2362 = vunpack.c.l.bf16 %v2184
        %v2363 = vunpack.c.h.bf16 %v2184
        %v2364 = vunpack.c.l.bf16 %v2185
        %v2365 = vunpack.c.h.bf16 %v2185
        %v2366 = vunpack.c.l.bf16 %v2186
        %v2367 = vunpack.c.h.bf16 %v2186
        %v2368 = vunpack.c.l.bf16 %v2187
        %v2369 = vunpack.c.h.bf16 %v2187
        %v2370 = vunpack.c.l.bf16 %v2188
        %v2371 = vunpack.c.h.bf16 %v2188
        %v2372 = vunpack.c.l.bf16 %v2189
        %v2373 = vunpack.c.h.bf16 %v2189
        %v2374 = vunpack.c.l.bf16 %v2190
        %v2375 = vunpack.c.h.bf16 %v2190
        %v2376 = vunpack.c.l.bf16 %v2191
        %v2377 = vunpack.c.h.bf16 %v2191
        %v2378 = vunpack.c.l.bf16 %v2192
        %v2379 = vunpack.c.h.bf16 %v2192
        %v2380 = vunpack.c.l.bf16 %v2193
        %v2381 = vunpack.c.l.bf16 %v2194
        %v2382 = vunpack.c.h.bf16 %v2194
        %v2383 = vunpack.c.l.bf16 %v2195
        %v2384 = vunpack.c.h.bf16 %v2195
        %v2385 = vunpack.c.l.bf16 %v2196
        %v2386 = vunpack.c.h.bf16 %v2196
        %v2387 = vunpack.c.l.bf16 %v2197
        %v2388 = vunpack.c.h.bf16 %v2197
        %v2389 = vunpack.c.l.bf16 %v2198
        %v2390 = vunpack.c.h.bf16 %v2198
        %v2391 = vunpack.c.l.bf16 %v2199
        %v2392 = vunpack.c.h.bf16 %v2199
        %v2393 = vunpack.c.l.bf16 %v2200
        %v2394 = vunpack.c.h.bf16 %v2200
        %v2395 = vunpack.c.l.bf16 %v2201
        %v2396 = vunpack.c.h.bf16 %v2201
        %v2397 = vunpack.c.l.bf16 %v2202
        %v2398 = vunpack.c.h.bf16 %v2202
        %v2399 = vunpack.c.l.bf16 %v2203
        %v2400 = vunpack.c.l.bf16 %v2204
        %v2401 = vunpack.c.h.bf16 %v2204
        %v2402 = vunpack.c.l.bf16 %v2205
        %v2403 = vunpack.c.h.bf16 %v2205
        %v2404 = vunpack.c.l.bf16 %v2206
        %v2405 = vunpack.c.h.bf16 %v2206
        %v2406 = vunpack.c.l.bf16 %v2207
        %v2407 = vunpack.c.h.bf16 %v2207
        %v2408 = vunpack.c.l.bf16 %v2208
        %v2409 = vunpack.c.h.bf16 %v2208
        %v2410 = vunpack.c.l.bf16 %v2209
        %v2411 = vunpack.c.h.bf16 %v2209
        %v2412 = vunpack.c.l.bf16 %v2210
        %v2413 = vunpack.c.h.bf16 %v2210
        %v2414 = vunpack.c.l.bf16 %v2211
        %v2415 = vunpack.c.h.bf16 %v2211
        %v2416 = vunpack.c.l.bf16 %v2212
        %v2417 = vunpack.c.h.bf16 %v2212
        %v2418 = vunpack.c.l.bf16 %v2213
        %v2419 = vunpack.c.l.bf16 %v2214
        %v2420 = vunpack.c.h.bf16 %v2214
        %v2421 = vunpack.c.l.bf16 %v2215
        %v2422 = vunpack.c.h.bf16 %v2215
        %v2423 = vunpack.c.l.bf16 %v2216
        %v2424 = vunpack.c.h.bf16 %v2216
        %v2425 = vunpack.c.l.bf16 %v2217
        %v2426 = vunpack.c.h.bf16 %v2217
        %v2427 = vunpack.c.l.bf16 %v2218
        %v2428 = vunpack.c.h.bf16 %v2218
        %v2429 = vunpack.c.l.bf16 %v2219
        %v2430 = vunpack.c.h.bf16 %v2219
        %v2431 = vunpack.c.l.bf16 %v2220
        %v2432 = vunpack.c.h.bf16 %v2220
        %v2433 = vunpack.c.l.bf16 %v2221
        %v2434 = vunpack.c.h.bf16 %v2221
        %v2435 = vunpack.c.l.bf16 %v2222
        %v2436 = vunpack.c.h.bf16 %v2222
        %v2437 = vunpack.c.l.bf16 %v2223
        %v2438 = vunpack.c.l.bf16 %v2224
        %v2439 = vunpack.c.h.bf16 %v2224
        %v2440 = vunpack.c.l.bf16 %v2225
        %v2441 = vunpack.c.h.bf16 %v2225
        %v2442 = vunpack.c.l.bf16 %v2226
        %v2443 = vunpack.c.h.bf16 %v2226
        %v2444 = vunpack.c.l.bf16 %v2227
        %v2445 = vunpack.c.h.bf16 %v2227
        %v2446 = vunpack.c.l.bf16 %v2228
        %v2447 = vunpack.c.h.bf16 %v2228
        %v2448 = vunpack.c.l.bf16 %v2229
        %v2449 = vunpack.c.h.bf16 %v2229
        %v2450 = vunpack.c.l.bf16 %v2230
        %v2451 = vunpack.c.h.bf16 %v2230
        %v2452 = vunpack.c.l.bf16 %v2231
        %v2453 = vunpack.c.h.bf16 %v2231
        %v2454 = vunpack.c.l.bf16 %v2232
        %v2455 = vunpack.c.h.bf16 %v2232
        %v2456 = vunpack.c.l.bf16 %v2233
        %v2457 = vunpack.c.l.bf16 %v2234
        %v2458 = vunpack.c.h.bf16 %v2234
        %v2459 = vunpack.c.l.bf16 %v2235
        %v2460 = vunpack.c.h.bf16 %v2235
        %v2461 = vunpack.c.l.bf16 %v2236
        %v2462 = vunpack.c.h.bf16 %v2236
        %v2463 = vunpack.c.l.bf16 %v2237
        %v2464 = vunpack.c.h.bf16 %v2237
        %v2465 = vunpack.c.l.bf16 %v2238
        %v2466 = vunpack.c.h.bf16 %v2238
        %v2467 = vunpack.c.l.bf16 %v2239
        %v2468 = vunpack.c.h.bf16 %v2239
        %v2469 = vunpack.c.l.bf16 %v2240
        %v2470 = vunpack.c.h.bf16 %v2240
        %v2471 = vunpack.c.l.bf16 %v2241
        %v2472 = vunpack.c.h.bf16 %v2241
        %v2473 = vunpack.c.l.bf16 %v2242
        %v2474 = vunpack.c.h.bf16 %v2242
        %v2475 = vunpack.c.l.bf16 %v2243
        %v2476 = vunpack.c.l.bf16 %v2244
        %v2477 = vunpack.c.h.bf16 %v2244
        %v2478 = vunpack.c.l.bf16 %v2245
        %v2479 = vunpack.c.h.bf16 %v2245
        %v2480 = vunpack.c.l.bf16 %v2246
        %v2481 = vunpack.c.h.bf16 %v2246
        %v2482 = vunpack.c.l.bf16 %v2247
        %v2483 = vunpack.c.h.bf16 %v2247
        %v2484 = vunpack.c.l.bf16 %v2248
        %v2485 = vunpack.c.h.bf16 %v2248
        %v2486 = vunpack.c.l.bf16 %v2249
        %v2487 = vunpack.c.h.bf16 %v2249
        %v2488 = vunpack.c.l.bf16 %v2250
        %v2489 = vunpack.c.h.bf16 %v2250
        %v2490 = vunpack.c.l.bf16 %v2251
        %v2491 = vunpack.c.h.bf16 %v2251
        %v2492 = vunpack.c.l.bf16 %v2252
        %v2493 = vunpack.c.h.bf16 %v2252
        %v2494 = vunpack.c.l.bf16 %v2253
        %v2495 = vunpack.c.l.bf16 %v2254
        %v2496 = vunpack.c.h.bf16 %v2254
        %v2497 = vunpack.c.l.bf16 %v2255
        %v2498 = vunpack.c.h.bf16 %v2255
        %v2499 = vunpack.c.l.bf16 %v2256
        %v2500 = vunpack.c.h.bf16 %v2256
        %v2501 = vunpack.c.l.bf16 %v2257
        %v2502 = vunpack.c.h.bf16 %v2257
        %v2503 = vunpack.c.l.bf16 %v2258
        %v2504 = vunpack.c.h.bf16 %v2258
        %v2505 = vunpack.c.l.bf16 %v2259
        %v2506 = vunpack.c.h.bf16 %v2259
        %v2507 = vunpack.c.l.bf16 %v2260
        %v2508 = vunpack.c.h.bf16 %v2260
        %v2509 = vunpack.c.l.bf16 %v2261
        %v2510 = vunpack.c.h.bf16 %v2261
        %v2511 = vunpack.c.l.bf16 %v2262
        %v2512 = vunpack.c.h.bf16 %v2262
        %v2513 = vunpack.c.l.bf16 %v2263
        %v2514 = vunpack.c.l.bf16 %v2264
        %v2515 = vunpack.c.h.bf16 %v2264
        %v2516 = vunpack.c.l.bf16 %v2265
        %v2517 = vunpack.c.h.bf16 %v2265
        %v2518 = vunpack.c.l.bf16 %v2266
        %v2519 = vunpack.c.h.bf16 %v2266
        %v2520 = vunpack.c.l.bf16 %v2267
        %v2521 = vunpack.c.h.bf16 %v2267
        %v2522 = vunpack.c.l.bf16 %v2268
        %v2523 = vunpack.c.h.bf16 %v2268
        %v2524 = vunpack.c.l.bf16 %v2269
        %v2525 = vunpack.c.h.bf16 %v2269
        %v2526 = vunpack.c.l.bf16 %v2270
        %v2527 = vunpack.c.h.bf16 %v2270
        %v2528 = vunpack.c.l.bf16 %v2271
        %v2529 = vunpack.c.h.bf16 %v2271
        %v2530 = vunpack.c.l.bf16 %v2272
        %v2531 = vunpack.c.h.bf16 %v2272
        %v2532 = vunpack.c.l.bf16 %v2273
        %v2533 = vunpack.c.l.bf16 %v2274
        %v2534 = vunpack.c.h.bf16 %v2274
        %v2535 = vunpack.c.l.bf16 %v2275
        %v2536 = vunpack.c.h.bf16 %v2275
        %v2537 = vunpack.c.l.bf16 %v2276
        %v2538 = vunpack.c.h.bf16 %v2276
        %v2539 = vunpack.c.l.bf16 %v2277
        %v2540 = vunpack.c.h.bf16 %v2277
        %v2541 = vunpack.c.l.bf16 %v2278
        %v2542 = vunpack.c.h.bf16 %v2278
        %v2543 = vunpack.c.l.bf16 %v2279
        %v2544 = vunpack.c.h.bf16 %v2279
        %v2545 = vunpack.c.l.bf16 %v2280
        %v2546 = vunpack.c.h.bf16 %v2280
        %v2547 = vunpack.c.l.bf16 %v2281
        %v2548 = vunpack.c.h.bf16 %v2281
        %v2549 = vunpack.c.l.bf16 %v2282
        %v2550 = vunpack.c.h.bf16 %v2282
        %v2551 = vunpack.c.l.bf16 %v2283
        %v2552 = vunpack.c.l.bf16 %v2284
        %v2553 = vunpack.c.h.bf16 %v2284
        %v2554 = vunpack.c.l.bf16 %v2285
        %v2555 = vunpack.c.h.bf16 %v2285
        %v2556 = vunpack.c.l.bf16 %v2286
        %v2557 = vunpack.c.h.bf16 %v2286
        %v2558 = vunpack.c.l.bf16 %v2287
        %v2559 = vunpack.c.h.bf16 %v2287
        %v2560 = vunpack.c.l.bf16 %v2288
        %v2561 = vunpack.c.h.bf16 %v2288
        %v2562 = vunpack.c.l.bf16 %v2289
        %v2563 = vunpack.c.h.bf16 %v2289
        %v2564 = vunpack.c.l.bf16 %v2290
        %v2565 = vunpack.c.h.bf16 %v2290
        %v2566 = vunpack.c.l.bf16 %v2291
        %v2567 = vunpack.c.h.bf16 %v2291
        %v2568 = vunpack.c.l.bf16 %v2292
        %v2569 = vunpack.c.h.bf16 %v2292
        %v2570 = vunpack.c.l.bf16 %v2293
        %v2571 = vunpack.c.l.bf16 %v2294
        %v2572 = vunpack.c.h.bf16 %v2294
        %v2573 = vunpack.c.l.bf16 %v2295
        %v2574 = vunpack.c.h.bf16 %v2295
        %v2575 = vunpack.c.l.bf16 %v2296
        %v2576 = vunpack.c.h.bf16 %v2296
        %v2577 = vunpack.c.l.bf16 %v2297
        %v2578 = vunpack.c.h.bf16 %v2297
        %v2579 = vunpack.c.l.bf16 %v2298
        %v2580 = vunpack.c.h.bf16 %v2298
        %v2581 = vunpack.c.l.bf16 %v2299
        %v2582 = vunpack.c.h.bf16 %v2299
        %v2583 = vunpack.c.l.bf16 %v2300
        %v2584 = vunpack.c.h.bf16 %v2300
        %v2585 = vunpack.c.l.bf16 %v2301
        %v2586 = vunpack.c.h.bf16 %v2301
        %v2587 = vunpack.c.l.bf16 %v2302
        %v2588 = vunpack.c.h.bf16 %v2302
        %v2589 = vunpack.c.l.bf16 %v2303
        %v2590 = vunpack.c.l.bf16 %v2304
        %v2591 = vunpack.c.h.bf16 %v2304
        %v2592 = vunpack.c.l.bf16 %v2305
        %v2593 = vunpack.c.h.bf16 %v2305
        %v2594 = vunpack.c.l.bf16 %v2306
        %v2595 = vunpack.c.h.bf16 %v2306
        %v2596 = vunpack.c.l.bf16 %v2307
        %v2597 = vunpack.c.h.bf16 %v2307
        %v2598 = vunpack.c.l.bf16 %v2308
        %v2599 = vunpack.c.h.bf16 %v2308
        %v2600 = vunpack.c.l.bf16 %v2309
        %v2601 = vunpack.c.h.bf16 %v2309
        %v2602 = vunpack.c.l.bf16 %v2310
        %v2603 = vunpack.c.h.bf16 %v2310
        %v2604 = vunpack.c.l.bf16 %v2311
        %v2605 = vunpack.c.h.bf16 %v2311
        %v2606 = vunpack.c.l.bf16 %v2312
        %v2607 = vunpack.c.h.bf16 %v2312
        %v2608 = vunpack.c.l.bf16 %v2313
        %v2609 = vunpack.c.l.bf16 %v2314
        %v2610 = vunpack.c.h.bf16 %v2314
        %v2611 = vunpack.c.l.bf16 %v2315
        %v2612 = vunpack.c.h.bf16 %v2315
        %v2613 = vunpack.c.l.bf16 %v2316
        %v2614 = vunpack.c.h.bf16 %v2316
        %v2615 = vunpack.c.l.bf16 %v2317
        %v2616 = vunpack.c.h.bf16 %v2317
        %v2617 = vunpack.c.l.bf16 %v2318
        %v2618 = vunpack.c.h.bf16 %v2318
        %v2619 = vunpack.c.l.bf16 %v2319
        %v2620 = vunpack.c.h.bf16 %v2319
        %v2621 = vunpack.c.l.bf16 %v2320
        %v2622 = vunpack.c.h.bf16 %v2320
        %v2623 = vunpack.c.l.bf16 %v2321
        %v2624 = vunpack.c.h.bf16 %v2321
        %v2625 = vunpack.c.l.bf16 %v2322
        %v2626 = vunpack.c.h.bf16 %v2322
        %v2627 = vunpack.c.l.bf16 %v2323
        %v2628 = vld [vmem:[#allocation2] sm:$0xff]
        %v2629 = vld [vmem:[#allocation2 + $0x8] sm:$0xff]
        %v2630 = vld [vmem:[#allocation2 + $0x10] sm:$0xff]
        %v2631 = vld [vmem:[#allocation2 + $0x18] sm:$0xff]
        %v2632 = vld [vmem:[#allocation2 + $0x20] sm:$0xff]
        %v2633 = vld [vmem:[#allocation2 + $0x28] sm:$0xff]
        %v2634 = vld [vmem:[#allocation2 + $0x30] sm:$0xff]
        %v2635 = vld [vmem:[#allocation2 + $0x38] sm:$0xff]
        %v2636 = vld [vmem:[#allocation2 + $0x40] sm:$0xff]
        %v2637 = vld [vmem:[#allocation2 + $0x48] sm:$0xff]
        %v2638 = vld [vmem:[#allocation2 + $0x50] sm:$0xff]
        %v2639 = vld [vmem:[#allocation2 + $0x58] sm:$0xff]
        %v2640 = vld [vmem:[#allocation2 + $0x60] sm:$0xff]
        %v2641 = vld [vmem:[#allocation2 + $0x68] sm:$0xff]
        %v2642 = vld [vmem:[#allocation2 + $0x70] sm:$0xff]
        %v2643 = vld [vmem:[#allocation2 + $0x78] sm:$0xff]
        %v2644 = vld [vmem:[#allocation2 + $0x80] sm:$0xff]
        %v2645 = vld [vmem:[#allocation2 + $0x88] sm:$0xff]
        %v2646 = vld [vmem:[#allocation2 + $0x90] sm:$0xff]
        %v2647 = vld [vmem:[#allocation2 + $0x98] sm:$0xff]
        %v2648 = vld [vmem:[#allocation2 + $0xa0] sm:$0xff]
        %v2649 = vld [vmem:[#allocation2 + $0xa8] sm:$0xff]
        %v2650 = vld [vmem:[#allocation2 + $0xb0] sm:$0xff]
        %v2651 = vld [vmem:[#allocation2 + $0xb8] sm:$0xff]
        %v2652 = vld [vmem:[#allocation2 + $0xc0] sm:$0xff]
        %v2653 = vld [vmem:[#allocation2 + $0xc8] sm:$0xff]
        %v2654 = vld [vmem:[#allocation2 + $0xd0] sm:$0xff]
        %v2655 = vld [vmem:[#allocation2 + $0xd8] sm:$0xff]
        %v2656 = vld [vmem:[#allocation2 + $0xe0] sm:$0xff]
        %v2657 = vld [vmem:[#allocation2 + $0xe8] sm:$0xff]
        %v2658 = vld [vmem:[#allocation2 + $0xf0] sm:$0xff]
        %v2659 = vld [vmem:[#allocation2 + $0xf8] sm:$0xff]
        %v2660 = vld [vmem:[#allocation2 + $0x100] sm:$0xff]
        %v2661 = vld [vmem:[#allocation2 + $0x108] sm:$0xff]
        %v2662 = vld [vmem:[#allocation2 + $0x110] sm:$0xff]
        %v2663 = vld [vmem:[#allocation2 + $0x118] sm:$0xff]
        %v2664 = vld [vmem:[#allocation2 + $0x120] sm:$0xff]
        %v2665 = vld [vmem:[#allocation2 + $0x128] sm:$0xff]
        %v2666 = vld [vmem:[#allocation2 + $0x130] sm:$0xff]
        %v2667 = vld [vmem:[#allocation2 + $0x138] sm:$0xff]
        %v2668 = vld [vmem:[#allocation2 + $0x140] sm:$0xff]
        %v2669 = vld [vmem:[#allocation2 + $0x148] sm:$0xff]
        %v2670 = vld [vmem:[#allocation2 + $0x150] sm:$0xff]
        %v2671 = vld [vmem:[#allocation2 + $0x158] sm:$0xff]
        %v2672 = vld [vmem:[#allocation2 + $0x160] sm:$0xff]
        %v2673 = vld [vmem:[#allocation2 + $0x168] sm:$0xff]
        %v2674 = vld [vmem:[#allocation2 + $0x170] sm:$0xff]
        %v2675 = vld [vmem:[#allocation2 + $0x178] sm:$0xff]
        %v2676 = vld [vmem:[#allocation2 + $0x180] sm:$0xff]
        %v2677 = vld [vmem:[#allocation2 + $0x188] sm:$0xff]
        %v2678 = vld [vmem:[#allocation2 + $0x190] sm:$0xff]
        %v2679 = vld [vmem:[#allocation2 + $0x198] sm:$0xff]
        %v2680 = vld [vmem:[#allocation2 + $0x1a0] sm:$0xff]
        %v2681 = vld [vmem:[#allocation2 + $0x1a8] sm:$0xff]
        %v2682 = vld [vmem:[#allocation2 + $0x1b0] sm:$0xff]
        %v2683 = vld [vmem:[#allocation2 + $0x1b8] sm:$0xff]
        %v2684 = vld [vmem:[#allocation2 + $0x1c0] sm:$0xff]
        %v2685 = vld [vmem:[#allocation2 + $0x1c8] sm:$0xff]
        %v2686 = vld [vmem:[#allocation2 + $0x1d0] sm:$0xff]
        %v2687 = vld [vmem:[#allocation2 + $0x1d8] sm:$0xff]
        %v2688 = vld [vmem:[#allocation2 + $0x1e0] sm:$0xff]
        %v2689 = vld [vmem:[#allocation2 + $0x1e8] sm:$0xff]
        %v2690 = vld [vmem:[#allocation2 + $0x1f0] sm:$0xff]
        %v2691 = vld [vmem:[#allocation2 + $0x1f8] sm:$0xff]
        %v2692 = vld [vmem:[#allocation2 + $0x200] sm:$0xff]
        %v2693 = vld [vmem:[#allocation2 + $0x208] sm:$0xff]
        %v2694 = vld [vmem:[#allocation2 + $0x210] sm:$0xff]
        %v2695 = vld [vmem:[#allocation2 + $0x218] sm:$0xff]
        %v2696 = vld [vmem:[#allocation2 + $0x220] sm:$0xff]
        %v2697 = vld [vmem:[#allocation2 + $0x228] sm:$0xff]
        %v2698 = vld [vmem:[#allocation2 + $0x230] sm:$0xff]
        %v2699 = vld [vmem:[#allocation2 + $0x238] sm:$0xff]
        %v2700 = vld [vmem:[#allocation2 + $0x240] sm:$0xff]
        %v2701 = vld [vmem:[#allocation2 + $0x248] sm:$0xff]
        %v2702 = vld [vmem:[#allocation2 + $0x250] sm:$0xff]
        %v2703 = vld [vmem:[#allocation2 + $0x258] sm:$0xff]
        %v2704 = vld [vmem:[#allocation2 + $0x260] sm:$0xff]
        %v2705 = vld [vmem:[#allocation2 + $0x268] sm:$0xff]
        %v2706 = vld [vmem:[#allocation2 + $0x270] sm:$0xff]
        %v2707 = vld [vmem:[#allocation2 + $0x278] sm:$0xff]
        %v2708 = vld [vmem:[#allocation2 + $0x280] sm:$0xff]
        %v2709 = vld [vmem:[#allocation2 + $0x288] sm:$0xff]
        %v2710 = vld [vmem:[#allocation2 + $0x290] sm:$0xff]
        %v2711 = vld [vmem:[#allocation2 + $0x298] sm:$0xff]
        %v2712 = vld [vmem:[#allocation2 + $0x2a0] sm:$0xff]
        %v2713 = vld [vmem:[#allocation2 + $0x2a8] sm:$0xff]
        %v2714 = vld [vmem:[#allocation2 + $0x2b0] sm:$0xff]
        %v2715 = vld [vmem:[#allocation2 + $0x2b8] sm:$0xff]
        %v2716 = vld [vmem:[#allocation2 + $0x2c0] sm:$0xff]
        %v2717 = vld [vmem:[#allocation2 + $0x2c8] sm:$0xff]
        %v2718 = vld [vmem:[#allocation2 + $0x2d0] sm:$0xff]
        %v2719 = vld [vmem:[#allocation2 + $0x2d8] sm:$0xff]
        %v2720 = vld [vmem:[#allocation2 + $0x2e0] sm:$0xff]
        %v2721 = vld [vmem:[#allocation2 + $0x2e8] sm:$0xff]
        %v2722 = vld [vmem:[#allocation2 + $0x2f0] sm:$0xff]
        %v2723 = vld [vmem:[#allocation2 + $0x2f8] sm:$0xff]
        %v2724 = vld [vmem:[#allocation2 + $0x300] sm:$0xff]
        %v2725 = vld [vmem:[#allocation2 + $0x308] sm:$0xff]
        %v2726 = vld [vmem:[#allocation2 + $0x310] sm:$0xff]
        %v2727 = vld [vmem:[#allocation2 + $0x318] sm:$0xff]
        %v2728 = vld [vmem:[#allocation2 + $0x320] sm:$0xff]
        %v2729 = vld [vmem:[#allocation2 + $0x328] sm:$0xff]
        %v2730 = vld [vmem:[#allocation2 + $0x330] sm:$0xff]
        %v2731 = vld [vmem:[#allocation2 + $0x338] sm:$0xff]
        %v2732 = vld [vmem:[#allocation2 + $0x340] sm:$0xff]
        %v2733 = vld [vmem:[#allocation2 + $0x348] sm:$0xff]
        %v2734 = vld [vmem:[#allocation2 + $0x350] sm:$0xff]
        %v2735 = vld [vmem:[#allocation2 + $0x358] sm:$0xff]
        %v2736 = vld [vmem:[#allocation2 + $0x360] sm:$0xff]
        %v2737 = vld [vmem:[#allocation2 + $0x368] sm:$0xff]
        %v2738 = vld [vmem:[#allocation2 + $0x370] sm:$0xff]
        %v2739 = vld [vmem:[#allocation2 + $0x378] sm:$0xff]
        %v2740 = vld [vmem:[#allocation2 + $0x380] sm:$0xff]
        %v2741 = vld [vmem:[#allocation2 + $0x388] sm:$0xff]
        %v2742 = vld [vmem:[#allocation2 + $0x390] sm:$0xff]
        %v2743 = vld [vmem:[#allocation2 + $0x398] sm:$0xff]
        %v2744 = vld [vmem:[#allocation2 + $0x3a0] sm:$0xff]
        %v2745 = vld [vmem:[#allocation2 + $0x3a8] sm:$0xff]
        %v2746 = vld [vmem:[#allocation2 + $0x3b0] sm:$0xff]
        %v2747 = vld [vmem:[#allocation2 + $0x3b8] sm:$0xff]
        %v2748 = vld [vmem:[#allocation2 + $0x3c0] sm:$0xff]
        %v2749 = vld [vmem:[#allocation2 + $0x3c8] sm:$0xff]
        %v2750 = vld [vmem:[#allocation2 + $0x3d0] sm:$0xff]
        %v2751 = vld [vmem:[#allocation2 + $0x3d8] sm:$0xff]
        %v2752 = vld [vmem:[#allocation2 + $0x3e0] sm:$0xff]
        %v2753 = vld [vmem:[#allocation2 + $0x3e8] sm:$0xff]
        %v2754 = vld [vmem:[#allocation2 + $0x3f0] sm:$0xff]
        %v2755 = vld [vmem:[#allocation2 + $0x3f8] sm:$0xff]
        %v2756 = vld [vmem:[#allocation2 + $0x400] sm:$0xff]
        %v2757 = vld [vmem:[#allocation2 + $0x408] sm:$0xff]
        %v2758 = vld [vmem:[#allocation2 + $0x410] sm:$0xff]
        %v2759 = vld [vmem:[#allocation2 + $0x418] sm:$0xff]
        %v2760 = vld [vmem:[#allocation2 + $0x420] sm:$0xff]
        %v2761 = vld [vmem:[#allocation2 + $0x428] sm:$0xff]
        %v2762 = vld [vmem:[#allocation2 + $0x430] sm:$0xff]
        %v2763 = vld [vmem:[#allocation2 + $0x438] sm:$0xff]
        %v2764 = vld [vmem:[#allocation2 + $0x440] sm:$0xff]
        %v2765 = vld [vmem:[#allocation2 + $0x448] sm:$0xff]
        %v2766 = vld [vmem:[#allocation2 + $0x450] sm:$0xff]
        %v2767 = vld [vmem:[#allocation2 + $0x458] sm:$0xff]
        %v2768 = vld [vmem:[#allocation2 + $0x460] sm:$0xff]
        %v2769 = vld [vmem:[#allocation2 + $0x468] sm:$0xff]
        %v2770 = vld [vmem:[#allocation2 + $0x470] sm:$0xff]
        %v2771 = vld [vmem:[#allocation2 + $0x478] sm:$0xff]
        %v2772 = vld [vmem:[#allocation2 + $0x480] sm:$0xff]
        %v2773 = vld [vmem:[#allocation2 + $0x488] sm:$0xff]
        %v2774 = vld [vmem:[#allocation2 + $0x490] sm:$0xff]
        %v2775 = vld [vmem:[#allocation2 + $0x498] sm:$0xff]
        %v2776 = vld [vmem:[#allocation2 + $0x4a0] sm:$0xff]
        %v2777 = vld [vmem:[#allocation2 + $0x4a8] sm:$0xff]
        %v2778 = vld [vmem:[#allocation2 + $0x4b0] sm:$0xff]
        %v2779 = vld [vmem:[#allocation2 + $0x4b8] sm:$0xff]
        %v2780 = vld [vmem:[#allocation2 + $0x4c0] sm:$0xff]
        %v2781 = vld [vmem:[#allocation2 + $0x4c8] sm:$0xff]
        %v2782 = vld [vmem:[#allocation2 + $0x4d0] sm:$0xff]
        %v2783 = vld [vmem:[#allocation2 + $0x4d8] sm:$0xff]
        %v2784 = vld [vmem:[#allocation2 + $0x4e0] sm:$0xff]
        %v2785 = vld [vmem:[#allocation2 + $0x4e8] sm:$0xff]
        %v2786 = vld [vmem:[#allocation2 + $0x4f0] sm:$0xff]
        %v2787 = vld [vmem:[#allocation2 + $0x4f8] sm:$0xff]
        %v2788 = vld [vmem:[#allocation2 + $0x500] sm:$0xff]
        %v2789 = vld [vmem:[#allocation2 + $0x508] sm:$0xff]
        %v2790 = vld [vmem:[#allocation2 + $0x510] sm:$0xff]
        %v2791 = vld [vmem:[#allocation2 + $0x518] sm:$0xff]
        %v2792 = vld [vmem:[#allocation2 + $0x520] sm:$0xff]
        %v2793 = vld [vmem:[#allocation2 + $0x528] sm:$0xff]
        %v2794 = vld [vmem:[#allocation2 + $0x530] sm:$0xff]
        %v2795 = vld [vmem:[#allocation2 + $0x538] sm:$0xff]
        %v2796 = vld [vmem:[#allocation2 + $0x540] sm:$0xff]
        %v2797 = vld [vmem:[#allocation2 + $0x548] sm:$0xff]
        %v2798 = vld [vmem:[#allocation2 + $0x550] sm:$0xff]
        %v2799 = vld [vmem:[#allocation2 + $0x558] sm:$0xff]
        %v2800 = vld [vmem:[#allocation2 + $0x560] sm:$0xff]
        %v2801 = vld [vmem:[#allocation2 + $0x568] sm:$0xff]
        %v2802 = vld [vmem:[#allocation2 + $0x570] sm:$0xff]
        %v2803 = vld [vmem:[#allocation2 + $0x578] sm:$0xff]
        %v2804 = vld [vmem:[#allocation2 + $0x580] sm:$0xff]
        %v2805 = vld [vmem:[#allocation2 + $0x588] sm:$0xff]
        %v2806 = vld [vmem:[#allocation2 + $0x590] sm:$0xff]
        %v2807 = vld [vmem:[#allocation2 + $0x598] sm:$0xff]
        %v2808 = vld [vmem:[#allocation2 + $0x5a0] sm:$0xff]
        %v2809 = vld [vmem:[#allocation2 + $0x5a8] sm:$0xff]
        %v2810 = vld [vmem:[#allocation2 + $0x5b0] sm:$0xff]
        %v2811 = vld [vmem:[#allocation2 + $0x5b8] sm:$0xff]
        %v2812 = vld [vmem:[#allocation2 + $0x5c0] sm:$0xff]
        %v2813 = vld [vmem:[#allocation2 + $0x5c8] sm:$0xff]
        %v2814 = vld [vmem:[#allocation2 + $0x5d0] sm:$0xff]
        %v2815 = vld [vmem:[#allocation2 + $0x5d8] sm:$0xff]
        %v2816 = vld [vmem:[#allocation2 + $0x5e0] sm:$0xff]
        %v2817 = vld [vmem:[#allocation2 + $0x5e8] sm:$0xff]
        %v2818 = vld [vmem:[#allocation2 + $0x5f0] sm:$0xff]
        %v2819 = vld [vmem:[#allocation2 + $0x5f8] sm:$0xff]
        %v2820 = vld [vmem:[#allocation2 + $0x600] sm:$0xff]
        %v2821 = vld [vmem:[#allocation2 + $0x608] sm:$0xff]
        %v2822 = vld [vmem:[#allocation2 + $0x610] sm:$0xff]
        %v2823 = vld [vmem:[#allocation2 + $0x618] sm:$0xff]
        %v2824 = vld [vmem:[#allocation2 + $0x620] sm:$0xff]
        %v2825 = vld [vmem:[#allocation2 + $0x628] sm:$0xff]
        %v2826 = vld [vmem:[#allocation2 + $0x630] sm:$0xff]
        %v2827 = vld [vmem:[#allocation2 + $0x638] sm:$0xff]
        %v2828 = vld [vmem:[#allocation2 + $0x640] sm:$0xff]
        %v2829 = vld [vmem:[#allocation2 + $0x648] sm:$0xff]
        %v2830 = vld [vmem:[#allocation2 + $0x650] sm:$0xff]
        %v2831 = vld [vmem:[#allocation2 + $0x658] sm:$0xff]
        %v2832 = vld [vmem:[#allocation2 + $0x660] sm:$0xff]
        %v2833 = vld [vmem:[#allocation2 + $0x668] sm:$0xff]
        %v2834 = vld [vmem:[#allocation2 + $0x670] sm:$0xff]
        %v2835 = vld [vmem:[#allocation2 + $0x678] sm:$0xff]
        %v2836 = vld [vmem:[#allocation2 + $0x680] sm:$0xff]
        %v2837 = vld [vmem:[#allocation2 + $0x688] sm:$0xff]
        %v2838 = vld [vmem:[#allocation2 + $0x690] sm:$0xff]
        %v2839 = vld [vmem:[#allocation2 + $0x698] sm:$0xff]
        %v2840 = vld [vmem:[#allocation2 + $0x6a0] sm:$0xff]
        %v2841 = vld [vmem:[#allocation2 + $0x6a8] sm:$0xff]
        %v2842 = vld [vmem:[#allocation2 + $0x6b0] sm:$0xff]
        %v2843 = vld [vmem:[#allocation2 + $0x6b8] sm:$0xff]
        %v2844 = vld [vmem:[#allocation2 + $0x6c0] sm:$0xff]
        %v2845 = vld [vmem:[#allocation2 + $0x6c8] sm:$0xff]
        %v2846 = vld [vmem:[#allocation2 + $0x6d0] sm:$0xff]
        %v2847 = vld [vmem:[#allocation2 + $0x6d8] sm:$0xff]
        %v2848 = vld [vmem:[#allocation2 + $0x6e0] sm:$0xff]
        %v2849 = vld [vmem:[#allocation2 + $0x6e8] sm:$0xff]
        %v2850 = vld [vmem:[#allocation2 + $0x6f0] sm:$0xff]
        %v2851 = vld [vmem:[#allocation2 + $0x6f8] sm:$0xff]
        %v2852 = vld [vmem:[#allocation2 + $0x700] sm:$0xff]
        %v2853 = vld [vmem:[#allocation2 + $0x708] sm:$0xff]
        %v2854 = vld [vmem:[#allocation2 + $0x710] sm:$0xff]
        %v2855 = vld [vmem:[#allocation2 + $0x718] sm:$0xff]
        %v2856 = vld [vmem:[#allocation2 + $0x720] sm:$0xff]
        %v2857 = vld [vmem:[#allocation2 + $0x728] sm:$0xff]
        %v2858 = vld [vmem:[#allocation2 + $0x730] sm:$0xff]
        %v2859 = vld [vmem:[#allocation2 + $0x738] sm:$0xff]
        %v2860 = vld [vmem:[#allocation2 + $0x740] sm:$0xff]
        %v2861 = vld [vmem:[#allocation2 + $0x748] sm:$0xff]
        %v2862 = vld [vmem:[#allocation2 + $0x750] sm:$0xff]
        %v2863 = vld [vmem:[#allocation2 + $0x758] sm:$0xff]
        %v2864 = vld [vmem:[#allocation2 + $0x760] sm:$0xff]
        %v2865 = vld [vmem:[#allocation2 + $0x768] sm:$0xff]
        %v2866 = vld [vmem:[#allocation2 + $0x770] sm:$0xff]
        %v2867 = vld [vmem:[#allocation2 + $0x778] sm:$0xff]
        %v2868 = vld [vmem:[#allocation2 + $0x780] sm:$0xff]
        %v2869 = vld [vmem:[#allocation2 + $0x788] sm:$0xff]
        %v2870 = vld [vmem:[#allocation2 + $0x790] sm:$0xff]
        %v2871 = vld [vmem:[#allocation2 + $0x798] sm:$0xff]
        %v2872 = vld [vmem:[#allocation2 + $0x7a0] sm:$0xff]
        %v2873 = vld [vmem:[#allocation2 + $0x7a8] sm:$0xff]
        %v2874 = vld [vmem:[#allocation2 + $0x7b0] sm:$0xff]
        %v2875 = vld [vmem:[#allocation2 + $0x7b8] sm:$0xff]
        %v2876 = vld [vmem:[#allocation2 + $0x7c0] sm:$0xff]
        %v2877 = vld [vmem:[#allocation2 + $0x7c8] sm:$0xff]
        %v2878 = vld [vmem:[#allocation2 + $0x7d0] sm:$0xff]
        %v2879 = vld [vmem:[#allocation2 + $0x7d8] sm:$0xff]
        %v2880 = vld [vmem:[#allocation2 + $0x7e0] sm:$0xff]
        %v2881 = vld [vmem:[#allocation2 + $0x7e8] sm:$0xff]
        %v2882 = vld [vmem:[#allocation2 + $0x7f0] sm:$0xff]
        %v2883 = vld [vmem:[#allocation2 + $0x7f8] sm:$0xff]
        %v2884 = vld [vmem:[#allocation2 + $0x800] sm:$0xff]
        %v2885 = vld [vmem:[#allocation2 + $0x808] sm:$0xff]
        %v2886 = vld [vmem:[#allocation2 + $0x810] sm:$0xff]
        %v2887 = vld [vmem:[#allocation2 + $0x818] sm:$0xff]
        %v2888 = vld [vmem:[#allocation2 + $0x820] sm:$0xff]
        %v2889 = vld [vmem:[#allocation2 + $0x828] sm:$0xff]
        %v2890 = vld [vmem:[#allocation2 + $0x830] sm:$0xff]
        %v2891 = vld [vmem:[#allocation2 + $0x838] sm:$0xff]
        %v2892 = vld [vmem:[#allocation2 + $0x840] sm:$0xff]
        %v2893 = vld [vmem:[#allocation2 + $0x848] sm:$0xff]
        %v2894 = vld [vmem:[#allocation2 + $0x850] sm:$0xff]
        %v2895 = vld [vmem:[#allocation2 + $0x858] sm:$0xff]
        %v2896 = vld [vmem:[#allocation2 + $0x860] sm:$0xff]
        %v2897 = vld [vmem:[#allocation2 + $0x868] sm:$0xff]
        %v2898 = vld [vmem:[#allocation2 + $0x870] sm:$0xff]
        %v2899 = vld [vmem:[#allocation2 + $0x878] sm:$0xff]
        %v2900 = vld [vmem:[#allocation2 + $0x880] sm:$0xff]
        %v2901 = vld [vmem:[#allocation2 + $0x888] sm:$0xff]
        %v2902 = vld [vmem:[#allocation2 + $0x890] sm:$0xff]
        %v2903 = vld [vmem:[#allocation2 + $0x898] sm:$0xff]
        %v2904 = vld [vmem:[#allocation2 + $0x8a0] sm:$0xff]
        %v2905 = vld [vmem:[#allocation2 + $0x8a8] sm:$0xff]
        %v2906 = vld [vmem:[#allocation2 + $0x8b0] sm:$0xff]
        %v2907 = vld [vmem:[#allocation2 + $0x8b8] sm:$0xff]
        %v2908 = vld [vmem:[#allocation2 + $0x8c0] sm:$0xff]
        %v2909 = vld [vmem:[#allocation2 + $0x8c8] sm:$0xff]
        %v2910 = vld [vmem:[#allocation2 + $0x8d0] sm:$0xff]
        %v2911 = vld [vmem:[#allocation2 + $0x8d8] sm:$0xff]
        %v2912 = vld [vmem:[#allocation2 + $0x8e0] sm:$0xff]
        %v2913 = vld [vmem:[#allocation2 + $0x8e8] sm:$0xff]
        %v2914 = vld [vmem:[#allocation2 + $0x8f0] sm:$0xff]
        %v2915 = vld [vmem:[#allocation2 + $0x8f8] sm:$0xff]
        %v2916 = vld [vmem:[#allocation2 + $0x900] sm:$0xff]
        %v2917 = vld [vmem:[#allocation2 + $0x908] sm:$0xff]
        %v2918 = vld [vmem:[#allocation2 + $0x910] sm:$0xff]
        %v2919 = vld [vmem:[#allocation2 + $0x918] sm:$0xff]
        %v2920 = vld [vmem:[#allocation2 + $0x920] sm:$0xff]
        %v2921 = vld [vmem:[#allocation2 + $0x928] sm:$0xff]
        %v2922 = vld [vmem:[#allocation2 + $0x930] sm:$0xff]
        %v2923 = vld [vmem:[#allocation2 + $0x938] sm:$0xff]
        %v2924 = vld [vmem:[#allocation2 + $0x940] sm:$0xff]
        %v2925 = vld [vmem:[#allocation2 + $0x948] sm:$0xff]
        %v2926 = vld [vmem:[#allocation2 + $0x950] sm:$0xff]
        %v2927 = vld [vmem:[#allocation2 + $0x958] sm:$0xff]
        %v2928 = vld [vmem:[#allocation2 + $0x960] sm:$0xff]
        %v2929 = vld [vmem:[#allocation2 + $0x968] sm:$0xff]
        %v2930 = vld [vmem:[#allocation2 + $0x970] sm:$0xff]
        %v2931 = vld [vmem:[#allocation2 + $0x978] sm:$0xff]
        %2932 = vmatprep.subr.mxu0 0.0
        %2933 = vmatpush1.msra.mxu0 %v2628
        %2934 = vmatprep.subr.mxu0 0.0
        %2935 = vmatpush1.msra.mxu0 %v2629
        %2936 = vmatprep.subr.mxu0 0.0
        %2937 = vmatpush1.msra.mxu0 %v2630
        %2938 = vmatprep.subr.mxu0 0.0
        %2939 = vmatpush1.msra.mxu0 %v2631
        %2940 = vmatprep.subr.mxu0 0.0
        %2941 = vmatpush1.msra.mxu0 %v2632
        %2942 = vmatprep.subr.mxu0 0.0
        %2943 = vmatpush1.msra.mxu0 %v2633
        %2944 = vmatprep.subr.mxu0 0.0
        %2945 = vmatpush1.msra.mxu0 %v2634
        %2946 = vmatprep.subr.mxu0 0.0
        %2947 = vmatpush1.msra.mxu0 %v2635
        %2948 = vmatprep.subr.mxu0 0.0
        %2949 = vmatpush1.msra.mxu0 %v2636
        %2950 = vmatprep.subr.mxu0 0.0
        %2951 = vmatpush1.msra.mxu0 %v2637
        %2952 = vmatprep.subr.mxu0 0.0
        %2953 = vmatpush1.msra.mxu0 %v2638
        %2954 = vmatprep.subr.mxu0 0.0
        %2955 = vmatpush1.msra.mxu0 %v2639
        %2956 = vmatprep.subr.mxu0 0.0
        %2957 = vmatpush1.msra.mxu0 %v2640
        %2958 = vmatprep.subr.mxu0 0.0
        %2959 = vmatpush1.msra.mxu0 %v2641
        %2960 = vmatprep.subr.mxu0 0.0
        %2961 = vmatpush1.msra.mxu0 %v2642
        %2962 = vmatprep.subr.mxu0 0.0
        %2963 = vmatpush1.msra.mxu0 %v2643
        %2964 = vmatprep.subr.mxu0 0.0
        %2965 = vmatpush1.msra.mxu0 %v2644
        %2966 = vmatprep.subr.mxu0 0.0
        %2967 = vmatpush1.msra.mxu0 %v2645
        %2968 = vmatprep.subr.mxu0 0.0
        %2969 = vmatpush1.msra.mxu0 %v2646
        %2970 = vmatprep.subr.mxu0 0.0
        %2971 = vmatpush1.msra.mxu0 %v2647
        %2972 = vmatprep.subr.mxu0 0.0
        %2973 = vmatpush1.msra.mxu0 %v2648
        %2974 = vmatprep.subr.mxu0 0.0
        %2975 = vmatpush1.msra.mxu0 %v2649
        %2976 = vmatprep.subr.mxu0 0.0
        %2977 = vmatpush1.msra.mxu0 %v2650
        %2978 = vmatprep.subr.mxu0 0.0
        %2979 = vmatpush1.msra.mxu0 %v2651
        %2980 = vmatprep.subr.mxu0 0.0
        %2981 = vmatpush1.msra.mxu0 %v2652
        %2982 = vmatprep.subr.mxu0 0.0
        %2983 = vmatpush1.msra.mxu0 %v2653
        %2984 = vmatprep.subr.mxu0 0.0
        %2985 = vmatpush1.msra.mxu0 %v2654
        %2986 = vmatprep.subr.mxu0 0.0
        %2987 = vmatpush1.msra.mxu0 %v2655
        %2988 = vmatprep.subr.mxu0 0.0
        %2989 = vmatpush1.msra.mxu0 %v2656
        %2990 = vmatprep.subr.mxu0 0.0
        %2991 = vmatpush1.msra.mxu0 %v2657
        %2992 = vmatprep.subr.mxu0 0.0
        %2993 = vmatpush1.msra.mxu0 %v2658
        %2994 = vmatprep.subr.mxu0 0.0
        %2995 = vmatpush1.msra.mxu0 %v2659
        %2996 = vmatprep.mubr.f32.mxu0 %v2325
        %2997 = vmatmul.mubr.f32.gmra.mrb[0].mxu0 %v2324
        %v2998 = vpop.f32.mrb[0].mxu0
        %v2999 = vadd.f32 0.0, %v2998
        %v3000 = vpop.f32.mrb[0].mxu0
        %3001 = vmatprep.mubr.f32.mxu0 %v2344
        %3002 = vmatmul.mubr.f32.gmra.mrb[0].mxu0 %v2343
        %v3003 = vpop.f32.mrb[0].mxu0
        %v3004 = vadd.f32 0.0, %v3003
        %v3005 = vpop.f32.mrb[0].mxu0
        %3006 = vmatprep.mubr.f32.mxu0 %v2363
        %3007 = vmatmul.mubr.f32.gmra.mrb[0].mxu0 %v2362
        %v3008 = vpop.f32.mrb[0].mxu0
        %v3009 = vadd.f32 0.0, %v3008
        %v3010 = vpop.f32.mrb[0].mxu0
        %3011 = vmatprep.mubr.f32.mxu0 %v2382
        %3012 = vmatmul.mubr.f32.gmra.mrb[0].mxu0 %v2381
        %v3013 = vpop.f32.mrb[0].mxu0
        %v3014 = vadd.f32 0.0, %v3013
        %v3015 = vpop.f32.mrb[0].mxu0
        %3016 = vmatprep.mubr.f32.mxu0 %v2401
        %3017 = vmatmul.mubr.f32.gmra.mrb[0].mxu0 %v2400
        %v3018 = vpop.f32.mrb[0].mxu0
        %v3019 = vadd.f32 0.0, %v3018
        %v3020 = vpop.f32.mrb[0].mxu0
        %3021 = vmatprep.mubr.f32.mxu0 %v2420
        %3022 = vmatmul.mubr.f32.gmra.mrb[0].mxu0 %v2419
        %v3023 = vpop.f32.mrb[0].mxu0
        %v3024 = vadd.f32 0.0, %v3023
        %v3025 = vpop.f32.mrb[0].mxu0
        %3026 = vmatprep.mubr.f32.mxu0 %v2439
        %3027 = vmatmul.mubr.f32.gmra.mrb[0].mxu0 %v2438
        %v3028 = vpop.f32.mrb[0].mxu0
        %v3029 = vadd.f32 0.0, %v3028
        %v3030 = vpop.f32.mrb[0].mxu0
        %3031 = vmatprep.mubr.f32.mxu0 %v2458
        %3032 = vmatmul.mubr.f32.gmra.mrb[0].mxu0 %v2457
        %v3033 = vpop.f32.mrb[0].mxu0
        %v3034 = vadd.f32 0.0, %v3033
        %v3035 = vpop.f32.mrb[0].mxu0
        %3036 = vmatprep.mubr.f32.mxu0 %v2477
        %3037 = vmatmul.mubr.f32.gmra.mrb[0].mxu0 %v2476
        %v3038 = vpop.f32.mrb[0].mxu0
        %v3039 = vadd.f32 0.0, %v3038
        %v3040 = vpop.f32.mrb[0].mxu0
        %3041 = vmatprep.mubr.f32.mxu0 %v2496
        %3042 = vmatmul.mubr.f32.gmra.mrb[0].mxu0 %v2495
        %v3043 = vpop.f32.mrb[0].mxu0
        %v3044 = vadd.f32 0.0, %v3043
        %v3045 = vpop.f32.mrb[0].mxu0
        %3046 = vmatprep.mubr.f32.mxu0 %v2515
        %3047 = vmatmul.mubr.f32.gmra.mrb[0].mxu0 %v2514
        %v3048 = vpop.f32.mrb[0].mxu0
        %v3049 = vadd.f32 0.0, %v3048
        %v3050 = vpop.f32.mrb[0].mxu0
        %3051 = vmatprep.mubr.f32.mxu0 %v2534
        %3052 = vmatmul.mubr.f32.gmra.mrb[0].mxu0 %v2533
        %v3053 = vpop.f32.mrb[0].mxu0
        %v3054 = vadd.f32 0.0, %v3053
        %v3055 = vpop.f32.mrb[0].mxu0
        %3056 = vmatprep.mubr.f32.mxu0 %v2553
        %3057 = vmatmul.mubr.f32.gmra.mrb[0].mxu0 %v2552
        %v3058 = vpop.f32.mrb[0].mxu0
        %v3059 = vadd.f32 0.0, %v3058
        %v3060 = vpop.f32.mrb[0].mxu0
        %3061 = vmatprep.mubr.f32.mxu0 %v2572
        %3062 = vmatmul.mubr.f32.gmra.mrb[0].mxu0 %v2571
        %v3063 = vpop.f32.mrb[0].mxu0
        %v3064 = vadd.f32 0.0, %v3063
        %v3065 = vpop.f32.mrb[0].mxu0
        %3066 = vmatprep.mubr.f32.mxu0 %v2591
        %3067 = vmatmul.mubr.f32.gmra.mrb[0].mxu0 %v2590
        %v3068 = vpop.f32.mrb[0].mxu0
        %v3069 = vadd.f32 0.0, %v3068
        %v3070 = vpop.f32.mrb[0].mxu0
        %3071 = vmatprep.mubr.f32.mxu0 %v2610
        %3072 = vmatmul.mubr.f32.gmra.mrb[0].mxu0 %v2609
        %v3073 = vpop.f32.mrb[0].mxu0
        %v3074 = vadd.f32 0.0, %v3073
        %v3075 = vpop.f32.mrb[0].mxu0
        %3076 = vdwg.mxu0
        %3077 = vmatprep.subr.mxu0 0.0
        %3078 = vmatpush1.msra.mxu0 %v2660
        %3079 = vmatprep.subr.mxu0 0.0
        %3080 = vmatpush1.msra.mxu0 %v2661
        %3081 = vmatprep.subr.mxu0 0.0
        %3082 = vmatpush1.msra.mxu0 %v2662
        %3083 = vmatprep.subr.mxu0 0.0
        %3084 = vmatpush1.msra.mxu0 %v2663
        %3085 = vmatprep.subr.mxu0 0.0
        %3086 = vmatpush1.msra.mxu0 %v2664
        %3087 = vmatprep.subr.mxu0 0.0
        %3088 = vmatpush1.msra.mxu0 %v2665
        %3089 = vmatprep.subr.mxu0 0.0
        %3090 = vmatpush1.msra.mxu0 %v2666
        %3091 = vmatprep.subr.mxu0 0.0
        %3092 = vmatpush1.msra.mxu0 %v2667
        %3093 = vmatprep.subr.mxu0 0.0
        %3094 = vmatpush1.msra.mxu0 %v2668
        %3095 = vmatprep.subr.mxu0 0.0
        %3096 = vmatpush1.msra.mxu0 %v2669
        %3097 = vmatprep.subr.mxu0 0.0
        %3098 = vmatpush1.msra.mxu0 %v2670
        %3099 = vmatprep.subr.mxu0 0.0
        %3100 = vmatpush1.msra.mxu0 %v2671
        %3101 = vmatprep.subr.mxu0 0.0
        %3102 = vmatpush1.msra.mxu0 %v2672
        %3103 = vmatprep.subr.mxu0 0.0
        %3104 = vmatpush1.msra.mxu0 %v2673
        %3105 = vmatprep.subr.mxu0 0.0
        %3106 = vmatpush1.msra.mxu0 %v2674
        %3107 = vmatprep.subr.mxu0 0.0
        %3108 = vmatpush1.msra.mxu0 %v2675
        %3109 = vmatprep.subr.mxu0 0.0
        %3110 = vmatpush1.msra.mxu0 %v2676
        %3111 = vmatprep.subr.mxu0 0.0
        %3112 = vmatpush1.msra.mxu0 %v2677
        %3113 = vmatprep.subr.mxu0 0.0
        %3114 = vmatpush1.msra.mxu0 %v2678
        %3115 = vmatprep.subr.mxu0 0.0
        %3116 = vmatpush1.msra.mxu0 %v2679
        %3117 = vmatprep.subr.mxu0 0.0
        %3118 = vmatpush1.msra.mxu0 %v2680
        %3119 = vmatprep.subr.mxu0 0.0
        %3120 = vmatpush1.msra.mxu0 %v2681
        %3121 = vmatprep.subr.mxu0 0.0
        %3122 = vmatpush1.msra.mxu0 %v2682
        %3123 = vmatprep.subr.mxu0 0.0
        %3124 = vmatpush1.msra.mxu0 %v2683
        %3125 = vmatprep.subr.mxu0 0.0
        %3126 = vmatpush1.msra.mxu0 %v2684
        %3127 = vmatprep.subr.mxu0 0.0
        %3128 = vmatpush1.msra.mxu0 %v2685
        %3129 = vmatprep.subr.mxu0 0.0
        %3130 = vmatpush1.msra.mxu0 %v2686
        %3131 = vmatprep.subr.mxu0 0.0
        %3132 = vmatpush1.msra.mxu0 %v2687
        %3133 = vmatprep.subr.mxu0 0.0
        %3134 = vmatpush1.msra.mxu0 %v2688
        %3135 = vmatprep.subr.mxu0 0.0
        %3136 = vmatpush1.msra.mxu0 %v2689
        %3137 = vmatprep.subr.mxu0 0.0
        %3138 = vmatpush1.msra.mxu0 %v2690
        %3139 = vmatprep.subr.mxu0 0.0
        %3140 = vmatpush1.msra.mxu0 %v2691
        %3141 = vmatprep.mubr.f32.mxu0 %v2327
        %3142 = vmatmul.mubr.f32.gmra.mrb[0].mxu0 %v2326
        %v3143 = vpop.f32.mrb[0].mxu0
        %v3144 = vadd.f32 %v2999, %v3143
        %v3145 = vpop.f32.mrb[0].mxu0
        %3146 = vmatprep.mubr.f32.mxu0 %v2346
        %3147 = vmatmul.mubr.f32.gmra.mrb[0].mxu0 %v2345
        %v3148 = vpop.f32.mrb[0].mxu0
        %v3149 = vadd.f32 %v3004, %v3148
        %v3150 = vpop.f32.mrb[0].mxu0
        %3151 = vmatprep.mubr.f32.mxu0 %v2365
        %3152 = vmatmul.mubr.f32.gmra.mrb[0].mxu0 %v2364
        %v3153 = vpop.f32.mrb[0].mxu0
        %v3154 = vadd.f32 %v3009, %v3153
        %v3155 = vpop.f32.mrb[0].mxu0
        %3156 = vmatprep.mubr.f32.mxu0 %v2384
        %3157 = vmatmul.mubr.f32.gmra.mrb[0].mxu0 %v2383
        %v3158 = vpop.f32.mrb[0].mxu0
        %v3159 = vadd.f32 %v3014, %v3158
        %v3160 = vpop.f32.mrb[0].mxu0
        %3161 = vmatprep.mubr.f32.mxu0 %v2403
        %3162 = vmatmul.mubr.f32.gmra.mrb[0].mxu0 %v2402
        %v3163 = vpop.f32.mrb[0].mxu0
        %v3164 = vadd.f32 %v3019, %v3163
        %v3165 = vpop.f32.mrb[0].mxu0
        %3166 = vmatprep.mubr.f32.mxu0 %v2422
        %3167 = vmatmul.mubr.f32.gmra.mrb[0].mxu0 %v2421
        %v3168 = vpop.f32.mrb[0].mxu0
        %v3169 = vadd.f32 %v3024, %v3168
        %v3170 = vpop.f32.mrb[0].mxu0
        %3171 = vmatprep.mubr.f32.mxu0 %v2441
        %3172 = vmatmul.mubr.f32.gmra.mrb[0].mxu0 %v2440
        %v3173 = vpop.f32.mrb[0].mxu0
        %v3174 = vadd.f32 %v3029, %v3173
        %v3175 = vpop.f32.mrb[0].mxu0
        %3176 = vmatprep.mubr.f32.mxu0 %v2460
        %3177 = vmatmul.mubr.f32.gmra.mrb[0].mxu0 %v2459
        %v3178 = vpop.f32.mrb[0].mxu0
        %v3179 = vadd.f32 %v3034, %v3178
        %v3180 = vpop.f32.mrb[0].mxu0
        %3181 = vmatprep.mubr.f32.mxu0 %v2479
        %3182 = vmatmul.mubr.f32.gmra.mrb[0].mxu0 %v2478
        %v3183 = vpop.f32.mrb[0].mxu0
        %v3184 = vadd.f32 %v3039, %v3183
        %v3185 = vpop.f32.mrb[0].mxu0
        %3186 = vmatprep.mubr.f32.mxu0 %v2498
        %3187 = vmatmul.mubr.f32.gmra.mrb[0].mxu0 %v2497
        %v3188 = vpop.f32.mrb[0].mxu0
        %v3189 = vadd.f32 %v3044, %v3188
        %v3190 = vpop.f32.mrb[0].mxu0
        %3191 = vmatprep.mubr.f32.mxu0 %v2517
        %3192 = vmatmul.mubr.f32.gmra.mrb[0].mxu0 %v2516
        %v3193 = vpop.f32.mrb[0].mxu0
        %v3194 = vadd.f32 %v3049, %v3193
        %v3195 = vpop.f32.mrb[0].mxu0
        %3196 = vmatprep.mubr.f32.mxu0 %v2536
        %3197 = vmatmul.mubr.f32.gmra.mrb[0].mxu0 %v2535
        %v3198 = vpop.f32.mrb[0].mxu0
        %v3199 = vadd.f32 %v3054, %v3198
        %v3200 = vpop.f32.mrb[0].mxu0
        %3201 = vmatprep.mubr.f32.mxu0 %v2555
        %3202 = vmatmul.mubr.f32.gmra.mrb[0].mxu0 %v2554
        %v3203 = vpop.f32.mrb[0].mxu0
        %v3204 = vadd.f32 %v3059, %v3203
        %v3205 = vpop.f32.mrb[0].mxu0
        %3206 = vmatprep.mubr.f32.mxu0 %v2574
        %3207 = vmatmul.mubr.f32.gmra.mrb[0].mxu0 %v2573
        %v3208 = vpop.f32.mrb[0].mxu0
        %v3209 = vadd.f32 %v3064, %v3208
        %v3210 = vpop.f32.mrb[0].mxu0
        %3211 = vmatprep.mubr.f32.mxu0 %v2593
        %3212 = vmatmul.mubr.f32.gmra.mrb[0].mxu0 %v2592
        %v3213 = vpop.f32.mrb[0].mxu0
        %v3214 = vadd.f32 %v3069, %v3213
        %v3215 = vpop.f32.mrb[0].mxu0
        %3216 = vmatprep.mubr.f32.mxu0 %v2612
        %3217 = vmatmul.mubr.f32.gmra.mrb[0].mxu0 %v2611
        %v3218 = vpop.f32.mrb[0].mxu0
        %v3219 = vadd.f32 %v3074, %v3218
        %v3220 = vpop.f32.mrb[0].mxu0
        %3221 = vdwg.mxu0
        %3222 = vmatprep.subr.mxu0 0.0
        %3223 = vmatpush1.msra.mxu0 %v2692
        %3224 = vmatprep.subr.mxu0 0.0
        %3225 = vmatpush1.msra.mxu0 %v2693
        %3226 = vmatprep.subr.mxu0 0.0
        %3227 = vmatpush1.msra.mxu0 %v2694
        %3228 = vmatprep.subr.mxu0 0.0
        %3229 = vmatpush1.msra.mxu0 %v2695
        %3230 = vmatprep.subr.mxu0 0.0
        %3231 = vmatpush1.msra.mxu0 %v2696
        %3232 = vmatprep.subr.mxu0 0.0
        %3233 = vmatpush1.msra.mxu0 %v2697
        %3234 = vmatprep.subr.mxu0 0.0
        %3235 = vmatpush1.msra.mxu0 %v2698
        %3236 = vmatprep.subr.mxu0 0.0
        %3237 = vmatpush1.msra.mxu0 %v2699
        %3238 = vmatprep.subr.mxu0 0.0
        %3239 = vmatpush1.msra.mxu0 %v2700
        %3240 = vmatprep.subr.mxu0 0.0
        %3241 = vmatpush1.msra.mxu0 %v2701
        %3242 = vmatprep.subr.mxu0 0.0
        %3243 = vmatpush1.msra.mxu0 %v2702
        %3244 = vmatprep.subr.mxu0 0.0
        %3245 = vmatpush1.msra.mxu0 %v2703
        %3246 = vmatprep.subr.mxu0 0.0
        %3247 = vmatpush1.msra.mxu0 %v2704
        %3248 = vmatprep.subr.mxu0 0.0
        %3249 = vmatpush1.msra.mxu0 %v2705
        %3250 = vmatprep.subr.mxu0 0.0
        %3251 = vmatpush1.msra.mxu0 %v2706
        %3252 = vmatprep.subr.mxu0 0.0
        %3253 = vmatpush1.msra.mxu0 %v2707
        %3254 = vmatprep.subr.mxu0 0.0
        %3255 = vmatpush1.msra.mxu0 %v2708
        %3256 = vmatprep.subr.mxu0 0.0
        %3257 = vmatpush1.msra.mxu0 %v2709
        %3258 = vmatprep.subr.mxu0 0.0
        %3259 = vmatpush1.msra.mxu0 %v2710
        %3260 = vmatprep.subr.mxu0 0.0
        %3261 = vmatpush1.msra.mxu0 %v2711
        %3262 = vmatprep.subr.mxu0 0.0
        %3263 = vmatpush1.msra.mxu0 %v2712
        %3264 = vmatprep.subr.mxu0 0.0
        %3265 = vmatpush1.msra.mxu0 %v2713
        %3266 = vmatprep.subr.mxu0 0.0
        %3267 = vmatpush1.msra.mxu0 %v2714
        %3268 = vmatprep.subr.mxu0 0.0
        %3269 = vmatpush1.msra.mxu0 %v2715
        %3270 = vmatprep.subr.mxu0 0.0
        %3271 = vmatpush1.msra.mxu0 %v2716
        %3272 = vmatprep.subr.mxu0 0.0
        %3273 = vmatpush1.msra.mxu0 %v2717
        %3274 = vmatprep.subr.mxu0 0.0
        %3275 = vmatpush1.msra.mxu0 %v2718
        %3276 = vmatprep.subr.mxu0 0.0
        %3277 = vmatpush1.msra.mxu0 %v2719
        %3278 = vmatprep.subr.mxu0 0.0
        %3279 = vmatpush1.msra.mxu0 %v2720
        %3280 = vmatprep.subr.mxu0 0.0
        %3281 = vmatpush1.msra.mxu0 %v2721
        %3282 = vmatprep.subr.mxu0 0.0
        %3283 = vmatpush1.msra.mxu0 %v2722
        %3284 = vmatprep.subr.mxu0 0.0
        %3285 = vmatpush1.msra.mxu0 %v2723
        %3286 = vmatprep.mubr.f32.mxu0 %v2329
        %3287 = vmatmul.mubr.f32.gmra.mrb[0].mxu0 %v2328
        %v3288 = vpop.f32.mrb[0].mxu0
        %v3289 = vadd.f32 %v3144, %v3288
        %v3290 = vpop.f32.mrb[0].mxu0
        %3291 = vmatprep.mubr.f32.mxu0 %v2348
        %3292 = vmatmul.mubr.f32.gmra.mrb[0].mxu0 %v2347
        %v3293 = vpop.f32.mrb[0].mxu0
        %v3294 = vadd.f32 %v3149, %v3293
        %v3295 = vpop.f32.mrb[0].mxu0
        %3296 = vmatprep.mubr.f32.mxu0 %v2367
        %3297 = vmatmul.mubr.f32.gmra.mrb[0].mxu0 %v2366
        %v3298 = vpop.f32.mrb[0].mxu0
        %v3299 = vadd.f32 %v3154, %v3298
        %v3300 = vpop.f32.mrb[0].mxu0
        %3301 = vmatprep.mubr.f32.mxu0 %v2386
        %3302 = vmatmul.mubr.f32.gmra.mrb[0].mxu0 %v2385
        %v3303 = vpop.f32.mrb[0].mxu0
        %v3304 = vadd.f32 %v3159, %v3303
        %v3305 = vpop.f32.mrb[0].mxu0
        %3306 = vmatprep.mubr.f32.mxu0 %v2405
        %3307 = vmatmul.mubr.f32.gmra.mrb[0].mxu0 %v2404
        %v3308 = vpop.f32.mrb[0].mxu0
        %v3309 = vadd.f32 %v3164, %v3308
        %v3310 = vpop.f32.mrb[0].mxu0
        %3311 = vmatprep.mubr.f32.mxu0 %v2424
        %3312 = vmatmul.mubr.f32.gmra.mrb[0].mxu0 %v2423
        %v3313 = vpop.f32.mrb[0].mxu0
        %v3314 = vadd.f32 %v3169, %v3313
        %v3315 = vpop.f32.mrb[0].mxu0
        %3316 = vmatprep.mubr.f32.mxu0 %v2443
        %3317 = vmatmul.mubr.f32.gmra.mrb[0].mxu0 %v2442
        %v3318 = vpop.f32.mrb[0].mxu0
        %v3319 = vadd.f32 %v3174, %v3318
        %v3320 = vpop.f32.mrb[0].mxu0
        %3321 = vmatprep.mubr.f32.mxu0 %v2462
        %3322 = vmatmul.mubr.f32.gmra.mrb[0].mxu0 %v2461
        %v3323 = vpop.f32.mrb[0].mxu0
        %v3324 = vadd.f32 %v3179, %v3323
        %v3325 = vpop.f32.mrb[0].mxu0
        %3326 = vmatprep.mubr.f32.mxu0 %v2481
        %3327 = vmatmul.mubr.f32.gmra.mrb[0].mxu0 %v2480
        %v3328 = vpop.f32.mrb[0].mxu0
        %v3329 = vadd.f32 %v3184, %v3328
        %v3330 = vpop.f32.mrb[0].mxu0
        %3331 = vmatprep.mubr.f32.mxu0 %v2500
        %3332 = vmatmul.mubr.f32.gmra.mrb[0].mxu0 %v2499
        %v3333 = vpop.f32.mrb[0].mxu0
        %v3334 = vadd.f32 %v3189, %v3333
        %v3335 = vpop.f32.mrb[0].mxu0
        %3336 = vmatprep.mubr.f32.mxu0 %v2519
        %3337 = vmatmul.mubr.f32.gmra.mrb[0].mxu0 %v2518
        %v3338 = vpop.f32.mrb[0].mxu0
        %v3339 = vadd.f32 %v3194, %v3338
        %v3340 = vpop.f32.mrb[0].mxu0
        %3341 = vmatprep.mubr.f32.mxu0 %v2538
        %3342 = vmatmul.mubr.f32.gmra.mrb[0].mxu0 %v2537
        %v3343 = vpop.f32.mrb[0].mxu0
        %v3344 = vadd.f32 %v3199, %v3343
        %v3345 = vpop.f32.mrb[0].mxu0
        %3346 = vmatprep.mubr.f32.mxu0 %v2557
        %3347 = vmatmul.mubr.f32.gmra.mrb[0].mxu0 %v2556
        %v3348 = vpop.f32.mrb[0].mxu0
        %v3349 = vadd.f32 %v3204, %v3348
        %v3350 = vpop.f32.mrb[0].mxu0
        %3351 = vmatprep.mubr.f32.mxu0 %v2576
        %3352 = vmatmul.mubr.f32.gmra.mrb[0].mxu0 %v2575
        %v3353 = vpop.f32.mrb[0].mxu0
        %v3354 = vadd.f32 %v3209, %v3353
        %v3355 = vpop.f32.mrb[0].mxu0
        %3356 = vmatprep.mubr.f32.mxu0 %v2595
        %3357 = vmatmul.mubr.f32.gmra.mrb[0].mxu0 %v2594
        %v3358 = vpop.f32.mrb[0].mxu0
        %v3359 = vadd.f32 %v3214, %v3358
        %v3360 = vpop.f32.mrb[0].mxu0
        %3361 = vmatprep.mubr.f32.mxu0 %v2614
        %3362 = vmatmul.mubr.f32.gmra.mrb[0].mxu0 %v2613
        %v3363 = vpop.f32.mrb[0].mxu0
        %v3364 = vadd.f32 %v3219, %v3363
        %v3365 = vpop.f32.mrb[0].mxu0
        %3366 = vdwg.mxu0
        %3367 = vmatprep.subr.mxu0 0.0
        %3368 = vmatpush1.msra.mxu0 %v2724
        %3369 = vmatprep.subr.mxu0 0.0
        %3370 = vmatpush1.msra.mxu0 %v2725
        %3371 = vmatprep.subr.mxu0 0.0
        %3372 = vmatpush1.msra.mxu0 %v2726
        %3373 = vmatprep.subr.mxu0 0.0
        %3374 = vmatpush1.msra.mxu0 %v2727
        %3375 = vmatprep.subr.mxu0 0.0
        %3376 = vmatpush1.msra.mxu0 %v2728
        %3377 = vmatprep.subr.mxu0 0.0
        %3378 = vmatpush1.msra.mxu0 %v2729
        %3379 = vmatprep.subr.mxu0 0.0
        %3380 = vmatpush1.msra.mxu0 %v2730
        %3381 = vmatprep.subr.mxu0 0.0
        %3382 = vmatpush1.msra.mxu0 %v2731
        %3383 = vmatprep.subr.mxu0 0.0
        %3384 = vmatpush1.msra.mxu0 %v2732
        %3385 = vmatprep.subr.mxu0 0.0
        %3386 = vmatpush1.msra.mxu0 %v2733
        %3387 = vmatprep.subr.mxu0 0.0
        %3388 = vmatpush1.msra.mxu0 %v2734
        %3389 = vmatprep.subr.mxu0 0.0
        %3390 = vmatpush1.msra.mxu0 %v2735
        %3391 = vmatprep.subr.mxu0 0.0
        %3392 = vmatpush1.msra.mxu0 %v2736
        %3393 = vmatprep.subr.mxu0 0.0
        %3394 = vmatpush1.msra.mxu0 %v2737
        %3395 = vmatprep.subr.mxu0 0.0
        %3396 = vmatpush1.msra.mxu0 %v2738
        %3397 = vmatprep.subr.mxu0 0.0
        %3398 = vmatpush1.msra.mxu0 %v2739
        %3399 = vmatprep.subr.mxu0 0.0
        %3400 = vmatpush1.msra.mxu0 %v2740
        %3401 = vmatprep.subr.mxu0 0.0
        %3402 = vmatpush1.msra.mxu0 %v2741
        %3403 = vmatprep.subr.mxu0 0.0
        %3404 = vmatpush1.msra.mxu0 %v2742
        %3405 = vmatprep.subr.mxu0 0.0
        %3406 = vmatpush1.msra.mxu0 %v2743
        %3407 = vmatprep.subr.mxu0 0.0
        %3408 = vmatpush1.msra.mxu0 %v2744
        %3409 = vmatprep.subr.mxu0 0.0
        %3410 = vmatpush1.msra.mxu0 %v2745
        %3411 = vmatprep.subr.mxu0 0.0
        %3412 = vmatpush1.msra.mxu0 %v2746
        %3413 = vmatprep.subr.mxu0 0.0
        %3414 = vmatpush1.msra.mxu0 %v2747
        %3415 = vmatprep.subr.mxu0 0.0
        %3416 = vmatpush1.msra.mxu0 %v2748
        %3417 = vmatprep.subr.mxu0 0.0
        %3418 = vmatpush1.msra.mxu0 %v2749
        %3419 = vmatprep.subr.mxu0 0.0
        %3420 = vmatpush1.msra.mxu0 %v2750
        %3421 = vmatprep.subr.mxu0 0.0
        %3422 = vmatpush1.msra.mxu0 %v2751
        %3423 = vmatprep.subr.mxu0 0.0
        %3424 = vmatpush1.msra.mxu0 %v2752
        %3425 = vmatprep.subr.mxu0 0.0
        %3426 = vmatpush1.msra.mxu0 %v2753
        %3427 = vmatprep.subr.mxu0 0.0
        %3428 = vmatpush1.msra.mxu0 %v2754
        %3429 = vmatprep.subr.mxu0 0.0
        %3430 = vmatpush1.msra.mxu0 %v2755
        %3431 = vmatprep.mubr.f32.mxu0 %v2331
        %3432 = vmatmul.mubr.f32.gmra.mrb[0].mxu0 %v2330
        %v3433 = vpop.f32.mrb[0].mxu0
        %v3434 = vadd.f32 %v3289, %v3433
        %v3435 = vpop.f32.mrb[0].mxu0
        %3436 = vmatprep.mubr.f32.mxu0 %v2350
        %3437 = vmatmul.mubr.f32.gmra.mrb[0].mxu0 %v2349
        %v3438 = vpop.f32.mrb[0].mxu0
        %v3439 = vadd.f32 %v3294, %v3438
        %v3440 = vpop.f32.mrb[0].mxu0
        %3441 = vmatprep.mubr.f32.mxu0 %v2369
        %3442 = vmatmul.mubr.f32.gmra.mrb[0].mxu0 %v2368
        %v3443 = vpop.f32.mrb[0].mxu0
        %v3444 = vadd.f32 %v3299, %v3443
        %v3445 = vpop.f32.mrb[0].mxu0
        %3446 = vmatprep.mubr.f32.mxu0 %v2388
        %3447 = vmatmul.mubr.f32.gmra.mrb[0].mxu0 %v2387
        %v3448 = vpop.f32.mrb[0].mxu0
        %v3449 = vadd.f32 %v3304, %v3448
        %v3450 = vpop.f32.mrb[0].mxu0
        %3451 = vmatprep.mubr.f32.mxu0 %v2407
        %3452 = vmatmul.mubr.f32.gmra.mrb[0].mxu0 %v2406
        %v3453 = vpop.f32.mrb[0].mxu0
        %v3454 = vadd.f32 %v3309, %v3453
        %v3455 = vpop.f32.mrb[0].mxu0
        %3456 = vmatprep.mubr.f32.mxu0 %v2426
        %3457 = vmatmul.mubr.f32.gmra.mrb[0].mxu0 %v2425
        %v3458 = vpop.f32.mrb[0].mxu0
        %v3459 = vadd.f32 %v3314, %v3458
        %v3460 = vpop.f32.mrb[0].mxu0
        %3461 = vmatprep.mubr.f32.mxu0 %v2445
        %3462 = vmatmul.mubr.f32.gmra.mrb[0].mxu0 %v2444
        %v3463 = vpop.f32.mrb[0].mxu0
        %v3464 = vadd.f32 %v3319, %v3463
        %v3465 = vpop.f32.mrb[0].mxu0
        %3466 = vmatprep.mubr.f32.mxu0 %v2464
        %3467 = vmatmul.mubr.f32.gmra.mrb[0].mxu0 %v2463
        %v3468 = vpop.f32.mrb[0].mxu0
        %v3469 = vadd.f32 %v3324, %v3468
        %v3470 = vpop.f32.mrb[0].mxu0
        %3471 = vmatprep.mubr.f32.mxu0 %v2483
        %3472 = vmatmul.mubr.f32.gmra.mrb[0].mxu0 %v2482
        %v3473 = vpop.f32.mrb[0].mxu0
        %v3474 = vadd.f32 %v3329, %v3473
        %v3475 = vpop.f32.mrb[0].mxu0
        %3476 = vmatprep.mubr.f32.mxu0 %v2502
        %3477 = vmatmul.mubr.f32.gmra.mrb[0].mxu0 %v2501
        %v3478 = vpop.f32.mrb[0].mxu0
        %v3479 = vadd.f32 %v3334, %v3478
        %v3480 = vpop.f32.mrb[0].mxu0
        %3481 = vmatprep.mubr.f32.mxu0 %v2521
        %3482 = vmatmul.mubr.f32.gmra.mrb[0].mxu0 %v2520
        %v3483 = vpop.f32.mrb[0].mxu0
        %v3484 = vadd.f32 %v3339, %v3483
        %v3485 = vpop.f32.mrb[0].mxu0
        %3486 = vmatprep.mubr.f32.mxu0 %v2540
        %3487 = vmatmul.mubr.f32.gmra.mrb[0].mxu0 %v2539
        %v3488 = vpop.f32.mrb[0].mxu0
        %v3489 = vadd.f32 %v3344, %v3488
        %v3490 = vpop.f32.mrb[0].mxu0
        %3491 = vmatprep.mubr.f32.mxu0 %v2559
        %3492 = vmatmul.mubr.f32.gmra.mrb[0].mxu0 %v2558
        %v3493 = vpop.f32.mrb[0].mxu0
        %v3494 = vadd.f32 %v3349, %v3493
        %v3495 = vpop.f32.mrb[0].mxu0
        %3496 = vmatprep.mubr.f32.mxu0 %v2578
        %3497 = vmatmul.mubr.f32.gmra.mrb[0].mxu0 %v2577
        %v3498 = vpop.f32.mrb[0].mxu0
        %v3499 = vadd.f32 %v3354, %v3498
        %v3500 = vpop.f32.mrb[0].mxu0
        %3501 = vmatprep.mubr.f32.mxu0 %v2597
        %3502 = vmatmul.mubr.f32.gmra.mrb[0].mxu0 %v2596
        %v3503 = vpop.f32.mrb[0].mxu0
        %v3504 = vadd.f32 %v3359, %v3503
        %v3505 = vpop.f32.mrb[0].mxu0
        %3506 = vmatprep.mubr.f32.mxu0 %v2616
        %3507 = vmatmul.mubr.f32.gmra.mrb[0].mxu0 %v2615
        %v3508 = vpop.f32.mrb[0].mxu0
        %v3509 = vadd.f32 %v3364, %v3508
        %v3510 = vpop.f32.mrb[0].mxu0
        %3511 = vdwg.mxu0
        %3512 = vmatprep.subr.mxu0 0.0
        %3513 = vmatpush1.msra.mxu0 %v2756
        %3514 = vmatprep.subr.mxu0 0.0
        %3515 = vmatpush1.msra.mxu0 %v2757
        %3516 = vmatprep.subr.mxu0 0.0
        %3517 = vmatpush1.msra.mxu0 %v2758
        %3518 = vmatprep.subr.mxu0 0.0
        %3519 = vmatpush1.msra.mxu0 %v2759
        %3520 = vmatprep.subr.mxu0 0.0
        %3521 = vmatpush1.msra.mxu0 %v2760
        %3522 = vmatprep.subr.mxu0 0.0
        %3523 = vmatpush1.msra.mxu0 %v2761
        %3524 = vmatprep.subr.mxu0 0.0
        %3525 = vmatpush1.msra.mxu0 %v2762
        %3526 = vmatprep.subr.mxu0 0.0
        %3527 = vmatpush1.msra.mxu0 %v2763
        %3528 = vmatprep.subr.mxu0 0.0
        %3529 = vmatpush1.msra.mxu0 %v2764
        %3530 = vmatprep.subr.mxu0 0.0
        %3531 = vmatpush1.msra.mxu0 %v2765
        %3532 = vmatprep.subr.mxu0 0.0
        %3533 = vmatpush1.msra.mxu0 %v2766
        %3534 = vmatprep.subr.mxu0 0.0
        %3535 = vmatpush1.msra.mxu0 %v2767
        %3536 = vmatprep.subr.mxu0 0.0
        %3537 = vmatpush1.msra.mxu0 %v2768
        %3538 = vmatprep.subr.mxu0 0.0
        %3539 = vmatpush1.msra.mxu0 %v2769
        %3540 = vmatprep.subr.mxu0 0.0
        %3541 = vmatpush1.msra.mxu0 %v2770
        %3542 = vmatprep.subr.mxu0 0.0
        %3543 = vmatpush1.msra.mxu0 %v2771
        %3544 = vmatprep.subr.mxu0 0.0
        %3545 = vmatpush1.msra.mxu0 %v2772
        %3546 = vmatprep.subr.mxu0 0.0
        %3547 = vmatpush1.msra.mxu0 %v2773
        %3548 = vmatprep.subr.mxu0 0.0
        %3549 = vmatpush1.msra.mxu0 %v2774
        %3550 = vmatprep.subr.mxu0 0.0
        %3551 = vmatpush1.msra.mxu0 %v2775
        %3552 = vmatprep.subr.mxu0 0.0
        %3553 = vmatpush1.msra.mxu0 %v2776
        %3554 = vmatprep.subr.mxu0 0.0
        %3555 = vmatpush1.msra.mxu0 %v2777
        %3556 = vmatprep.subr.mxu0 0.0
        %3557 = vmatpush1.msra.mxu0 %v2778
        %3558 = vmatprep.subr.mxu0 0.0
        %3559 = vmatpush1.msra.mxu0 %v2779
        %3560 = vmatprep.subr.mxu0 0.0
        %3561 = vmatpush1.msra.mxu0 %v2780
        %3562 = vmatprep.subr.mxu0 0.0
        %3563 = vmatpush1.msra.mxu0 %v2781
        %3564 = vmatprep.subr.mxu0 0.0
        %3565 = vmatpush1.msra.mxu0 %v2782
        %3566 = vmatprep.subr.mxu0 0.0
        %3567 = vmatpush1.msra.mxu0 %v2783
        %3568 = vmatprep.subr.mxu0 0.0
        %3569 = vmatpush1.msra.mxu0 %v2784
        %3570 = vmatprep.subr.mxu0 0.0
        %3571 = vmatpush1.msra.mxu0 %v2785
        %3572 = vmatprep.subr.mxu0 0.0
        %3573 = vmatpush1.msra.mxu0 %v2786
        %3574 = vmatprep.subr.mxu0 0.0
        %3575 = vmatpush1.msra.mxu0 %v2787
        %3576 = vmatprep.mubr.f32.mxu0 %v2333
        %3577 = vmatmul.mubr.f32.gmra.mrb[0].mxu0 %v2332
        %v3578 = vpop.f32.mrb[0].mxu0
        %v3579 = vadd.f32 %v3434, %v3578
        %v3580 = vpop.f32.mrb[0].mxu0
        %3581 = vmatprep.mubr.f32.mxu0 %v2352
        %3582 = vmatmul.mubr.f32.gmra.mrb[0].mxu0 %v2351
        %v3583 = vpop.f32.mrb[0].mxu0
        %v3584 = vadd.f32 %v3439, %v3583
        %v3585 = vpop.f32.mrb[0].mxu0
        %3586 = vmatprep.mubr.f32.mxu0 %v2371
        %3587 = vmatmul.mubr.f32.gmra.mrb[0].mxu0 %v2370
        %v3588 = vpop.f32.mrb[0].mxu0
        %v3589 = vadd.f32 %v3444, %v3588
        %v3590 = vpop.f32.mrb[0].mxu0
        %3591 = vmatprep.mubr.f32.mxu0 %v2390
        %3592 = vmatmul.mubr.f32.gmra.mrb[0].mxu0 %v2389
        %v3593 = vpop.f32.mrb[0].mxu0
        %v3594 = vadd.f32 %v3449, %v3593
        %v3595 = vpop.f32.mrb[0].mxu0
        %3596 = vmatprep.mubr.f32.mxu0 %v2409
        %3597 = vmatmul.mubr.f32.gmra.mrb[0].mxu0 %v2408
        %v3598 = vpop.f32.mrb[0].mxu0
        %v3599 = vadd.f32 %v3454, %v3598
        %v3600 = vpop.f32.mrb[0].mxu0
        %3601 = vmatprep.mubr.f32.mxu0 %v2428
        %3602 = vmatmul.mubr.f32.gmra.mrb[0].mxu0 %v2427
        %v3603 = vpop.f32.mrb[0].mxu0
        %v3604 = vadd.f32 %v3459, %v3603
        %v3605 = vpop.f32.mrb[0].mxu0
        %3606 = vmatprep.mubr.f32.mxu0 %v2447
        %3607 = vmatmul.mubr.f32.gmra.mrb[0].mxu0 %v2446
        %v3608 = vpop.f32.mrb[0].mxu0
        %v3609 = vadd.f32 %v3464, %v3608
        %v3610 = vpop.f32.mrb[0].mxu0
        %3611 = vmatprep.mubr.f32.mxu0 %v2466
        %3612 = vmatmul.mubr.f32.gmra.mrb[0].mxu0 %v2465
        %v3613 = vpop.f32.mrb[0].mxu0
        %v3614 = vadd.f32 %v3469, %v3613
        %v3615 = vpop.f32.mrb[0].mxu0
        %3616 = vmatprep.mubr.f32.mxu0 %v2485
        %3617 = vmatmul.mubr.f32.gmra.mrb[0].mxu0 %v2484
        %v3618 = vpop.f32.mrb[0].mxu0
        %v3619 = vadd.f32 %v3474, %v3618
        %v3620 = vpop.f32.mrb[0].mxu0
        %3621 = vmatprep.mubr.f32.mxu0 %v2504
        %3622 = vmatmul.mubr.f32.gmra.mrb[0].mxu0 %v2503
        %v3623 = vpop.f32.mrb[0].mxu0
        %v3624 = vadd.f32 %v3479, %v3623
        %v3625 = vpop.f32.mrb[0].mxu0
        %3626 = vmatprep.mubr.f32.mxu0 %v2523
        %3627 = vmatmul.mubr.f32.gmra.mrb[0].mxu0 %v2522
        %v3628 = vpop.f32.mrb[0].mxu0
        %v3629 = vadd.f32 %v3484, %v3628
        %v3630 = vpop.f32.mrb[0].mxu0
        %3631 = vmatprep.mubr.f32.mxu0 %v2542
        %3632 = vmatmul.mubr.f32.gmra.mrb[0].mxu0 %v2541
        %v3633 = vpop.f32.mrb[0].mxu0
        %v3634 = vadd.f32 %v3489, %v3633
        %v3635 = vpop.f32.mrb[0].mxu0
        %3636 = vmatprep.mubr.f32.mxu0 %v2561
        %3637 = vmatmul.mubr.f32.gmra.mrb[0].mxu0 %v2560
        %v3638 = vpop.f32.mrb[0].mxu0
        %v3639 = vadd.f32 %v3494, %v3638
        %v3640 = vpop.f32.mrb[0].mxu0
        %3641 = vmatprep.mubr.f32.mxu0 %v2580
        %3642 = vmatmul.mubr.f32.gmra.mrb[0].mxu0 %v2579
        %v3643 = vpop.f32.mrb[0].mxu0
        %v3644 = vadd.f32 %v3499, %v3643
        %v3645 = vpop.f32.mrb[0].mxu0
        %3646 = vmatprep.mubr.f32.mxu0 %v2599
        %3647 = vmatmul.mubr.f32.gmra.mrb[0].mxu0 %v2598
        %v3648 = vpop.f32.mrb[0].mxu0
        %v3649 = vadd.f32 %v3504, %v3648
        %v3650 = vpop.f32.mrb[0].mxu0
        %3651 = vmatprep.mubr.f32.mxu0 %v2618
        %3652 = vmatmul.mubr.f32.gmra.mrb[0].mxu0 %v2617
        %v3653 = vpop.f32.mrb[0].mxu0
        %v3654 = vadd.f32 %v3509, %v3653
        %v3655 = vpop.f32.mrb[0].mxu0
        %3656 = vdwg.mxu0
        %3657 = vmatprep.subr.mxu0 0.0
        %3658 = vmatpush1.msra.mxu0 %v2788
        %3659 = vmatprep.subr.mxu0 0.0
        %3660 = vmatpush1.msra.mxu0 %v2789
        %3661 = vmatprep.subr.mxu0 0.0
        %3662 = vmatpush1.msra.mxu0 %v2790
        %3663 = vmatprep.subr.mxu0 0.0
        %3664 = vmatpush1.msra.mxu0 %v2791
        %3665 = vmatprep.subr.mxu0 0.0
        %3666 = vmatpush1.msra.mxu0 %v2792
        %3667 = vmatprep.subr.mxu0 0.0
        %3668 = vmatpush1.msra.mxu0 %v2793
        %3669 = vmatprep.subr.mxu0 0.0
        %3670 = vmatpush1.msra.mxu0 %v2794
        %3671 = vmatprep.subr.mxu0 0.0
        %3672 = vmatpush1.msra.mxu0 %v2795
        %3673 = vmatprep.subr.mxu0 0.0
        %3674 = vmatpush1.msra.mxu0 %v2796
        %3675 = vmatprep.subr.mxu0 0.0
        %3676 = vmatpush1.msra.mxu0 %v2797
        %3677 = vmatprep.subr.mxu0 0.0
        %3678 = vmatpush1.msra.mxu0 %v2798
        %3679 = vmatprep.subr.mxu0 0.0
        %3680 = vmatpush1.msra.mxu0 %v2799
        %3681 = vmatprep.subr.mxu0 0.0
        %3682 = vmatpush1.msra.mxu0 %v2800
        %3683 = vmatprep.subr.mxu0 0.0
        %3684 = vmatpush1.msra.mxu0 %v2801
        %3685 = vmatprep.subr.mxu0 0.0
        %3686 = vmatpush1.msra.mxu0 %v2802
        %3687 = vmatprep.subr.mxu0 0.0
        %3688 = vmatpush1.msra.mxu0 %v2803
        %3689 = vmatprep.subr.mxu0 0.0
        %3690 = vmatpush1.msra.mxu0 %v2804
        %3691 = vmatprep.subr.mxu0 0.0
        %3692 = vmatpush1.msra.mxu0 %v2805
        %3693 = vmatprep.subr.mxu0 0.0
        %3694 = vmatpush1.msra.mxu0 %v2806
        %3695 = vmatprep.subr.mxu0 0.0
        %3696 = vmatpush1.msra.mxu0 %v2807
        %3697 = vmatprep.subr.mxu0 0.0
        %3698 = vmatpush1.msra.mxu0 %v2808
        %3699 = vmatprep.subr.mxu0 0.0
        %3700 = vmatpush1.msra.mxu0 %v2809
        %3701 = vmatprep.subr.mxu0 0.0
        %3702 = vmatpush1.msra.mxu0 %v2810
        %3703 = vmatprep.subr.mxu0 0.0
        %3704 = vmatpush1.msra.mxu0 %v2811
        %3705 = vmatprep.subr.mxu0 0.0
        %3706 = vmatpush1.msra.mxu0 %v2812
        %3707 = vmatprep.subr.mxu0 0.0
        %3708 = vmatpush1.msra.mxu0 %v2813
        %3709 = vmatprep.subr.mxu0 0.0
        %3710 = vmatpush1.msra.mxu0 %v2814
        %3711 = vmatprep.subr.mxu0 0.0
        %3712 = vmatpush1.msra.mxu0 %v2815
        %3713 = vmatprep.subr.mxu0 0.0
        %3714 = vmatpush1.msra.mxu0 %v2816
        %3715 = vmatprep.subr.mxu0 0.0
        %3716 = vmatpush1.msra.mxu0 %v2817
        %3717 = vmatprep.subr.mxu0 0.0
        %3718 = vmatpush1.msra.mxu0 %v2818
        %3719 = vmatprep.subr.mxu0 0.0
        %3720 = vmatpush1.msra.mxu0 %v2819
        %3721 = vmatprep.mubr.f32.mxu0 %v2335
        %3722 = vmatmul.mubr.f32.gmra.mrb[0].mxu0 %v2334
        %v3723 = vpop.f32.mrb[0].mxu0
        %v3724 = vadd.f32 %v3579, %v3723
        %v3725 = vpop.f32.mrb[0].mxu0
        %3726 = vmatprep.mubr.f32.mxu0 %v2354
        %3727 = vmatmul.mubr.f32.gmra.mrb[0].mxu0 %v2353
        %v3728 = vpop.f32.mrb[0].mxu0
        %v3729 = vadd.f32 %v3584, %v3728
        %v3730 = vpop.f32.mrb[0].mxu0
        %3731 = vmatprep.mubr.f32.mxu0 %v2373
        %3732 = vmatmul.mubr.f32.gmra.mrb[0].mxu0 %v2372
        %v3733 = vpop.f32.mrb[0].mxu0
        %v3734 = vadd.f32 %v3589, %v3733
        %v3735 = vpop.f32.mrb[0].mxu0
        %3736 = vmatprep.mubr.f32.mxu0 %v2392
        %3737 = vmatmul.mubr.f32.gmra.mrb[0].mxu0 %v2391
        %v3738 = vpop.f32.mrb[0].mxu0
        %v3739 = vadd.f32 %v3594, %v3738
        %v3740 = vpop.f32.mrb[0].mxu0
        %3741 = vmatprep.mubr.f32.mxu0 %v2411
        %3742 = vmatmul.mubr.f32.gmra.mrb[0].mxu0 %v2410
        %v3743 = vpop.f32.mrb[0].mxu0
        %v3744 = vadd.f32 %v3599, %v3743
        %v3745 = vpop.f32.mrb[0].mxu0
        %3746 = vmatprep.mubr.f32.mxu0 %v2430
        %3747 = vmatmul.mubr.f32.gmra.mrb[0].mxu0 %v2429
        %v3748 = vpop.f32.mrb[0].mxu0
        %v3749 = vadd.f32 %v3604, %v3748
        %v3750 = vpop.f32.mrb[0].mxu0
        %3751 = vmatprep.mubr.f32.mxu0 %v2449
        %3752 = vmatmul.mubr.f32.gmra.mrb[0].mxu0 %v2448
        %v3753 = vpop.f32.mrb[0].mxu0
        %v3754 = vadd.f32 %v3609, %v3753
        %v3755 = vpop.f32.mrb[0].mxu0
        %3756 = vmatprep.mubr.f32.mxu0 %v2468
        %3757 = vmatmul.mubr.f32.gmra.mrb[0].mxu0 %v2467
        %v3758 = vpop.f32.mrb[0].mxu0
        %v3759 = vadd.f32 %v3614, %v3758
        %v3760 = vpop.f32.mrb[0].mxu0
        %3761 = vmatprep.mubr.f32.mxu0 %v2487
        %3762 = vmatmul.mubr.f32.gmra.mrb[0].mxu0 %v2486
        %v3763 = vpop.f32.mrb[0].mxu0
        %v3764 = vadd.f32 %v3619, %v3763
        %v3765 = vpop.f32.mrb[0].mxu0
        %3766 = vmatprep.mubr.f32.mxu0 %v2506
        %3767 = vmatmul.mubr.f32.gmra.mrb[0].mxu0 %v2505
        %v3768 = vpop.f32.mrb[0].mxu0
        %v3769 = vadd.f32 %v3624, %v3768
        %v3770 = vpop.f32.mrb[0].mxu0
        %3771 = vmatprep.mubr.f32.mxu0 %v2525
        %3772 = vmatmul.mubr.f32.gmra.mrb[0].mxu0 %v2524
        %v3773 = vpop.f32.mrb[0].mxu0
        %v3774 = vadd.f32 %v3629, %v3773
        %v3775 = vpop.f32.mrb[0].mxu0
        %3776 = vmatprep.mubr.f32.mxu0 %v2544
        %3777 = vmatmul.mubr.f32.gmra.mrb[0].mxu0 %v2543
        %v3778 = vpop.f32.mrb[0].mxu0
        %v3779 = vadd.f32 %v3634, %v3778
        %v3780 = vpop.f32.mrb[0].mxu0
        %3781 = vmatprep.mubr.f32.mxu0 %v2563
        %3782 = vmatmul.mubr.f32.gmra.mrb[0].mxu0 %v2562
        %v3783 = vpop.f32.mrb[0].mxu0
        %v3784 = vadd.f32 %v3639, %v3783
        %v3785 = vpop.f32.mrb[0].mxu0
        %3786 = vmatprep.mubr.f32.mxu0 %v2582
        %3787 = vmatmul.mubr.f32.gmra.mrb[0].mxu0 %v2581
        %v3788 = vpop.f32.mrb[0].mxu0
        %v3789 = vadd.f32 %v3644, %v3788
        %v3790 = vpop.f32.mrb[0].mxu0
        %3791 = vmatprep.mubr.f32.mxu0 %v2601
        %3792 = vmatmul.mubr.f32.gmra.mrb[0].mxu0 %v2600
        %v3793 = vpop.f32.mrb[0].mxu0
        %v3794 = vadd.f32 %v3649, %v3793
        %v3795 = vpop.f32.mrb[0].mxu0
        %3796 = vmatprep.mubr.f32.mxu0 %v2620
        %3797 = vmatmul.mubr.f32.gmra.mrb[0].mxu0 %v2619
        %v3798 = vpop.f32.mrb[0].mxu0
        %v3799 = vadd.f32 %v3654, %v3798
        %v3800 = vpop.f32.mrb[0].mxu0
        %3801 = vdwg.mxu0
        %3802 = vmatprep.subr.mxu0 0.0
        %3803 = vmatpush1.msra.mxu0 %v2820
        %3804 = vmatprep.subr.mxu0 0.0
        %3805 = vmatpush1.msra.mxu0 %v2821
        %3806 = vmatprep.subr.mxu0 0.0
        %3807 = vmatpush1.msra.mxu0 %v2822
        %3808 = vmatprep.subr.mxu0 0.0
        %3809 = vmatpush1.msra.mxu0 %v2823
        %3810 = vmatprep.subr.mxu0 0.0
        %3811 = vmatpush1.msra.mxu0 %v2824
        %3812 = vmatprep.subr.mxu0 0.0
        %3813 = vmatpush1.msra.mxu0 %v2825
        %3814 = vmatprep.subr.mxu0 0.0
        %3815 = vmatpush1.msra.mxu0 %v2826
        %3816 = vmatprep.subr.mxu0 0.0
        %3817 = vmatpush1.msra.mxu0 %v2827
        %3818 = vmatprep.subr.mxu0 0.0
        %3819 = vmatpush1.msra.mxu0 %v2828
        %3820 = vmatprep.subr.mxu0 0.0
        %3821 = vmatpush1.msra.mxu0 %v2829
        %3822 = vmatprep.subr.mxu0 0.0
        %3823 = vmatpush1.msra.mxu0 %v2830
        %3824 = vmatprep.subr.mxu0 0.0
        %3825 = vmatpush1.msra.mxu0 %v2831
        %3826 = vmatprep.subr.mxu0 0.0
        %3827 = vmatpush1.msra.mxu0 %v2832
        %3828 = vmatprep.subr.mxu0 0.0
        %3829 = vmatpush1.msra.mxu0 %v2833
        %3830 = vmatprep.subr.mxu0 0.0
        %3831 = vmatpush1.msra.mxu0 %v2834
        %3832 = vmatprep.subr.mxu0 0.0
        %3833 = vmatpush1.msra.mxu0 %v2835
        %3834 = vmatprep.subr.mxu0 0.0
        %3835 = vmatpush1.msra.mxu0 %v2836
        %3836 = vmatprep.subr.mxu0 0.0
        %3837 = vmatpush1.msra.mxu0 %v2837
        %3838 = vmatprep.subr.mxu0 0.0
        %3839 = vmatpush1.msra.mxu0 %v2838
        %3840 = vmatprep.subr.mxu0 0.0
        %3841 = vmatpush1.msra.mxu0 %v2839
        %3842 = vmatprep.subr.mxu0 0.0
        %3843 = vmatpush1.msra.mxu0 %v2840
        %3844 = vmatprep.subr.mxu0 0.0
        %3845 = vmatpush1.msra.mxu0 %v2841
        %3846 = vmatprep.subr.mxu0 0.0
        %3847 = vmatpush1.msra.mxu0 %v2842
        %3848 = vmatprep.subr.mxu0 0.0
        %3849 = vmatpush1.msra.mxu0 %v2843
        %3850 = vmatprep.subr.mxu0 0.0
        %3851 = vmatpush1.msra.mxu0 %v2844
        %3852 = vmatprep.subr.mxu0 0.0
        %3853 = vmatpush1.msra.mxu0 %v2845
        %3854 = vmatprep.subr.mxu0 0.0
        %3855 = vmatpush1.msra.mxu0 %v2846
        %3856 = vmatprep.subr.mxu0 0.0
        %3857 = vmatpush1.msra.mxu0 %v2847
        %3858 = vmatprep.subr.mxu0 0.0
        %3859 = vmatpush1.msra.mxu0 %v2848
        %3860 = vmatprep.subr.mxu0 0.0
        %3861 = vmatpush1.msra.mxu0 %v2849
        %3862 = vmatprep.subr.mxu0 0.0
        %3863 = vmatpush1.msra.mxu0 %v2850
        %3864 = vmatprep.subr.mxu0 0.0
        %3865 = vmatpush1.msra.mxu0 %v2851
        %3866 = vmatprep.mubr.f32.mxu0 %v2337
        %3867 = vmatmul.mubr.f32.gmra.mrb[0].mxu0 %v2336
        %v3868 = vpop.f32.mrb[0].mxu0
        %v3869 = vadd.f32 %v3724, %v3868
        %v3870 = vpop.f32.mrb[0].mxu0
        %3871 = vmatprep.mubr.f32.mxu0 %v2356
        %3872 = vmatmul.mubr.f32.gmra.mrb[0].mxu0 %v2355
        %v3873 = vpop.f32.mrb[0].mxu0
        %v3874 = vadd.f32 %v3729, %v3873
        %v3875 = vpop.f32.mrb[0].mxu0
        %3876 = vmatprep.mubr.f32.mxu0 %v2375
        %3877 = vmatmul.mubr.f32.gmra.mrb[0].mxu0 %v2374
        %v3878 = vpop.f32.mrb[0].mxu0
        %v3879 = vadd.f32 %v3734, %v3878
        %v3880 = vpop.f32.mrb[0].mxu0
        %3881 = vmatprep.mubr.f32.mxu0 %v2394
        %3882 = vmatmul.mubr.f32.gmra.mrb[0].mxu0 %v2393
        %v3883 = vpop.f32.mrb[0].mxu0
        %v3884 = vadd.f32 %v3739, %v3883
        %v3885 = vpop.f32.mrb[0].mxu0
        %3886 = vmatprep.mubr.f32.mxu0 %v2413
        %3887 = vmatmul.mubr.f32.gmra.mrb[0].mxu0 %v2412
        %v3888 = vpop.f32.mrb[0].mxu0
        %v3889 = vadd.f32 %v3744, %v3888
        %v3890 = vpop.f32.mrb[0].mxu0
        %3891 = vmatprep.mubr.f32.mxu0 %v2432
        %3892 = vmatmul.mubr.f32.gmra.mrb[0].mxu0 %v2431
        %v3893 = vpop.f32.mrb[0].mxu0
        %v3894 = vadd.f32 %v3749, %v3893
        %v3895 = vpop.f32.mrb[0].mxu0
        %3896 = vmatprep.mubr.f32.mxu0 %v2451
        %3897 = vmatmul.mubr.f32.gmra.mrb[0].mxu0 %v2450
        %v3898 = vpop.f32.mrb[0].mxu0
        %v3899 = vadd.f32 %v3754, %v3898
        %v3900 = vpop.f32.mrb[0].mxu0
        %3901 = vmatprep.mubr.f32.mxu0 %v2470
        %3902 = vmatmul.mubr.f32.gmra.mrb[0].mxu0 %v2469
        %v3903 = vpop.f32.mrb[0].mxu0
        %v3904 = vadd.f32 %v3759, %v3903
        %v3905 = vpop.f32.mrb[0].mxu0
        %3906 = vmatprep.mubr.f32.mxu0 %v2489
        %3907 = vmatmul.mubr.f32.gmra.mrb[0].mxu0 %v2488
        %v3908 = vpop.f32.mrb[0].mxu0
        %v3909 = vadd.f32 %v3764, %v3908
        %v3910 = vpop.f32.mrb[0].mxu0
        %3911 = vmatprep.mubr.f32.mxu0 %v2508
        %3912 = vmatmul.mubr.f32.gmra.mrb[0].mxu0 %v2507
        %v3913 = vpop.f32.mrb[0].mxu0
        %v3914 = vadd.f32 %v3769, %v3913
        %v3915 = vpop.f32.mrb[0].mxu0
        %3916 = vmatprep.mubr.f32.mxu0 %v2527
        %3917 = vmatmul.mubr.f32.gmra.mrb[0].mxu0 %v2526
        %v3918 = vpop.f32.mrb[0].mxu0
        %v3919 = vadd.f32 %v3774, %v3918
        %v3920 = vpop.f32.mrb[0].mxu0
        %3921 = vmatprep.mubr.f32.mxu0 %v2546
        %3922 = vmatmul.mubr.f32.gmra.mrb[0].mxu0 %v2545
        %v3923 = vpop.f32.mrb[0].mxu0
        %v3924 = vadd.f32 %v3779, %v3923
        %v3925 = vpop.f32.mrb[0].mxu0
        %3926 = vmatprep.mubr.f32.mxu0 %v2565
        %3927 = vmatmul.mubr.f32.gmra.mrb[0].mxu0 %v2564
        %v3928 = vpop.f32.mrb[0].mxu0
        %v3929 = vadd.f32 %v3784, %v3928
        %v3930 = vpop.f32.mrb[0].mxu0
        %3931 = vmatprep.mubr.f32.mxu0 %v2584
        %3932 = vmatmul.mubr.f32.gmra.mrb[0].mxu0 %v2583
        %v3933 = vpop.f32.mrb[0].mxu0
        %v3934 = vadd.f32 %v3789, %v3933
        %v3935 = vpop.f32.mrb[0].mxu0
        %3936 = vmatprep.mubr.f32.mxu0 %v2603
        %3937 = vmatmul.mubr.f32.gmra.mrb[0].mxu0 %v2602
        %v3938 = vpop.f32.mrb[0].mxu0
        %v3939 = vadd.f32 %v3794, %v3938
        %v3940 = vpop.f32.mrb[0].mxu0
        %3941 = vmatprep.mubr.f32.mxu0 %v2622
        %3942 = vmatmul.mubr.f32.gmra.mrb[0].mxu0 %v2621
        %v3943 = vpop.f32.mrb[0].mxu0
        %v3944 = vadd.f32 %v3799, %v3943
        %v3945 = vpop.f32.mrb[0].mxu0
        %3946 = vdwg.mxu0
        %3947 = vmatprep.subr.mxu0 0.0
        %3948 = vmatpush1.msra.mxu0 %v2852
        %3949 = vmatprep.subr.mxu0 0.0
        %3950 = vmatpush1.msra.mxu0 %v2853
        %3951 = vmatprep.subr.mxu0 0.0
        %3952 = vmatpush1.msra.mxu0 %v2854
        %3953 = vmatprep.subr.mxu0 0.0
        %3954 = vmatpush1.msra.mxu0 %v2855
        %3955 = vmatprep.subr.mxu0 0.0
        %3956 = vmatpush1.msra.mxu0 %v2856
        %3957 = vmatprep.subr.mxu0 0.0
        %3958 = vmatpush1.msra.mxu0 %v2857
        %3959 = vmatprep.subr.mxu0 0.0
        %3960 = vmatpush1.msra.mxu0 %v2858
        %3961 = vmatprep.subr.mxu0 0.0
        %3962 = vmatpush1.msra.mxu0 %v2859
        %3963 = vmatprep.subr.mxu0 0.0
        %3964 = vmatpush1.msra.mxu0 %v2860
        %3965 = vmatprep.subr.mxu0 0.0
        %3966 = vmatpush1.msra.mxu0 %v2861
        %3967 = vmatprep.subr.mxu0 0.0
        %3968 = vmatpush1.msra.mxu0 %v2862
        %3969 = vmatprep.subr.mxu0 0.0
        %3970 = vmatpush1.msra.mxu0 %v2863
        %3971 = vmatprep.subr.mxu0 0.0
        %3972 = vmatpush1.msra.mxu0 %v2864
        %3973 = vmatprep.subr.mxu0 0.0
        %3974 = vmatpush1.msra.mxu0 %v2865
        %3975 = vmatprep.subr.mxu0 0.0
        %3976 = vmatpush1.msra.mxu0 %v2866
        %3977 = vmatprep.subr.mxu0 0.0
        %3978 = vmatpush1.msra.mxu0 %v2867
        %3979 = vmatprep.subr.mxu0 0.0
        %3980 = vmatpush1.msra.mxu0 %v2868
        %3981 = vmatprep.subr.mxu0 0.0
        %3982 = vmatpush1.msra.mxu0 %v2869
        %3983 = vmatprep.subr.mxu0 0.0
        %3984 = vmatpush1.msra.mxu0 %v2870
        %3985 = vmatprep.subr.mxu0 0.0
        %3986 = vmatpush1.msra.mxu0 %v2871
        %3987 = vmatprep.subr.mxu0 0.0
        %3988 = vmatpush1.msra.mxu0 %v2872
        %3989 = vmatprep.subr.mxu0 0.0
        %3990 = vmatpush1.msra.mxu0 %v2873
        %3991 = vmatprep.subr.mxu0 0.0
        %3992 = vmatpush1.msra.mxu0 %v2874
        %3993 = vmatprep.subr.mxu0 0.0
        %3994 = vmatpush1.msra.mxu0 %v2875
        %3995 = vmatprep.subr.mxu0 0.0
        %3996 = vmatpush1.msra.mxu0 %v2876
        %3997 = vmatprep.subr.mxu0 0.0
        %3998 = vmatpush1.msra.mxu0 %v2877
        %3999 = vmatprep.subr.mxu0 0.0
        %4000 = vmatpush1.msra.mxu0 %v2878
        %4001 = vmatprep.subr.mxu0 0.0
        %4002 = vmatpush1.msra.mxu0 %v2879
        %4003 = vmatprep.subr.mxu0 0.0
        %4004 = vmatpush1.msra.mxu0 %v2880
        %4005 = vmatprep.subr.mxu0 0.0
        %4006 = vmatpush1.msra.mxu0 %v2881
        %4007 = vmatprep.subr.mxu0 0.0
        %4008 = vmatpush1.msra.mxu0 %v2882
        %4009 = vmatprep.subr.mxu0 0.0
        %4010 = vmatpush1.msra.mxu0 %v2883
        %4011 = vmatprep.mubr.f32.mxu0 %v2339
        %4012 = vmatmul.mubr.f32.gmra.mrb[0].mxu0 %v2338
        %v4013 = vpop.f32.mrb[0].mxu0
        %v4014 = vadd.f32 %v3869, %v4013
        %v4015 = vpop.f32.mrb[0].mxu0
        %4016 = vmatprep.mubr.f32.mxu0 %v2358
        %4017 = vmatmul.mubr.f32.gmra.mrb[0].mxu0 %v2357
        %v4018 = vpop.f32.mrb[0].mxu0
        %v4019 = vadd.f32 %v3874, %v4018
        %v4020 = vpop.f32.mrb[0].mxu0
        %4021 = vmatprep.mubr.f32.mxu0 %v2377
        %4022 = vmatmul.mubr.f32.gmra.mrb[0].mxu0 %v2376
        %v4023 = vpop.f32.mrb[0].mxu0
        %v4024 = vadd.f32 %v3879, %v4023
        %v4025 = vpop.f32.mrb[0].mxu0
        %4026 = vmatprep.mubr.f32.mxu0 %v2396
        %4027 = vmatmul.mubr.f32.gmra.mrb[0].mxu0 %v2395
        %v4028 = vpop.f32.mrb[0].mxu0
        %v4029 = vadd.f32 %v3884, %v4028
        %v4030 = vpop.f32.mrb[0].mxu0
        %4031 = vmatprep.mubr.f32.mxu0 %v2415
        %4032 = vmatmul.mubr.f32.gmra.mrb[0].mxu0 %v2414
        %v4033 = vpop.f32.mrb[0].mxu0
        %v4034 = vadd.f32 %v3889, %v4033
        %v4035 = vpop.f32.mrb[0].mxu0
        %4036 = vmatprep.mubr.f32.mxu0 %v2434
        %4037 = vmatmul.mubr.f32.gmra.mrb[0].mxu0 %v2433
        %v4038 = vpop.f32.mrb[0].mxu0
        %v4039 = vadd.f32 %v3894, %v4038
        %v4040 = vpop.f32.mrb[0].mxu0
        %4041 = vmatprep.mubr.f32.mxu0 %v2453
        %4042 = vmatmul.mubr.f32.gmra.mrb[0].mxu0 %v2452
        %v4043 = vpop.f32.mrb[0].mxu0
        %v4044 = vadd.f32 %v3899, %v4043
        %v4045 = vpop.f32.mrb[0].mxu0
        %4046 = vmatprep.mubr.f32.mxu0 %v2472
        %4047 = vmatmul.mubr.f32.gmra.mrb[0].mxu0 %v2471
        %v4048 = vpop.f32.mrb[0].mxu0
        %v4049 = vadd.f32 %v3904, %v4048
        %v4050 = vpop.f32.mrb[0].mxu0
        %4051 = vmatprep.mubr.f32.mxu0 %v2491
        %4052 = vmatmul.mubr.f32.gmra.mrb[0].mxu0 %v2490
        %v4053 = vpop.f32.mrb[0].mxu0
        %v4054 = vadd.f32 %v3909, %v4053
        %v4055 = vpop.f32.mrb[0].mxu0
        %4056 = vmatprep.mubr.f32.mxu0 %v2510
        %4057 = vmatmul.mubr.f32.gmra.mrb[0].mxu0 %v2509
        %v4058 = vpop.f32.mrb[0].mxu0
        %v4059 = vadd.f32 %v3914, %v4058
        %v4060 = vpop.f32.mrb[0].mxu0
        %4061 = vmatprep.mubr.f32.mxu0 %v2529
        %4062 = vmatmul.mubr.f32.gmra.mrb[0].mxu0 %v2528
        %v4063 = vpop.f32.mrb[0].mxu0
        %v4064 = vadd.f32 %v3919, %v4063
        %v4065 = vpop.f32.mrb[0].mxu0
        %4066 = vmatprep.mubr.f32.mxu0 %v2548
        %4067 = vmatmul.mubr.f32.gmra.mrb[0].mxu0 %v2547
        %v4068 = vpop.f32.mrb[0].mxu0
        %v4069 = vadd.f32 %v3924, %v4068
        %v4070 = vpop.f32.mrb[0].mxu0
        %4071 = vmatprep.mubr.f32.mxu0 %v2567
        %4072 = vmatmul.mubr.f32.gmra.mrb[0].mxu0 %v2566
        %v4073 = vpop.f32.mrb[0].mxu0
        %v4074 = vadd.f32 %v3929, %v4073
        %v4075 = vpop.f32.mrb[0].mxu0
        %4076 = vmatprep.mubr.f32.mxu0 %v2586
        %4077 = vmatmul.mubr.f32.gmra.mrb[0].mxu0 %v2585
        %v4078 = vpop.f32.mrb[0].mxu0
        %v4079 = vadd.f32 %v3934, %v4078
        %v4080 = vpop.f32.mrb[0].mxu0
        %4081 = vmatprep.mubr.f32.mxu0 %v2605
        %4082 = vmatmul.mubr.f32.gmra.mrb[0].mxu0 %v2604
        %v4083 = vpop.f32.mrb[0].mxu0
        %v4084 = vadd.f32 %v3939, %v4083
        %v4085 = vpop.f32.mrb[0].mxu0
        %4086 = vmatprep.mubr.f32.mxu0 %v2624
        %4087 = vmatmul.mubr.f32.gmra.mrb[0].mxu0 %v2623
        %v4088 = vpop.f32.mrb[0].mxu0
        %v4089 = vadd.f32 %v3944, %v4088
        %v4090 = vpop.f32.mrb[0].mxu0
        %4091 = vdwg.mxu0
        %4092 = vmatprep.subr.mxu0 0.0
        %4093 = vmatpush1.msra.mxu0 %v2884
        %4094 = vmatprep.subr.mxu0 0.0
        %4095 = vmatpush1.msra.mxu0 %v2885
        %4096 = vmatprep.subr.mxu0 0.0
        %4097 = vmatpush1.msra.mxu0 %v2886
        %4098 = vmatprep.subr.mxu0 0.0
        %4099 = vmatpush1.msra.mxu0 %v2887
        %4100 = vmatprep.subr.mxu0 0.0
        %4101 = vmatpush1.msra.mxu0 %v2888
        %4102 = vmatprep.subr.mxu0 0.0
        %4103 = vmatpush1.msra.mxu0 %v2889
        %4104 = vmatprep.subr.mxu0 0.0
        %4105 = vmatpush1.msra.mxu0 %v2890
        %4106 = vmatprep.subr.mxu0 0.0
        %4107 = vmatpush1.msra.mxu0 %v2891
        %4108 = vmatprep.subr.mxu0 0.0
        %4109 = vmatpush1.msra.mxu0 %v2892
        %4110 = vmatprep.subr.mxu0 0.0
        %4111 = vmatpush1.msra.mxu0 %v2893
        %4112 = vmatprep.subr.mxu0 0.0
        %4113 = vmatpush1.msra.mxu0 %v2894
        %4114 = vmatprep.subr.mxu0 0.0
        %4115 = vmatpush1.msra.mxu0 %v2895
        %4116 = vmatprep.subr.mxu0 0.0
        %4117 = vmatpush1.msra.mxu0 %v2896
        %4118 = vmatprep.subr.mxu0 0.0
        %4119 = vmatpush1.msra.mxu0 %v2897
        %4120 = vmatprep.subr.mxu0 0.0
        %4121 = vmatpush1.msra.mxu0 %v2898
        %4122 = vmatprep.subr.mxu0 0.0
        %4123 = vmatpush1.msra.mxu0 %v2899
        %4124 = vmatprep.subr.mxu0 0.0
        %4125 = vmatpush1.msra.mxu0 %v2900
        %4126 = vmatprep.subr.mxu0 0.0
        %4127 = vmatpush1.msra.mxu0 %v2901
        %4128 = vmatprep.subr.mxu0 0.0
        %4129 = vmatpush1.msra.mxu0 %v2902
        %4130 = vmatprep.subr.mxu0 0.0
        %4131 = vmatpush1.msra.mxu0 %v2903
        %4132 = vmatprep.subr.mxu0 0.0
        %4133 = vmatpush1.msra.mxu0 %v2904
        %4134 = vmatprep.subr.mxu0 0.0
        %4135 = vmatpush1.msra.mxu0 %v2905
        %4136 = vmatprep.subr.mxu0 0.0
        %4137 = vmatpush1.msra.mxu0 %v2906
        %4138 = vmatprep.subr.mxu0 0.0
        %4139 = vmatpush1.msra.mxu0 %v2907
        %4140 = vmatprep.subr.mxu0 0.0
        %4141 = vmatpush1.msra.mxu0 %v2908
        %4142 = vmatprep.subr.mxu0 0.0
        %4143 = vmatpush1.msra.mxu0 %v2909
        %4144 = vmatprep.subr.mxu0 0.0
        %4145 = vmatpush1.msra.mxu0 %v2910
        %4146 = vmatprep.subr.mxu0 0.0
        %4147 = vmatpush1.msra.mxu0 %v2911
        %4148 = vmatprep.subr.mxu0 0.0
        %4149 = vmatpush1.msra.mxu0 %v2912
        %4150 = vmatprep.subr.mxu0 0.0
        %4151 = vmatpush1.msra.mxu0 %v2913
        %4152 = vmatprep.subr.mxu0 0.0
        %4153 = vmatpush1.msra.mxu0 %v2914
        %4154 = vmatprep.subr.mxu0 0.0
        %4155 = vmatpush1.msra.mxu0 %v2915
        %4156 = vmatprep.mubr.f32.mxu0 %v2341
        %4157 = vmatmul.mubr.f32.gmra.mrb[0].mxu0 %v2340
        %v4158 = vpop.f32.mrb[0].mxu0
        %v4159 = vadd.f32 %v4014, %v4158
        %v4160 = vpop.f32.mrb[0].mxu0
        %4161 = vmatprep.mubr.f32.mxu0 %v2360
        %4162 = vmatmul.mubr.f32.gmra.mrb[0].mxu0 %v2359
        %v4163 = vpop.f32.mrb[0].mxu0
        %v4164 = vadd.f32 %v4019, %v4163
        %v4165 = vpop.f32.mrb[0].mxu0
        %4166 = vmatprep.mubr.f32.mxu0 %v2379
        %4167 = vmatmul.mubr.f32.gmra.mrb[0].mxu0 %v2378
        %v4168 = vpop.f32.mrb[0].mxu0
        %v4169 = vadd.f32 %v4024, %v4168
        %v4170 = vpop.f32.mrb[0].mxu0
        %4171 = vmatprep.mubr.f32.mxu0 %v2398
        %4172 = vmatmul.mubr.f32.gmra.mrb[0].mxu0 %v2397
        %v4173 = vpop.f32.mrb[0].mxu0
        %v4174 = vadd.f32 %v4029, %v4173
        %v4175 = vpop.f32.mrb[0].mxu0
        %4176 = vmatprep.mubr.f32.mxu0 %v2417
        %4177 = vmatmul.mubr.f32.gmra.mrb[0].mxu0 %v2416
        %v4178 = vpop.f32.mrb[0].mxu0
        %v4179 = vadd.f32 %v4034, %v4178
        %v4180 = vpop.f32.mrb[0].mxu0
        %4181 = vmatprep.mubr.f32.mxu0 %v2436
        %4182 = vmatmul.mubr.f32.gmra.mrb[0].mxu0 %v2435
        %v4183 = vpop.f32.mrb[0].mxu0
        %v4184 = vadd.f32 %v4039, %v4183
        %v4185 = vpop.f32.mrb[0].mxu0
        %4186 = vmatprep.mubr.f32.mxu0 %v2455
        %4187 = vmatmul.mubr.f32.gmra.mrb[0].mxu0 %v2454
        %v4188 = vpop.f32.mrb[0].mxu0
        %v4189 = vadd.f32 %v4044, %v4188
        %v4190 = vpop.f32.mrb[0].mxu0
        %4191 = vmatprep.mubr.f32.mxu0 %v2474
        %4192 = vmatmul.mubr.f32.gmra.mrb[0].mxu0 %v2473
        %v4193 = vpop.f32.mrb[0].mxu0
        %v4194 = vadd.f32 %v4049, %v4193
        %v4195 = vpop.f32.mrb[0].mxu0
        %4196 = vmatprep.mubr.f32.mxu0 %v2493
        %4197 = vmatmul.mubr.f32.gmra.mrb[0].mxu0 %v2492
        %v4198 = vpop.f32.mrb[0].mxu0
        %v4199 = vadd.f32 %v4054, %v4198
        %v4200 = vpop.f32.mrb[0].mxu0
        %4201 = vmatprep.mubr.f32.mxu0 %v2512
        %4202 = vmatmul.mubr.f32.gmra.mrb[0].mxu0 %v2511
        %v4203 = vpop.f32.mrb[0].mxu0
        %v4204 = vadd.f32 %v4059, %v4203
        %v4205 = vpop.f32.mrb[0].mxu0
        %4206 = vmatprep.mubr.f32.mxu0 %v2531
        %4207 = vmatmul.mubr.f32.gmra.mrb[0].mxu0 %v2530
        %v4208 = vpop.f32.mrb[0].mxu0
        %v4209 = vadd.f32 %v4064, %v4208
        %v4210 = vpop.f32.mrb[0].mxu0
        %4211 = vmatprep.mubr.f32.mxu0 %v2550
        %4212 = vmatmul.mubr.f32.gmra.mrb[0].mxu0 %v2549
        %v4213 = vpop.f32.mrb[0].mxu0
        %v4214 = vadd.f32 %v4069, %v4213
        %v4215 = vpop.f32.mrb[0].mxu0
        %4216 = vmatprep.mubr.f32.mxu0 %v2569
        %4217 = vmatmul.mubr.f32.gmra.mrb[0].mxu0 %v2568
        %v4218 = vpop.f32.mrb[0].mxu0
        %v4219 = vadd.f32 %v4074, %v4218
        %v4220 = vpop.f32.mrb[0].mxu0
        %4221 = vmatprep.mubr.f32.mxu0 %v2588
        %4222 = vmatmul.mubr.f32.gmra.mrb[0].mxu0 %v2587
        %v4223 = vpop.f32.mrb[0].mxu0
        %v4224 = vadd.f32 %v4079, %v4223
        %v4225 = vpop.f32.mrb[0].mxu0
        %4226 = vmatprep.mubr.f32.mxu0 %v2607
        %4227 = vmatmul.mubr.f32.gmra.mrb[0].mxu0 %v2606
        %v4228 = vpop.f32.mrb[0].mxu0
        %v4229 = vadd.f32 %v4084, %v4228
        %v4230 = vpop.f32.mrb[0].mxu0
        %4231 = vmatprep.mubr.f32.mxu0 %v2626
        %4232 = vmatmul.mubr.f32.gmra.mrb[0].mxu0 %v2625
        %v4233 = vpop.f32.mrb[0].mxu0
        %v4234 = vadd.f32 %v4089, %v4233
        %v4235 = vpop.f32.mrb[0].mxu0
        %4236 = vdwg.mxu0
        %4237 = vmatprep.subr.mxu0 0.0
        %4238 = vmatpush1.msra.mxu0 %v2916
        %4239 = vmatprep.subr.mxu0 0.0
        %4240 = vmatpush1.msra.mxu0 %v2917
        %4241 = vmatprep.subr.mxu0 0.0
        %4242 = vmatpush1.msra.mxu0 %v2918
        %4243 = vmatprep.subr.mxu0 0.0
        %4244 = vmatpush1.msra.mxu0 %v2919
        %4245 = vmatprep.subr.mxu0 0.0
        %4246 = vmatpush1.msra.mxu0 %v2920
        %4247 = vmatprep.subr.mxu0 0.0
        %4248 = vmatpush1.msra.mxu0 %v2921
        %4249 = vmatprep.subr.mxu0 0.0
        %4250 = vmatpush1.msra.mxu0 %v2922
        %4251 = vmatprep.subr.mxu0 0.0
        %4252 = vmatpush1.msra.mxu0 %v2923
        %4253 = vmatprep.subr.mxu0 0.0
        %4254 = vmatpush1.msra.mxu0 %v2924
        %4255 = vmatprep.subr.mxu0 0.0
        %4256 = vmatpush1.msra.mxu0 %v2925
        %4257 = vmatprep.subr.mxu0 0.0
        %4258 = vmatpush1.msra.mxu0 %v2926
        %4259 = vmatprep.subr.mxu0 0.0
        %4260 = vmatpush1.msra.mxu0 %v2927
        %4261 = vmatprep.subr.mxu0 0.0
        %4262 = vmatpush1.msra.mxu0 %v2928
        %4263 = vmatprep.subr.mxu0 0.0
        %4264 = vmatpush1.msra.mxu0 %v2929
        %4265 = vmatprep.subr.mxu0 0.0
        %4266 = vmatpush1.msra.mxu0 %v2930
        %4267 = vmatprep.subr.mxu0 0.0
        %4268 = vmatpush1.msra.mxu0 %v2931
        %4269 = vmatprep.subr.mxu0 0.0
        %4270 = vmatpush1.msra.mxu0 0.0
        %4271 = vmatprep.subr.mxu0 0.0
        %4272 = vmatpush1.msra.mxu0 0.0
        %4273 = vmatprep.subr.mxu0 0.0
        %4274 = vmatpush1.msra.mxu0 0.0
        %4275 = vmatprep.subr.mxu0 0.0
        %4276 = vmatpush1.msra.mxu0 0.0
        %4277 = vmatprep.subr.mxu0 0.0
        %4278 = vmatpush1.msra.mxu0 0.0
        %4279 = vmatprep.subr.mxu0 0.0
        %4280 = vmatpush1.msra.mxu0 0.0
        %4281 = vmatprep.subr.mxu0 0.0
        %4282 = vmatpush1.msra.mxu0 0.0
        %4283 = vmatprep.subr.mxu0 0.0
        %4284 = vmatpush1.msra.mxu0 0.0
        %4285 = vmatprep.subr.mxu0 0.0
        %4286 = vmatpush1.msra.mxu0 0.0
        %4287 = vmatprep.subr.mxu0 0.0
        %4288 = vmatpush1.msra.mxu0 0.0
        %4289 = vmatprep.subr.mxu0 0.0
        %4290 = vmatpush1.msra.mxu0 0.0
        %4291 = vmatprep.subr.mxu0 0.0
        %4292 = vmatpush1.msra.mxu0 0.0
        %4293 = vmatprep.subr.mxu0 0.0
        %4294 = vmatpush1.msra.mxu0 0.0
        %4295 = vmatprep.subr.mxu0 0.0
        %4296 = vmatpush1.msra.mxu0 0.0
        %4297 = vmatprep.subr.mxu0 0.0
        %4298 = vmatpush1.msra.mxu0 0.0
        %4299 = vmatprep.subr.mxu0 0.0
        %4300 = vmatpush1.msra.mxu0 0.0
        %4301 = vmatprep.mubr.f32.mxu0 0.0
        %4302 = vmatmul.mubr.f32.gmra.mrb[0].mxu0 %v2342
        %v4303 = vpop.f32.mrb[0].mxu0
        %v4304 = vadd.f32 %v4159, %v4303
        %v4305 = vpop.f32.mrb[0].mxu0
        %4306 = vmatprep.mubr.f32.mxu0 0.0
        %4307 = vmatmul.mubr.f32.gmra.mrb[0].mxu0 %v2361
        %v4308 = vpop.f32.mrb[0].mxu0
        %v4309 = vadd.f32 %v4164, %v4308
        %v4310 = vpop.f32.mrb[0].mxu0
        %4311 = vmatprep.mubr.f32.mxu0 0.0
        %4312 = vmatmul.mubr.f32.gmra.mrb[0].mxu0 %v2380
        %v4313 = vpop.f32.mrb[0].mxu0
        %v4314 = vadd.f32 %v4169, %v4313
        %v4315 = vpop.f32.mrb[0].mxu0
        %4316 = vmatprep.mubr.f32.mxu0 0.0
        %4317 = vmatmul.mubr.f32.gmra.mrb[0].mxu0 %v2399
        %v4318 = vpop.f32.mrb[0].mxu0
        %v4319 = vadd.f32 %v4174, %v4318
        %v4320 = vpop.f32.mrb[0].mxu0
        %4321 = vmatprep.mubr.f32.mxu0 0.0
        %4322 = vmatmul.mubr.f32.gmra.mrb[0].mxu0 %v2418
        %v4323 = vpop.f32.mrb[0].mxu0
        %v4324 = vadd.f32 %v4179, %v4323
        %v4325 = vpop.f32.mrb[0].mxu0
        %4326 = vmatprep.mubr.f32.mxu0 0.0
        %4327 = vmatmul.mubr.f32.gmra.mrb[0].mxu0 %v2437
        %v4328 = vpop.f32.mrb[0].mxu0
        %v4329 = vadd.f32 %v4184, %v4328
        %v4330 = vpop.f32.mrb[0].mxu0
        %4331 = vmatprep.mubr.f32.mxu0 0.0
        %4332 = vmatmul.mubr.f32.gmra.mrb[0].mxu0 %v2456
        %v4333 = vpop.f32.mrb[0].mxu0
        %v4334 = vadd.f32 %v4189, %v4333
        %v4335 = vpop.f32.mrb[0].mxu0
        %4336 = vmatprep.mubr.f32.mxu0 0.0
        %4337 = vmatmul.mubr.f32.gmra.mrb[0].mxu0 %v2475
        %v4338 = vpop.f32.mrb[0].mxu0
        %v4339 = vadd.f32 %v4194, %v4338
        %v4340 = vpop.f32.mrb[0].mxu0
        %4341 = vmatprep.mubr.f32.mxu0 0.0
        %4342 = vmatmul.mubr.f32.gmra.mrb[0].mxu0 %v2494
        %v4343 = vpop.f32.mrb[0].mxu0
        %v4344 = vadd.f32 %v4199, %v4343
        %v4345 = vpop.f32.mrb[0].mxu0
        %4346 = vmatprep.mubr.f32.mxu0 0.0
        %4347 = vmatmul.mubr.f32.gmra.mrb[0].mxu0 %v2513
        %v4348 = vpop.f32.mrb[0].mxu0
        %v4349 = vadd.f32 %v4204, %v4348
        %v4350 = vpop.f32.mrb[0].mxu0
        %4351 = vmatprep.mubr.f32.mxu0 0.0
        %4352 = vmatmul.mubr.f32.gmra.mrb[0].mxu0 %v2532
        %v4353 = vpop.f32.mrb[0].mxu0
        %v4354 = vadd.f32 %v4209, %v4353
        %v4355 = vpop.f32.mrb[0].mxu0
        %4356 = vmatprep.mubr.f32.mxu0 0.0
        %4357 = vmatmul.mubr.f32.gmra.mrb[0].mxu0 %v2551
        %v4358 = vpop.f32.mrb[0].mxu0
        %v4359 = vadd.f32 %v4214, %v4358
        %v4360 = vpop.f32.mrb[0].mxu0
        %4361 = vmatprep.mubr.f32.mxu0 0.0
        %4362 = vmatmul.mubr.f32.gmra.mrb[0].mxu0 %v2570
        %v4363 = vpop.f32.mrb[0].mxu0
        %v4364 = vadd.f32 %v4219, %v4363
        %v4365 = vpop.f32.mrb[0].mxu0
        %4366 = vmatprep.mubr.f32.mxu0 0.0
        %4367 = vmatmul.mubr.f32.gmra.mrb[0].mxu0 %v2589
        %v4368 = vpop.f32.mrb[0].mxu0
        %v4369 = vadd.f32 %v4224, %v4368
        %v4370 = vpop.f32.mrb[0].mxu0
        %4371 = vmatprep.mubr.f32.mxu0 0.0
        %4372 = vmatmul.mubr.f32.gmra.mrb[0].mxu0 %v2608
        %v4373 = vpop.f32.mrb[0].mxu0
        %v4374 = vadd.f32 %v4229, %v4373
        %v4375 = vpop.f32.mrb[0].mxu0
        %4376 = vmatprep.mubr.f32.mxu0 0.0
        %4377 = vmatmul.mubr.f32.gmra.mrb[0].mxu0 %v2627
        %v4378 = vpop.f32.mrb[0].mxu0
        %v4379 = vadd.f32 %v4234, %v4378
        %v4380 = vpop.f32.mrb[0].mxu0
        %4381 = vdwg.mxu0
        %v4382 = vmax.f32 %v4304, 0.0
        %v4383 = vmax.f32 %v4309, 0.0
        %v4384 = vmax.f32 %v4314, 0.0
        %v4385 = vmax.f32 %v4319, 0.0
        %v4386 = vmax.f32 %v4324, 0.0
        %v4387 = vmax.f32 %v4329, 0.0
        %v4388 = vmax.f32 %v4334, 0.0
        %v4389 = vmax.f32 %v4339, 0.0
        %v4390 = vmax.f32 %v4344, 0.0
        %v4391 = vmax.f32 %v4349, 0.0
        %v4392 = vmax.f32 %v4354, 0.0
        %v4393 = vmax.f32 %v4359, 0.0
        %v4394 = vmax.f32 %v4364, 0.0
        %v4395 = vmax.f32 %v4369, 0.0
        %v4396 = vmax.f32 %v4374, 0.0
        %v4397 = vmax.f32 %v4379, 0.0
        %v4398 = vld [vmem:[#allocation3] sm:$0xff]
        %v4399 = vld [vmem:[#allocation3 + $0x8] sm:$0xff]
        %v4400 = vld [vmem:[#allocation3 + $0x10] sm:$0xff]
        %v4401 = vld [vmem:[#allocation3 + $0x18] sm:$0xff]
        %v4402 = vld [vmem:[#allocation3 + $0x20] sm:$0xff]
        %v4403 = vld [vmem:[#allocation3 + $0x28] sm:$0xff]
        %v4404 = vld [vmem:[%s286] sm:$0xf]
        %v4405 = vld [vmem:[%s286 + $0x4] sm:$0xf]
        %v4406 = vld [vmem:[%s286 + $0x8] sm:$0xf]
        %v4407 = vld [vmem:[%s286 + $0xc] sm:$0xf]
        %v4408 = vld [vmem:[%s286 + $0x10] sm:$0xf]
        %v4409 = vld [vmem:[%s286 + $0x14] sm:$0xf]
        %v4410 = vunpack.c.l.bf16 %v4404
        %v4411 = vunpack.c.l.bf16 %v4405
        %v4412 = vunpack.c.l.bf16 %v4406
        %v4413 = vunpack.c.l.bf16 %v4407
        %v4414 = vunpack.c.l.bf16 %v4408
        %v4415 = vunpack.c.l.bf16 %v4409
        %4416 = vmatprep.subr.mxu0 0.0
        %4417 = vmatpush1.msra.mxu0 %v4382
        %4418 = vmatprep.subr.mxu0 0.0
        %4419 = vmatpush1.msra.mxu0 %v4383
        %4420 = vmatprep.subr.mxu0 0.0
        %4421 = vmatpush1.msra.mxu0 %v4384
        %4422 = vmatprep.subr.mxu0 0.0
        %4423 = vmatpush1.msra.mxu0 %v4385
        %4424 = vmatprep.subr.mxu0 0.0
        %4425 = vmatpush1.msra.mxu0 %v4386
        %4426 = vmatprep.subr.mxu0 0.0
        %4427 = vmatpush1.msra.mxu0 %v4387
        %4428 = vmatprep.subr.mxu0 0.0
        %4429 = vmatpush1.msra.mxu0 %v4388
        %4430 = vmatprep.subr.mxu0 0.0
        %4431 = vmatpush1.msra.mxu0 %v4389
        %4432 = vmatprep.subr.mxu0 0.0
        %4433 = vmatpush1.msra.mxu0 %v4390
        %4434 = vmatprep.subr.mxu0 0.0
        %4435 = vmatpush1.msra.mxu0 %v4391
        %4436 = vmatprep.subr.mxu0 0.0
        %4437 = vmatpush1.msra.mxu0 %v4392
        %4438 = vmatprep.subr.mxu0 0.0
        %4439 = vmatpush1.msra.mxu0 %v4393
        %4440 = vmatprep.subr.mxu0 0.0
        %4441 = vmatpush1.msra.mxu0 %v4394
        %4442 = vmatprep.subr.mxu0 0.0
        %4443 = vmatpush1.msra.mxu0 %v4395
        %4444 = vmatprep.subr.mxu0 0.0
        %4445 = vmatpush1.msra.mxu0 %v4396
        %4446 = vmatprep.subr.mxu0 0.0
        %4447 = vmatpush1.msra.mxu0 %v4397
        %4448 = vmatprep.subr.mxu0 0.0
        %4449 = vmatpush1.msra.mxu0 0.0
        %4450 = vmatprep.subr.mxu0 0.0
        %4451 = vmatpush1.msra.mxu0 0.0
        %4452 = vmatprep.subr.mxu0 0.0
        %4453 = vmatpush1.msra.mxu0 0.0
        %4454 = vmatprep.subr.mxu0 0.0
        %4455 = vmatpush1.msra.mxu0 0.0
        %4456 = vmatprep.subr.mxu0 0.0
        %4457 = vmatpush1.msra.mxu0 0.0
        %4458 = vmatprep.subr.mxu0 0.0
        %4459 = vmatpush1.msra.mxu0 0.0
        %4460 = vmatprep.subr.mxu0 0.0
        %4461 = vmatpush1.msra.mxu0 0.0
        %4462 = vmatprep.subr.mxu0 0.0
        %4463 = vmatpush1.msra.mxu0 0.0
        %4464 = vmatprep.subr.mxu0 0.0
        %4465 = vmatpush1.msra.mxu0 0.0
        %4466 = vmatprep.subr.mxu0 0.0
        %4467 = vmatpush1.msra.mxu0 0.0
        %4468 = vmatprep.subr.mxu0 0.0
        %4469 = vmatpush1.msra.mxu0 0.0
        %4470 = vmatprep.subr.mxu0 0.0
        %4471 = vmatpush1.msra.mxu0 0.0
        %4472 = vmatprep.subr.mxu0 0.0
        %4473 = vmatpush1.msra.mxu0 0.0
        %4474 = vmatprep.subr.mxu0 0.0
        %4475 = vmatpush1.msra.mxu0 0.0
        %4476 = vmatprep.subr.mxu0 0.0
        %4477 = vmatpush1.msra.mxu0 0.0
        %4478 = vmatprep.subr.mxu0 0.0
        %4479 = vmatpush1.msra.mxu0 0.0
        %4480 = vmatprep.mubr.f32.mxu0 0.0
        %4481 = vmatmul.mubr.f32.gmra.mrb[0].mxu0 %v4410
        %v4482 = vpop.f32.mrb[0].mxu0
        %v4483 = vadd.f32 0.0, %v4482
        %v4484 = vpop.f32.mrb[0].mxu0
        %4485 = vmatprep.mubr.f32.mxu0 0.0
        %4486 = vmatmul.mubr.f32.gmra.mrb[0].mxu0 %v4411
        %v4487 = vpop.f32.mrb[0].mxu0
        %v4488 = vadd.f32 0.0, %v4487
        %v4489 = vpop.f32.mrb[0].mxu0
        %4490 = vmatprep.mubr.f32.mxu0 0.0
        %4491 = vmatmul.mubr.f32.gmra.mrb[0].mxu0 %v4412
        %v4492 = vpop.f32.mrb[0].mxu0
        %v4493 = vadd.f32 0.0, %v4492
        %v4494 = vpop.f32.mrb[0].mxu0
        %4495 = vmatprep.mubr.f32.mxu0 0.0
        %4496 = vmatmul.mubr.f32.gmra.mrb[0].mxu0 %v4413
        %v4497 = vpop.f32.mrb[0].mxu0
        %v4498 = vadd.f32 0.0, %v4497
        %v4499 = vpop.f32.mrb[0].mxu0
        %4500 = vmatprep.mubr.f32.mxu0 0.0
        %4501 = vmatmul.mubr.f32.gmra.mrb[0].mxu0 %v4414
        %v4502 = vpop.f32.mrb[0].mxu0
        %v4503 = vadd.f32 0.0, %v4502
        %v4504 = vpop.f32.mrb[0].mxu0
        %4505 = vmatprep.mubr.f32.mxu0 0.0
        %4506 = vmatmul.mubr.f32.gmra.mrb[0].mxu0 %v4415
        %v4507 = vpop.f32.mrb[0].mxu0
        %v4508 = vadd.f32 0.0, %v4507
        %v4509 = vpop.f32.mrb[0].mxu0
        %4510 = vdwg.mxu0
        %v4511 = vadd.f32 %v4398, %v4483
        %v4512 = vadd.f32 %v4399, %v4488
        %v4513 = vadd.f32 %v4400, %v4493
        %v4514 = vadd.f32 %v4401, %v4498
        %v4515 = vadd.f32 %v4402, %v4503
        %v4516 = vadd.f32 %v4403, %v4508
        %4517 = vst [vmem:[#allocation3] sm:$0xff] %v4511
        %4518 = vst [vmem:[#allocation3 + $0x8] sm:$0xff] %v4512
        %4519 = vst [vmem:[#allocation3 + $0x10] sm:$0xff] %v4513
        %4520 = vst [vmem:[#allocation3 + $0x18] sm:$0xff] %v4514
        %4521 = vst [vmem:[#allocation3 + $0x20] sm:$0xff] %v4515
        %4522 = vst [vmem:[#allocation3 + $0x28] sm:$0xff] %v4516
        %p4523 = scmp.eq.s32.totalorder %s18, 3
        // Predicated region
        $region86: #{faster_rcnn_forward.1} parent=76 // pred_check
          %p4524 = pneg %p4523
        $region87: #{faster_rcnn_forward.1} parent=76 // pred_check_branch
          %4526 = sbr.rel (%p4524) target = $region89
        $region88: #{faster_rcnn_forward.1} parent=76 // pred_region
          %v4527 = vld [vmem:[#allocation3] sm:$0xff]
          %v4528 = vld [vmem:[#allocation3 + $0x8] sm:$0xff]
          %v4529 = vld [vmem:[#allocation3 + $0x10] sm:$0xff]
          %v4530 = vld [vmem:[#allocation3 + $0x18] sm:$0xff]
          %v4531 = vld [vmem:[#allocation3 + $0x20] sm:$0xff]
          %v4532 = vld [vmem:[#allocation3 + $0x28] sm:$0xff]
          %4533 = vst [vmem:[%s5] sm:$0xff] %v4527
          %4534 = vst [vmem:[%s5 + $0x8] sm:$0xff] %v4528
          %4535 = vst [vmem:[%s5 + $0x10] sm:$0xff] %v4529
          %4536 = vst [vmem:[%s5 + $0x18] sm:$0xff] %v4530
          %4537 = vst [vmem:[%s5 + $0x20] sm:$0xff] %v4531
          %4538 = vst [vmem:[%s5 + $0x28] sm:$0xff] %v4532
          %v4539 = vmul.f32 %v4529, 0.1
          %v4540 = vmul.f32 %v4530, 0.1
          %v4541 = vmul.f32 %v4531, 0.2
          %v4542 = vmul.f32 %v4532, 0.2
          %v4543 = vld [vmem:[%s4] sm:$0xff]
          %v4544 = vld [vmem:[%s4 + $0x8] sm:$0xff]
          %v4545 = vld [vmem:[%s4 + $0x10] sm:$0xff]
          %v4546 = vld [vmem:[%s4 + $0x18] sm:$0xff]
          %v4547 = vmul.f32 %v4539, %v4543
          %v4548 = vadd.f32 %v4547, %v4545
          %v4549 = vmul.f32 %v4540, %v4544
          %v4550 = vadd.f32 %v4549, %v4546
          %v4551 = vmul.f32 %v4541, 1.442695
          %v4552 = vpow.pop %v4551
          %v4553 = vmul.f32 %v4552, %v4543
          %v4554 = vmul.f32 %v4542, 1.442695
          %v4555 = vpow.pop %v4554
          %v4556 = vmul.f32 %v4555, %v4544
          %v4557 = vmul.f32 %v4553, 0.5
          %v4558 = vsub.f32 %v4548, %v4557
          %v4559 = vmax.f32 %v4558, 0.0
          %v4560 = vmin.f32 %v4559, 128.0
          %v4561 = vmul.f32 %v4556, 0.5
          %v4562 = vsub.f32 %v4550, %v4561
          %v4563 = vmax.f32 %v4562, 0.0
          %v4564 = vmin.f32 %v4563, 128.0
          %v4565 = vadd.f32 %v4548, %v4557
          %v4566 = vmin.f32 %v4565, 128.0
          %v4567 = vmax.f32 %v4566, 0.0
          %v4568 = vadd.f32 %v4550, %v4561
          %v4569 = vmin.f32 %v4568, 128.0
          %v4570 = vmax.f32 %v4569, 0.0
          %v4571 = vsub.f32 %v4528, %v4527
          %v4572 = vmin.f32 %v4571, 0.0
          %v4573 = vmul.f32 %v4572, 1.442695
          %v4574 = vpow.pop %v4573
          %v4575 = vsub.f32 %v4572, %v4571
          %v4576 = vmul.f32 %v4575, 1.442695
          %v4577 = vpow.pop %v4576
          %v4578 = vadd.f32 %v4574, %v4577
          %v4579 = vrcp.pop %v4578
          %v4580 = vmul.f32 %v4574, %v4579
          %4581 = vst [vmem:[%s6] sm:$0xff] %v4560
          %4582 = vst [vmem:[%s6 + $0x8] sm:$0xff] %v4564
          %4583 = vst [vmem:[%s6 + $0x10] sm:$0xff] %v4567
          %4584 = vst [vmem:[%s6 + $0x18] sm:$0xff] %v4570
          %4585 = vst [vmem:[%s6 + $0x20] sm:$0xff] %v4580
        $region89: #{faster_rcnn_forward.1} parent=76 // pred_fallthru
          _
        // Predicated region
        $region90: #{faster_rcnn_forward.1} parent=76 // pred_check
          %p4586 = pneg %p146
        $region91: #{faster_rcnn_forward.1} parent=76 // pred_check_branch
          %4588 = sbr.rel (%p4586) target = $region93
        $region92: #{faster_rcnn_forward.1} parent=76 // pred_region
          _
        $region93: #{faster_rcnn_forward.1} parent=76 // pred_fallthru
          _
        // Predicated region
        $region94: #{faster_rcnn_forward.1} parent=76 // pred_check
          %p4589 = pneg %p167
        $region95: #{faster_rcnn_forward.1} parent=76 // pred_check_branch
          %4591 = sbr.rel (%p4589) target = $region97
        $region96: #{faster_rcnn_forward.1} parent=76 // pred_region
          _
        $region97: #{faster_rcnn_forward.1} parent=76 // pred_fallthru
          _
        // Predicated region
        $region98: #{faster_rcnn_forward.1} parent=76 // pred_check
          %p4592 = pneg %p146
        $region99: #{faster_rcnn_forward.1} parent=76 // pred_check_branch
          %4594 = sbr.rel (%p4592) target = $region101
        $region100: #{faster_rcnn_forward.1} parent=76 // pred_region
          _
        $region101: #{faster_rcnn_forward.1} parent=76 // pred_fallthru
          _
        // Predicated region
        $region102: #{faster_rcnn_forward.1} parent=76 // pred_check
          %p4595 = pneg %p167
        $region103: #{faster_rcnn_forward.1} parent=76 // pred_check_branch
          %4597 = sbr.rel (%p4595) target = $region105
        $region104: #{faster_rcnn_forward.1} parent=76 // pred_region
          _
        $region105: #{faster_rcnn_forward.1} parent=76 // pred_fallthru
          _
      $region77: #{faster_rcnn_forward.1} parent=5 // pred_fallthru
        _
      %p4598 = scmp.le.s32.totalorder 2, %s13
      // Predicated region
      $region106: #{faster_rcnn_forward.1} parent=5 // pred_check
        %p4599 = pneg %p4598
      $region107: #{faster_rcnn_forward.1} parent=5 // pred_check_branch
        %4601 = sbr.rel (%p4599) target = $region109
      $region108: #{faster_rcnn_forward.1} parent=5 // pred_region
        %s4602 = ssub.s32 %s13, 2
      $region109: #{faster_rcnn_forward.1} parent=5 // pred_fallthru
        _
    $region6: #{faster_rcnn_forward.1} parent=1 // loop_footer
      %s17 = sadd.s32 1, %s13
    $region7: #{faster_rcnn_forward.1} parent=1 // loop_footer_branch
      %12 = sbr.rel target = $region3
    $region8: #{faster_rcnn_forward.1} parent=1 // loop_exit
      _

</llo_original>
